<compile_context>
chip_gen: v5e
topology: v5e:2x2
jax: 0.10.0
libtpu: 0.0.40
codegen_flags: <defaults>
</compile_context>

<pallas_src>
import math

import numpy as np

import jax
import jax.numpy as jnp
from jax.experimental import pallas as pl
from jax.experimental.pallas import tpu as pltpu

# ---- model hyper-parameters (small, consistent with DiscreteVAE defaults) ----
CHANNELS = 8          # `channels`
HIDDEN_DIM = 16       # `hidden_dim`
NUM_LAYERS = 2        # `num_layers`     -> enc_chans = [8, 16, 32]
NUM_RESBLOCKS = 2     # `num_resnet_blocks`
CODEBOOK_DIM = 24     # `codebook_dim`
NUM_TOKENS = 64       # `num_tokens`
KERNEL_SIZE = 3
STRIDE = 2
_INNERMOST = HIDDEN_DIM * 2


# --------------------------------------------------------------------------
# Host-side constants: block-diagonal (over the batch-fold factor BT) 0/1
# selection matrices for conv tap shifting / stride-2 subsampling and nearest
# x2 upsampling.  Block-diagonal => conv taps never leak across batch
# boundaries inside a folded [BT*N, C] slab.
# --------------------------------------------------------------------------
def _sel_np(lin, lout, stride, offset, bt):
    m = np.zeros((bt * lout, bt * lin), np.float32)
    for b in range(bt):
        for r in range(lout):
            c = stride * r + offset
            if 0 <= c < lin:                       # zero row == conv padding
                m[b * lout + r, b * lin + c] = 1.0
    return m


def _ups_np(lin, bt):
    m = np.zeros((bt * 2 * lin, bt * lin), np.float32)
    for b in range(bt):
        for r in range(2 * lin):
            m[b * 2 * lin + r, b * lin + r // 2] = 1.0
    return m


def _pack_rows(named, row_align, lane, dtype):
    """Pack (name, 2D array) pairs into one [R, lane] slab with row-aligned
    chunks.  Returns (slab, {name: (row_offset, rows, cols)}) with static
    Python offsets so the kernel can unpack with static ref slices."""
    index, parts, off = {}, [], 0
    for name, a in named:
        r, c = a.shape
        assert c <= lane
        rp = -(-r // row_align) * row_align
        index[name] = (off, r, c)
        parts.append(jnp.pad(jnp.asarray(a).astype(dtype),
                             ((0, rp - r), (0, lane - c))))
        off += rp
    return jnp.concatenate(parts, axis=0), index


def _pick_bt(b, n):
    """Batch-fold factor: fill the MXU M dimension (target BT*n ~ 256) while
    keeping >= 2 grid steps so v7x megacore can shard the batch over 2 TCs."""
    target = max(1, min(b, 256 // max(n, 1)))
    if b >= 2:
        target = min(target, b // 2)
    bt = 1
    for d in range(1, target + 1):
        if b % d == 0:
            bt = d
    return bt


# --------------------------------------------------------------------------
# Fused DiscreteVAE.forward kernel (one grid step == BT batch elements)
# --------------------------------------------------------------------------
def _make_kernel(widx, gidx, fidx):
    bf16 = jnp.bfloat16

    def kernel(x_ref, w_ref, g_ref, f_ref, out_ref, recon_ref, diff_ref):
        # Static-slice unpackers into the three packed VMEM slabs.
        def W(name):
            o, r, c = widx[name]
            return w_ref[o:o + r, :c]          # bf16

        def G(name):
            o, r, c = gidx[name]
            return g_ref[o:o + r, :c]          # bf16 0/1 selection matrix

        def F(name):
            o, r, c = fidx[name]
            return f_ref[o:o + r, :c]          # f32

        def conv3(x, sel_names, wn, bn, relu):
            # k=3, pad=1 conv as one im2col matmul; MXU operands bf16,
            # accumulation/bias/ReLU in f32.
            xb = x.astype(bf16)
            col = jnp.concatenate(
                [jnp.dot(G(s), xb, preferred_element_type=jnp.float32)
                 for s in sel_names], axis=1).astype(bf16)
            y = jnp.dot(col, W(wn), preferred_element_type=jnp.float32) + F(bn)
            return jnp.maximum(y, 0.0) if relu else y

        def conv1(x, wn, bn, relu=False):
            y = jnp.dot(x.astype(bf16), W(wn),
                        preferred_element_type=jnp.float32) + F(bn)
            return jnp.maximum(y, 0.0) if relu else y

        def resblock(x, p, sel_names):
            h = conv3(x, sel_names, p + "w1", p + "b1", True)
            h = conv3(h, sel_names, p + "w2", p + "b2", True)
            h = conv1(h, p + "w3", p + "b3")
            return h + x

        def upsample(x, uname):                # nearest x2 (exact selection)
            return jnp.dot(G(uname), x.astype(bf16),
                           preferred_element_type=jnp.float32)

        sel_e1 = ("e1_m1", "e1_z", "e1_p1")    # stride-2, N   -> N/2
        sel_e2 = ("e2_m1", "e2_z", "e2_p1")    # stride-2, N/2 -> N/4
        sel_r4 = ("r4_m1", "r4_z", "r4_p1")    # stride-1 at N/4 (resblocks)
        sel_d8 = ("d8_m1", "d8_z", "d8_p1")    # stride-1 at N/2
        sel_d16 = ("d16_m1", "d16_z", "d16_p1")  # stride-1 at N

        x = x_ref[...]                         # [BT*N, C] f32, channels-last

        # ---- encoder ----  (norm() is identity: normalization=None)
        h = conv3(x, sel_e1, "e1w", "e1b", True)          # [BT*N/2, H]
        h = conv3(h, sel_e2, "e2w", "e2b", True)          # [BT*N/4, 2H]
        h = resblock(h, "er1", sel_r4)
        h = resblock(h, "er2", sel_r4)
        f = conv1(h, "eow", "eob")                        # logits [BT*n, D]

        # ---- codebook (Quantize) ----
        cross = jnp.dot(f.astype(bf16), W("emb"),
                        preferred_element_type=jnp.float32)   # [BT*n, Ntok]
        f_sq = jnp.sum(f * f, axis=1, keepdims=True)
        soft = 2.0 * cross - f_sq - F("esq")              # soft_codes = -dist
        m = jnp.max(soft, axis=1, keepdims=True)
        lane = jax.lax.broadcasted_iota(jnp.int32, soft.shape, 1)
        # first index attaining the max (== torch .max(1) indices up to ties)
        idx = jnp.min(jnp.where(soft == m, lane, soft.shape[1]),
                      axis=1, keepdims=True)
        onehot = (lane == idx).astype(bf16)               # [BT*n, Ntok]
        # TODO(synk): at production n_embed=8192 replace the one-hot matmul
        # with an argmax + row gather of the codebook (O(n*D) instead of the
        # [n, Nemb] intermediate).
        q = jnp.dot(onehot, W("embT"), preferred_element_type=jnp.float32)
        diff = jnp.sum((q - f) ** 2, axis=(0, 1), keepdims=True)  # (1, 1)

        # ---- decoder ----  (straight-through / decode(codes) give identical
        # forward values: both feed the embedded codes, so decode q directly)
        d = conv1(q, "diw", "dib")
        d = resblock(d, "dr1", sel_r4)
        d = resblock(d, "dr2", sel_r4)
        d = upsample(d, "up48")
        d = conv3(d, sel_d8, "u1w", "u1b", True)          # [BT*N/2, 2H]
        d = upsample(d, "up816")
        d = conv3(d, sel_d16, "u2w", "u2b", True)         # [BT*N, H]
        out = conv1(d, "dow", "dob")                      # [BT*N, C]

        out_ref[...] = out
        recon_ref[...] = (x - out) ** 2        # mse_loss(img, out, 'none')
        diff_ref[...] = diff                   # per-fold sum((q - f)^2)

    return kernel


# --------------------------------------------------------------------------
# Wrapper
# --------------------------------------------------------------------------
def dvae_forward(params, img):
    """img: [B, channels, N] (NCL, matching PyTorch).  Returns
    (recon_loss [B, channels, N], commitment_loss scalar, out [B, channels, N])."""
    B, C, N = img.shape
    assert C == CHANNELS
    assert N % (STRIDE ** NUM_LAYERS) == 0 and N % 8 == 0

    bt = _pick_bt(B, N)
    grid = B // bt
    n_codes = N // (STRIDE ** NUM_LAYERS)

    # NCL -> channels-last, with the batch folded into the matmul M dimension.
    x_cl = jnp.transpose(img, (0, 2, 1)).reshape(B * N, C)

    p = params
    # ---- bf16 slab: conv weights (im2col-flattened) + codebook (+ its host
    # transpose), each chunk 16-row aligned, lane width 128 ----
    w_list = [
        ("e1w", p["enc1"]["w"]), ("e2w", p["enc2"]["w"]),
        ("er1w1", p["enc_rb1"]["w1"]), ("er1w2", p["enc_rb1"]["w2"]),
        ("er1w3", p["enc_rb1"]["w3"]),
        ("er2w1", p["enc_rb2"]["w1"]), ("er2w2", p["enc_rb2"]["w2"]),
        ("er2w3", p["enc_rb2"]["w3"]),
        ("eow", p["enc_out"]["w"]),
        ("diw", p["dec_in"]["w"]),
        ("dr1w1", p["dec_rb1"]["w1"]), ("dr1w2", p["dec_rb1"]["w2"]),
        ("dr1w3", p["dec_rb1"]["w3"]),
        ("dr2w1", p["dec_rb2"]["w1"]), ("dr2w2", p["dec_rb2"]["w2"]),
        ("dr2w3", p["dec_rb2"]["w3"]),
        ("u1w", p["dec_up1"]["w"]), ("u2w", p["dec_up2"]["w"]),
        ("dow", p["dec_out"]["w"]),
        ("emb", p["embed"]),                       # [D, Ntok]  (cross matmul)
        ("embT", p["embed"].T),                    # pre-transposed on host
    ]
    wslab, widx = _pack_rows(w_list, row_align=16, lane=128, dtype=jnp.bfloat16)

    # ---- f32 slab: biases + host-precomputed sum(embed^2, axis=0) ----
    f_list = [
        ("e1b", p["enc1"]["b"]), ("e2b", p["enc2"]["b"]),
        ("er1b1", p["enc_rb1"]["b1"]), ("er1b2", p["enc_rb1"]["b2"]),
        ("er1b3", p["enc_rb1"]["b3"]),
        ("er2b1", p["enc_rb2"]["b1"]), ("er2b2", p["enc_rb2"]["b2"]),
        ("er2b3", p["enc_rb2"]["b3"]),
        ("eob", p["enc_out"]["b"]),
        ("dib", p["dec_in"]["b"]),
        ("dr1b1", p["dec_rb1"]["b1"]), ("dr1b2", p["dec_rb1"]["b2"]),
        ("dr1b3", p["dec_rb1"]["b3"]),
        ("dr2b1", p["dec_rb2"]["b1"]), ("dr2b2", p["dec_rb2"]["b2"]),
        ("dr2b3", p["dec_rb2"]["b3"]),
        ("u1b", p["dec_up1"]["b"]), ("u2b", p["dec_up2"]["b"]),
        ("dob", p["dec_out"]["b"]),
        ("esq", jnp.sum(p["embed"] ** 2, axis=0, keepdims=True)),
    ]
    fslab, fidx = _pack_rows(f_list, row_align=8, lane=128, dtype=jnp.float32)

    # ---- bf16 slab of constant block-diagonal selection/upsample matrices ----
    g_lane = max(128, -(-(bt * N) // 128) * 128)
    g_list = []
    for tag, lin, lout, st in (("e1", N, N // 2, 2),
                               ("e2", N // 2, N // 4, 2),
                               ("r4", N // 4, N // 4, 1),
                               ("d8", N // 2, N // 2, 1),
                               ("d16", N, N, 1)):
        for off, suf in ((-1, "_m1"), (0, "_z"), (1, "_p1")):
            g_list.append((tag + suf, _sel_np(lin, lout, st, off, bt)))
    g_list.append(("up48", _ups_np(N // 4, bt)))
    g_list.append(("up816", _ups_np(N // 2, bt)))
    gslab, gidx = _pack_rows(g_list, row_align=16, lane=g_lane,
                             dtype=jnp.bfloat16)

    kernel = _make_kernel(widx, gidx, fidx)

    def _full(a):
        # Slab stays fully VMEM-resident; constant index_map -> fetched once.
        return pl.BlockSpec(a.shape, lambda g: (0, 0))

    out_cl, recon_cl, diff_part = pl.pallas_call(
        kernel,
        grid=(grid,),
        in_specs=[pl.BlockSpec((bt * N, C), lambda g: (g, 0)),
                  _full(wslab), _full(gslab), _full(fslab)],
        out_specs=(pl.BlockSpec((bt * N, C), lambda g: (g, 0)),
                   pl.BlockSpec((bt * N, C), lambda g: (g, 0)),
                   pl.BlockSpec((None, 1, 1), lambda g: (g, 0, 0))),
        out_shape=(jax.ShapeDtypeStruct((B * N, C), jnp.float32),   # out
                   jax.ShapeDtypeStruct((B * N, C), jnp.float32),   # recon
                   jax.ShapeDtypeStruct((grid, 1, 1), jnp.float32)),  # diff
        compiler_params=pltpu.CompilerParams(
            dimension_semantics=("parallel",)),        # megacore on v7x
    )(x_cl, wslab, gslab, fslab)

    out = jnp.transpose(out_cl.reshape(B, N, C), (0, 2, 1))      # back to NCL
    recon_loss = jnp.transpose(recon_cl.reshape(B, N, C), (0, 2, 1))
    commitment_loss = jnp.sum(diff_part) / (B * n_codes * CODEBOOK_DIM)

    # TODO(synk): training-mode EMA codebook updates / distributed all_reduce /
    # record_codes logging are stateful side effects with no Pallas equivalent.
    return recon_loss, commitment_loss, out


# --------------------------------------------------------------------------
# Parameter construction (deterministic, synthetic)
# --------------------------------------------------------------------------
def _init_conv(key, cin, cout, k):
    # Conv weight stored im2col-flattened [K*Cin, Cout] in bf16 (MXU operand);
    # mapping from a PyTorch Conv1d weight Wt[Cout, Cin, K]:
    #   w[k*Cin + c, o] == Wt[o, c, k]
    kw, kb = jax.random.split(key)
    scale = 1.0 / math.sqrt(cin * k)
    w = (jax.random.normal(kw, (k * cin, cout), jnp.float32) * scale
         ).astype(jnp.bfloat16)
    b = jax.random.normal(kb, (1, cout), jnp.float32) * scale
    return {"w": w, "b": b}


def _init_resblock(key, chan):
    k1, k2, k3 = jax.random.split(key, 3)
    c1 = _init_conv(k1, chan, chan, 3)
    c2 = _init_conv(k2, chan, chan, 3)
    c3 = _init_conv(k3, chan, chan, 1)
    return {"w1": c1["w"], "b1": c1["b"],
            "w2": c2["w"], "b2": c2["b"],
            "w3": c3["w"], "b3": c3["b"]}


def init_params(key):
    keys = jax.random.split(key, 12)
    return {
        "enc1": _init_conv(keys[0], CHANNELS, HIDDEN_DIM, KERNEL_SIZE),
        "enc2": _init_conv(keys[1], HIDDEN_DIM, _INNERMOST, KERNEL_SIZE),
        "enc_rb1": _init_resblock(keys[2], _INNERMOST),
        "enc_rb2": _init_resblock(keys[3], _INNERMOST),
        "enc_out": _init_conv(keys[4], _INNERMOST, CODEBOOK_DIM, 1),
        "embed": jax.random.normal(keys[5], (CODEBOOK_DIM, NUM_TOKENS),
                                   jnp.float32),
        "dec_in": _init_conv(keys[6], CODEBOOK_DIM, _INNERMOST, 1),
        "dec_rb1": _init_resblock(keys[7], _INNERMOST),
        "dec_rb2": _init_resblock(keys[8], _INNERMOST),
        "dec_up1": _init_conv(keys[9], _INNERMOST, _INNERMOST, KERNEL_SIZE),
        "dec_up2": _init_conv(keys[10], _INNERMOST, HIDDEN_DIM, KERNEL_SIZE),
        "dec_out": _init_conv(keys[11], HIDDEN_DIM, CHANNELS, 1),
    }


# --------------------------------------------------------------------------
if __name__ == "__main__":
    # B=8 -> batch-fold BT=4 per grid step, grid=2 (keeps v7x megacore busy).
    B, C, N = 8, CHANNELS, 16
    img = jax.random.normal(jax.random.PRNGKey(0), (B, C, N), jnp.float32)
    params = init_params(jax.random.PRNGKey(1))

    fwd = jax.jit(dvae_forward)
    recon_loss, commitment_loss, out = fwd(params, img)
    jax.block_until_ready((recon_loss, commitment_loss, out))

    assert recon_loss.shape == (B, C, N)
    assert out.shape == (B, C, N)
    assert commitment_loss.shape == ()
    print("KERNEL_OK")
</pallas_src>

<mosaic_0001>
module attributes {stable_mosaic.version = 11 : i64} {
  func.func @kernel(%arg0: i32, %arg1: memref<64x8xf32, #tpu.memory_space<vmem>>, %arg2: memref<1344x128xbf16, #tpu.memory_space<vmem>>, %arg3: memref<576x128xbf16, #tpu.memory_space<vmem>>, %arg4: memref<160x128xf32, #tpu.memory_space<vmem>>, %arg5: memref<64x8xf32, #tpu.memory_space<vmem>>, %arg6: memref<64x8xf32, #tpu.memory_space<vmem>>, %arg7: memref<1x1x1xf32, #tpu.memory_space<vmem>>) attributes {dimension_semantics = [#tpu.dimension_semantics<parallel>], iteration_bounds = array<i64: 2>, scalar_prefetch = 0 : i64, scratch_operands = 0 : i64, tpu.core_type = #tpu.core_type<tc>, window_params = [{transform_indices = @transform_0, window_bounds = array<i64: 64, 8>}, {pipeline_mode = #tpu.pipeline_mode<synchronous>, transform_indices = @transform_1, window_bounds = array<i64: 1344, 128>}, {pipeline_mode = #tpu.pipeline_mode<synchronous>, transform_indices = @transform_2, window_bounds = array<i64: 576, 128>}, {pipeline_mode = #tpu.pipeline_mode<synchronous>, transform_indices = @transform_3, window_bounds = array<i64: 160, 128>}, {transform_indices = @transform_4, window_bounds = array<i64: 64, 8>}, {transform_indices = @transform_5, window_bounds = array<i64: 64, 8>}, {transform_indices = @transform_6, window_bounds = array<i64: 1, 1, 1>}]} {
    %c0 = arith.constant 0 : index
    %c0_0 = arith.constant 0 : index
    %0 = vector.load %arg1[%c0, %c0_0] : memref<64x8xf32, #tpu.memory_space<vmem>>, vector<64x8xf32>
    %1 = arith.truncf %0 : vector<64x8xf32> to vector<64x8xbf16>
    %c0_1 = arith.constant 0 : index
    %c0_2 = arith.constant 0 : index
    %2 = vector.load %arg3[%c0_1, %c0_2] : memref<576x128xbf16, #tpu.memory_space<vmem>>, vector<32x64xbf16>
    %cst = arith.constant dense<0.000000e+00> : vector<32x8xf32>
    %3 = tpu.matmul %2, %1, %cst {dimension_numbers = #tpu.dot_dimension_numbers<[1], [0], [0], [1], [0, 0, 1, 1], [], []>} : vector<32x64xbf16>, vector<64x8xbf16>, vector<32x8xf32> -> vector<32x8xf32>
    %c32 = arith.constant 32 : index
    %c0_3 = arith.constant 0 : index
    %4 = vector.load %arg3[%c32, %c0_3] : memref<576x128xbf16, #tpu.memory_space<vmem>>, vector<32x64xbf16>
    %cst_4 = arith.constant dense<0.000000e+00> : vector<32x8xf32>
    %5 = tpu.matmul %4, %1, %cst_4 {dimension_numbers = #tpu.dot_dimension_numbers<[1], [0], [0], [1], [0, 0, 1, 1], [], []>} : vector<32x64xbf16>, vector<64x8xbf16>, vector<32x8xf32> -> vector<32x8xf32>
    %c64 = arith.constant 64 : index
    %c0_5 = arith.constant 0 : index
    %6 = vector.load %arg3[%c64, %c0_5] : memref<576x128xbf16, #tpu.memory_space<vmem>>, vector<32x64xbf16>
    %cst_6 = arith.constant dense<0.000000e+00> : vector<32x8xf32>
    %7 = tpu.matmul %6, %1, %cst_6 {dimension_numbers = #tpu.dot_dimension_numbers<[1], [0], [0], [1], [0, 0, 1, 1], [], []>} : vector<32x64xbf16>, vector<64x8xbf16>, vector<32x8xf32> -> vector<32x8xf32>
    %8 = tpu.concatenate %3, %5, %7 in 1 : vector<32x8xf32>, vector<32x8xf32>, vector<32x8xf32> -> vector<32x24xf32>
    %9 = arith.truncf %8 : vector<32x24xf32> to vector<32x24xbf16>
    %c0_7 = arith.constant 0 : index
    %c0_8 = arith.constant 0 : index
    %10 = vector.load %arg2[%c0_7, %c0_8] : memref<1344x128xbf16, #tpu.memory_space<vmem>>, vector<24x16xbf16>
    %cst_9 = arith.constant dense<0.000000e+00> : vector<32x16xf32>
    %11 = tpu.matmul %9, %10, %cst_9 {dimension_numbers = #tpu.dot_dimension_numbers<[1], [0], [0], [1], [0, 0, 1, 1], [], []>} : vector<32x24xbf16>, vector<24x16xbf16>, vector<32x16xf32> -> vector<32x16xf32>
    %c0_10 = arith.constant 0 : index
    %c0_11 = arith.constant 0 : index
    %12 = vector.load %arg4[%c0_10, %c0_11] : memref<160x128xf32, #tpu.memory_space<vmem>>, vector<1x16xf32>
    %13 = vector.broadcast %12 : vector<1x16xf32> to vector<32x16xf32>
    %14 = arith.addf %11, %13 : vector<32x16xf32>
    %cst_12 = arith.constant 0.000000e+00 : f32
    %15 = vector.broadcast %cst_12 : f32 to vector<32x16xf32>
    %16 = arith.maximumf %14, %15 : vector<32x16xf32>
    %17 = arith.truncf %16 : vector<32x16xf32> to vector<32x16xbf16>
    %c96 = arith.constant 96 : index
    %c0_13 = arith.constant 0 : index
    %18 = vector.load %arg3[%c96, %c0_13] : memref<576x128xbf16, #tpu.memory_space<vmem>>, vector<16x32xbf16>
    %cst_14 = arith.constant dense<0.000000e+00> : vector<16x16xf32>
    %19 = tpu.matmul %18, %17, %cst_14 {dimension_numbers = #tpu.dot_dimension_numbers<[1], [0], [0], [1], [0, 0, 1, 1], [], []>} : vector<16x32xbf16>, vector<32x16xbf16>, vector<16x16xf32> -> vector<16x16xf32>
    %c112 = arith.constant 112 : index
    %c0_15 = arith.constant 0 : index
    %20 = vector.load %arg3[%c112, %c0_15] : memref<576x128xbf16, #tpu.memory_space<vmem>>, vector<16x32xbf16>
    %cst_16 = arith.constant dense<0.000000e+00> : vector<16x16xf32>
    %21 = tpu.matmul %20, %17, %cst_16 {dimension_numbers = #tpu.dot_dimension_numbers<[1], [0], [0], [1], [0, 0, 1, 1], [], []>} : vector<16x32xbf16>, vector<32x16xbf16>, vector<16x16xf32> -> vector<16x16xf32>
    %c128 = arith.constant 128 : index
    %c0_17 = arith.constant 0 : index
    %22 = vector.load %arg3[%c128, %c0_17] : memref<576x128xbf16, #tpu.memory_space<vmem>>, vector<16x32xbf16>
    %cst_18 = arith.constant dense<0.000000e+00> : vector<16x16xf32>
    %23 = tpu.matmul %22, %17, %cst_18 {dimension_numbers = #tpu.dot_dimension_numbers<[1], [0], [0], [1], [0, 0, 1, 1], [], []>} : vector<16x32xbf16>, vector<32x16xbf16>, vector<16x16xf32> -> vector<16x16xf32>
    %24 = tpu.concatenate %19, %21, %23 in 1 : vector<16x16xf32>, vector<16x16xf32>, vector<16x16xf32> -> vector<16x48xf32>
    %25 = arith.truncf %24 : vector<16x48xf32> to vector<16x48xbf16>
    %c32_19 = arith.constant 32 : index
    %c0_20 = arith.constant 0 : index
    %26 = vector.load %arg2[%c32_19, %c0_20] : memref<1344x128xbf16, #tpu.memory_space<vmem>>, vector<48x32xbf16>
    %cst_21 = arith.constant dense<0.000000e+00> : vector<16x32xf32>
    %27 = tpu.matmul %25, %26, %cst_21 {dimension_numbers = #tpu.dot_dimension_numbers<[1], [0], [0], [1], [0, 0, 1, 1], [], []>} : vector<16x48xbf16>, vector<48x32xbf16>, vector<16x32xf32> -> vector<16x32xf32>
    %c8 = arith.constant 8 : index
    %c0_22 = arith.constant 0 : index
    %28 = vector.load %arg4[%c8, %c0_22] : memref<160x128xf32, #tpu.memory_space<vmem>>, vector<1x32xf32>
    %29 = vector.broadcast %28 : vector<1x32xf32> to vector<16x32xf32>
    %30 = arith.addf %27, %29 : vector<16x32xf32>
    %cst_23 = arith.constant 0.000000e+00 : f32
    %31 = vector.broadcast %cst_23 : f32 to vector<16x32xf32>
    %32 = arith.maximumf %30, %31 : vector<16x32xf32>
    %33 = arith.truncf %32 : vector<16x32xf32> to vector<16x32xbf16>
    %c144 = arith.constant 144 : index
    %c0_24 = arith.constant 0 : index
    %34 = vector.load %arg3[%c144, %c0_24] : memref<576x128xbf16, #tpu.memory_space<vmem>>, vector<16x16xbf16>
    %cst_25 = arith.constant dense<0.000000e+00> : vector<16x32xf32>
    %35 = tpu.matmul %34, %33, %cst_25 {dimension_numbers = #tpu.dot_dimension_numbers<[1], [0], [0], [1], [0, 0, 1, 1], [], []>} : vector<16x16xbf16>, vector<16x32xbf16>, vector<16x32xf32> -> vector<16x32xf32>
    %c160 = arith.constant 160 : index
    %c0_26 = arith.constant 0 : index
    %36 = vector.load %arg3[%c160, %c0_26] : memref<576x128xbf16, #tpu.memory_space<vmem>>, vector<16x16xbf16>
    %cst_27 = arith.constant dense<0.000000e+00> : vector<16x32xf32>
    %37 = tpu.matmul %36, %33, %cst_27 {dimension_numbers = #tpu.dot_dimension_numbers<[1], [0], [0], [1], [0, 0, 1, 1], [], []>} : vector<16x16xbf16>, vector<16x32xbf16>, vector<16x32xf32> -> vector<16x32xf32>
    %c176 = arith.constant 176 : index
    %c0_28 = arith.constant 0 : index
    %38 = vector.load %arg3[%c176, %c0_28] : memref<576x128xbf16, #tpu.memory_space<vmem>>, vector<16x16xbf16>
    %cst_29 = arith.constant dense<0.000000e+00> : vector<16x32xf32>
    %39 = tpu.matmul %38, %33, %cst_29 {dimension_numbers = #tpu.dot_dimension_numbers<[1], [0], [0], [1], [0, 0, 1, 1], [], []>} : vector<16x16xbf16>, vector<16x32xbf16>, vector<16x32xf32> -> vector<16x32xf32>
    %40 = tpu.concatenate %35, %37, %39 in 1 : vector<16x32xf32>, vector<16x32xf32>, vector<16x32xf32> -> vector<16x96xf32>
    %41 = arith.truncf %40 : vector<16x96xf32> to vector<16x96xbf16>
    %c80 = arith.constant 80 : index
    %c0_30 = arith.constant 0 : index
    %42 = vector.load %arg2[%c80, %c0_30] : memref<1344x128xbf16, #tpu.memory_space<vmem>>, vector<96x32xbf16>
    %cst_31 = arith.constant dense<0.000000e+00> : vector<16x32xf32>
    %43 = tpu.matmul %41, %42, %cst_31 {dimension_numbers = #tpu.dot_dimension_numbers<[1], [0], [0], [1], [0, 0, 1, 1], [], []>} : vector<16x96xbf16>, vector<96x32xbf16>, vector<16x32xf32> -> vector<16x32xf32>
    %c16 = arith.constant 16 : index
    %c0_32 = arith.constant 0 : index
    %44 = vector.load %arg4[%c16, %c0_32] : memref<160x128xf32, #tpu.memory_space<vmem>>, vector<1x32xf32>
    %45 = vector.broadcast %44 : vector<1x32xf32> to vector<16x32xf32>
    %46 = arith.addf %43, %45 : vector<16x32xf32>
    %cst_33 = arith.constant 0.000000e+00 : f32
    %47 = vector.broadcast %cst_33 : f32 to vector<16x32xf32>
    %48 = arith.maximumf %46, %47 : vector<16x32xf32>
    %49 = arith.truncf %48 : vector<16x32xf32> to vector<16x32xbf16>
    %c144_34 = arith.constant 144 : index
    %c0_35 = arith.constant 0 : index
    %50 = vector.load %arg3[%c144_34, %c0_35] : memref<576x128xbf16, #tpu.memory_space<vmem>>, vector<16x16xbf16>
    %cst_36 = arith.constant dense<0.000000e+00> : vector<16x32xf32>
    %51 = tpu.matmul %50, %49, %cst_36 {dimension_numbers = #tpu.dot_dimension_numbers<[1], [0], [0], [1], [0, 0, 1, 1], [], []>} : vector<16x16xbf16>, vector<16x32xbf16>, vector<16x32xf32> -> vector<16x32xf32>
    %c160_37 = arith.constant 160 : index
    %c0_38 = arith.constant 0 : index
    %52 = vector.load %arg3[%c160_37, %c0_38] : memref<576x128xbf16, #tpu.memory_space<vmem>>, vector<16x16xbf16>
    %cst_39 = arith.constant dense<0.000000e+00> : vector<16x32xf32>
    %53 = tpu.matmul %52, %49, %cst_39 {dimension_numbers = #tpu.dot_dimension_numbers<[1], [0], [0], [1], [0, 0, 1, 1], [], []>} : vector<16x16xbf16>, vector<16x32xbf16>, vector<16x32xf32> -> vector<16x32xf32>
    %c176_40 = arith.constant 176 : index
    %c0_41 = arith.constant 0 : index
    %54 = vector.load %arg3[%c176_40, %c0_41] : memref<576x128xbf16, #tpu.memory_space<vmem>>, vector<16x16xbf16>
    %cst_42 = arith.constant dense<0.000000e+00> : vector<16x32xf32>
    %55 = tpu.matmul %54, %49, %cst_42 {dimension_numbers = #tpu.dot_dimension_numbers<[1], [0], [0], [1], [0, 0, 1, 1], [], []>} : vector<16x16xbf16>, vector<16x32xbf16>, vector<16x32xf32> -> vector<16x32xf32>
    %56 = tpu.concatenate %51, %53, %55 in 1 : vector<16x32xf32>, vector<16x32xf32>, vector<16x32xf32> -> vector<16x96xf32>
    %57 = arith.truncf %56 : vector<16x96xf32> to vector<16x96xbf16>
    %c176_43 = arith.constant 176 : index
    %c0_44 = arith.constant 0 : index
    %58 = vector.load %arg2[%c176_43, %c0_44] : memref<1344x128xbf16, #tpu.memory_space<vmem>>, vector<96x32xbf16>
    %cst_45 = arith.constant dense<0.000000e+00> : vector<16x32xf32>
    %59 = tpu.matmul %57, %58, %cst_45 {dimension_numbers = #tpu.dot_dimension_numbers<[1], [0], [0], [1], [0, 0, 1, 1], [], []>} : vector<16x96xbf16>, vector<96x32xbf16>, vector<16x32xf32> -> vector<16x32xf32>
    %c24 = arith.constant 24 : index
    %c0_46 = arith.constant 0 : index
    %60 = vector.load %arg4[%c24, %c0_46] : memref<160x128xf32, #tpu.memory_space<vmem>>, vector<1x32xf32>
    %61 = vector.broadcast %60 : vector<1x32xf32> to vector<16x32xf32>
    %62 = arith.addf %59, %61 : vector<16x32xf32>
    %cst_47 = arith.constant 0.000000e+00 : f32
    %63 = vector.broadcast %cst_47 : f32 to vector<16x32xf32>
    %64 = arith.maximumf %62, %63 : vector<16x32xf32>
    %65 = arith.truncf %64 : vector<16x32xf32> to vector<16x32xbf16>
    %c272 = arith.constant 272 : index
    %c0_48 = arith.constant 0 : index
    %66 = vector.load %arg2[%c272, %c0_48] : memref<1344x128xbf16, #tpu.memory_space<vmem>>, vector<32x32xbf16>
    %cst_49 = arith.constant dense<0.000000e+00> : vector<16x32xf32>
    %67 = tpu.matmul %65, %66, %cst_49 {dimension_numbers = #tpu.dot_dimension_numbers<[1], [0], [0], [1], [0, 0, 1, 1], [], []>} : vector<16x32xbf16>, vector<32x32xbf16>, vector<16x32xf32> -> vector<16x32xf32>
    %c32_50 = arith.constant 32 : index
    %c0_51 = arith.constant 0 : index
    %68 = vector.load %arg4[%c32_50, %c0_51] : memref<160x128xf32, #tpu.memory_space<vmem>>, vector<1x32xf32>
    %69 = vector.broadcast %68 : vector<1x32xf32> to vector<16x32xf32>
    %70 = arith.addf %67, %69 : vector<16x32xf32>
    %71 = arith.addf %70, %32 : vector<16x32xf32>
    %72 = arith.truncf %71 : vector<16x32xf32> to vector<16x32xbf16>
    %c144_52 = arith.constant 144 : index
    %c0_53 = arith.constant 0 : index
    %73 = vector.load %arg3[%c144_52, %c0_53] : memref<576x128xbf16, #tpu.memory_space<vmem>>, vector<16x16xbf16>
    %cst_54 = arith.constant dense<0.000000e+00> : vector<16x32xf32>
    %74 = tpu.matmul %73, %72, %cst_54 {dimension_numbers = #tpu.dot_dimension_numbers<[1], [0], [0], [1], [0, 0, 1, 1], [], []>} : vector<16x16xbf16>, vector<16x32xbf16>, vector<16x32xf32> -> vector<16x32xf32>
    %c160_55 = arith.constant 160 : index
    %c0_56 = arith.constant 0 : index
    %75 = vector.load %arg3[%c160_55, %c0_56] : memref<576x128xbf16, #tpu.memory_space<vmem>>, vector<16x16xbf16>
    %cst_57 = arith.constant dense<0.000000e+00> : vector<16x32xf32>
    %76 = tpu.matmul %75, %72, %cst_57 {dimension_numbers = #tpu.dot_dimension_numbers<[1], [0], [0], [1], [0, 0, 1, 1], [], []>} : vector<16x16xbf16>, vector<16x32xbf16>, vector<16x32xf32> -> vector<16x32xf32>
    %c176_58 = arith.constant 176 : index
    %c0_59 = arith.constant 0 : index
    %77 = vector.load %arg3[%c176_58, %c0_59] : memref<576x128xbf16, #tpu.memory_space<vmem>>, vector<16x16xbf16>
    %cst_60 = arith.constant dense<0.000000e+00> : vector<16x32xf32>
    %78 = tpu.matmul %77, %72, %cst_60 {dimension_numbers = #tpu.dot_dimension_numbers<[1], [0], [0], [1], [0, 0, 1, 1], [], []>} : vector<16x16xbf16>, vector<16x32xbf16>, vector<16x32xf32> -> vector<16x32xf32>
    %79 = tpu.concatenate %74, %76, %78 in 1 : vector<16x32xf32>, vector<16x32xf32>, vector<16x32xf32> -> vector<16x96xf32>
    %80 = arith.truncf %79 : vector<16x96xf32> to vector<16x96xbf16>
    %c304 = arith.constant 304 : index
    %c0_61 = arith.constant 0 : index
    %81 = vector.load %arg2[%c304, %c0_61] : memref<1344x128xbf16, #tpu.memory_space<vmem>>, vector<96x32xbf16>
    %cst_62 = arith.constant dense<0.000000e+00> : vector<16x32xf32>
    %82 = tpu.matmul %80, %81, %cst_62 {dimension_numbers = #tpu.dot_dimension_numbers<[1], [0], [0], [1], [0, 0, 1, 1], [], []>} : vector<16x96xbf16>, vector<96x32xbf16>, vector<16x32xf32> -> vector<16x32xf32>
    %c40 = arith.constant 40 : index
    %c0_63 = arith.constant 0 : index
    %83 = vector.load %arg4[%c40, %c0_63] : memref<160x128xf32, #tpu.memory_space<vmem>>, vector<1x32xf32>
    %84 = vector.broadcast %83 : vector<1x32xf32> to vector<16x32xf32>
    %85 = arith.addf %82, %84 : vector<16x32xf32>
    %cst_64 = arith.constant 0.000000e+00 : f32
    %86 = vector.broadcast %cst_64 : f32 to vector<16x32xf32>
    %87 = arith.maximumf %85, %86 : vector<16x32xf32>
    %88 = arith.truncf %87 : vector<16x32xf32> to vector<16x32xbf16>
    %c144_65 = arith.constant 144 : index
    %c0_66 = arith.constant 0 : index
    %89 = vector.load %arg3[%c144_65, %c0_66] : memref<576x128xbf16, #tpu.memory_space<vmem>>, vector<16x16xbf16>
    %cst_67 = arith.constant dense<0.000000e+00> : vector<16x32xf32>
    %90 = tpu.matmul %89, %88, %cst_67 {dimension_numbers = #tpu.dot_dimension_numbers<[1], [0], [0], [1], [0, 0, 1, 1], [], []>} : vector<16x16xbf16>, vector<16x32xbf16>, vector<16x32xf32> -> vector<16x32xf32>
    %c160_68 = arith.constant 160 : index
    %c0_69 = arith.constant 0 : index
    %91 = vector.load %arg3[%c160_68, %c0_69] : memref<576x128xbf16, #tpu.memory_space<vmem>>, vector<16x16xbf16>
    %cst_70 = arith.constant dense<0.000000e+00> : vector<16x32xf32>
    %92 = tpu.matmul %91, %88, %cst_70 {dimension_numbers = #tpu.dot_dimension_numbers<[1], [0], [0], [1], [0, 0, 1, 1], [], []>} : vector<16x16xbf16>, vector<16x32xbf16>, vector<16x32xf32> -> vector<16x32xf32>
    %c176_71 = arith.constant 176 : index
    %c0_72 = arith.constant 0 : index
    %93 = vector.load %arg3[%c176_71, %c0_72] : memref<576x128xbf16, #tpu.memory_space<vmem>>, vector<16x16xbf16>
    %cst_73 = arith.constant dense<0.000000e+00> : vector<16x32xf32>
    %94 = tpu.matmul %93, %88, %cst_73 {dimension_numbers = #tpu.dot_dimension_numbers<[1], [0], [0], [1], [0, 0, 1, 1], [], []>} : vector<16x16xbf16>, vector<16x32xbf16>, vector<16x32xf32> -> vector<16x32xf32>
    %95 = tpu.concatenate %90, %92, %94 in 1 : vector<16x32xf32>, vector<16x32xf32>, vector<16x32xf32> -> vector<16x96xf32>
    %96 = arith.truncf %95 : vector<16x96xf32> to vector<16x96xbf16>
    %c400 = arith.constant 400 : index
    %c0_74 = arith.constant 0 : index
    %97 = vector.load %arg2[%c400, %c0_74] : memref<1344x128xbf16, #tpu.memory_space<vmem>>, vector<96x32xbf16>
    %cst_75 = arith.constant dense<0.000000e+00> : vector<16x32xf32>
    %98 = tpu.matmul %96, %97, %cst_75 {dimension_numbers = #tpu.dot_dimension_numbers<[1], [0], [0], [1], [0, 0, 1, 1], [], []>} : vector<16x96xbf16>, vector<96x32xbf16>, vector<16x32xf32> -> vector<16x32xf32>
    %c48 = arith.constant 48 : index
    %c0_76 = arith.constant 0 : index
    %99 = vector.load %arg4[%c48, %c0_76] : memref<160x128xf32, #tpu.memory_space<vmem>>, vector<1x32xf32>
    %100 = vector.broadcast %99 : vector<1x32xf32> to vector<16x32xf32>
    %101 = arith.addf %98, %100 : vector<16x32xf32>
    %cst_77 = arith.constant 0.000000e+00 : f32
    %102 = vector.broadcast %cst_77 : f32 to vector<16x32xf32>
    %103 = arith.maximumf %101, %102 : vector<16x32xf32>
    %104 = arith.truncf %103 : vector<16x32xf32> to vector<16x32xbf16>
    %c496 = arith.constant 496 : index
    %c0_78 = arith.constant 0 : index
    %105 = vector.load %arg2[%c496, %c0_78] : memref<1344x128xbf16, #tpu.memory_space<vmem>>, vector<32x32xbf16>
    %cst_79 = arith.constant dense<0.000000e+00> : vector<16x32xf32>
    %106 = tpu.matmul %104, %105, %cst_79 {dimension_numbers = #tpu.dot_dimension_numbers<[1], [0], [0], [1], [0, 0, 1, 1], [], []>} : vector<16x32xbf16>, vector<32x32xbf16>, vector<16x32xf32> -> vector<16x32xf32>
    %c56 = arith.constant 56 : index
    %c0_80 = arith.constant 0 : index
    %107 = vector.load %arg4[%c56, %c0_80] : memref<160x128xf32, #tpu.memory_space<vmem>>, vector<1x32xf32>
    %108 = vector.broadcast %107 : vector<1x32xf32> to vector<16x32xf32>
    %109 = arith.addf %106, %108 : vector<16x32xf32>
    %110 = arith.addf %109, %71 : vector<16x32xf32>
    %111 = arith.truncf %110 : vector<16x32xf32> to vector<16x32xbf16>
    %c528 = arith.constant 528 : index
    %c0_81 = arith.constant 0 : index
    %112 = vector.load %arg2[%c528, %c0_81] : memref<1344x128xbf16, #tpu.memory_space<vmem>>, vector<32x24xbf16>
    %cst_82 = arith.constant dense<0.000000e+00> : vector<16x24xf32>
    %113 = tpu.matmul %111, %112, %cst_82 {dimension_numbers = #tpu.dot_dimension_numbers<[1], [0], [0], [1], [0, 0, 1, 1], [], []>} : vector<16x32xbf16>, vector<32x24xbf16>, vector<16x24xf32> -> vector<16x24xf32>
    %c64_83 = arith.constant 64 : index
    %c0_84 = arith.constant 0 : index
    %114 = vector.load %arg4[%c64_83, %c0_84] : memref<160x128xf32, #tpu.memory_space<vmem>>, vector<1x24xf32>
    %115 = vector.broadcast %114 : vector<1x24xf32> to vector<16x24xf32>
    %116 = arith.addf %113, %115 : vector<16x24xf32>
    %117 = arith.truncf %116 : vector<16x24xf32> to vector<16x24xbf16>
    %c1248 = arith.constant 1248 : index
    %c0_85 = arith.constant 0 : index
    %118 = vector.load %arg2[%c1248, %c0_85] : memref<1344x128xbf16, #tpu.memory_space<vmem>>, vector<24x64xbf16>
    %cst_86 = arith.constant dense<0.000000e+00> : vector<16x64xf32>
    %119 = tpu.matmul %117, %118, %cst_86 {dimension_numbers = #tpu.dot_dimension_numbers<[1], [0], [0], [1], [0, 0, 1, 1], [], []>} : vector<16x24xbf16>, vector<24x64xbf16>, vector<16x64xf32> -> vector<16x64xf32>
    %120 = arith.mulf %116, %116 : vector<16x24xf32>
    %cst_87 = arith.constant dense<0.000000e+00> : vector<16xf32>
    %121 = vector.multi_reduction <add>, %120, %cst_87 [1] : vector<16x24xf32> to vector<16xf32>
    %122 = vector.shape_cast %121 : vector<16xf32> to vector<16x1xf32>
    %cst_88 = arith.constant 2.000000e+00 : f32
    %123 = vector.broadcast %cst_88 : f32 to vector<16x64xf32>
    %124 = arith.mulf %123, %119 : vector<16x64xf32>
    %125 = vector.broadcast %122 : vector<16x1xf32> to vector<16x64xf32>
    %126 = arith.subf %124, %125 : vector<16x64xf32>
    %c152 = arith.constant 152 : index
    %c0_89 = arith.constant 0 : index
    %127 = vector.load %arg4[%c152, %c0_89] : memref<160x128xf32, #tpu.memory_space<vmem>>, vector<1x64xf32>
    %128 = vector.broadcast %127 : vector<1x64xf32> to vector<16x64xf32>
    %129 = arith.subf %126, %128 : vector<16x64xf32>
    %cst_90 = arith.constant dense<0xFF800000> : vector<16xf32>
    %130 = vector.multi_reduction <maximumf>, %129, %cst_90 [1] : vector<16x64xf32> to vector<16xf32>
    %131 = vector.shape_cast %130 : vector<16xf32> to vector<16x1xf32>
    %132 = tpu.iota {dimensions = array<i32: 1>} : vector<16x64xi32>
    %133 = vector.broadcast %131 : vector<16x1xf32> to vector<16x64xf32>
    %134 = arith.cmpf oeq, %129, %133 : vector<16x64xf32>
    %c64_i32 = arith.constant 64 : i32
    %135 = vector.broadcast %c64_i32 : i32 to vector<16x64xi32>
    %136 = arith.select %134, %132, %135 : vector<16x64xi1>, vector<16x64xi32>
    %cst_91 = arith.constant dense<2147483647> : vector<16xi32>
    %137 = vector.multi_reduction <minsi>, %136, %cst_91 [1] : vector<16x64xi32> to vector<16xi32>
    %138 = vector.shape_cast %137 : vector<16xi32> to vector<16x1xi32>
    %139 = vector.broadcast %138 : vector<16x1xi32> to vector<16x64xi32>
    %140 = arith.cmpi eq, %132, %139 : vector<16x64xi32>
    %141 = arith.extui %140 : vector<16x64xi1> to vector<16x64xi32>
    %142 = arith.sitofp %141 : vector<16x64xi32> to vector<16x64xf32>
    %143 = arith.truncf %142 : vector<16x64xf32> to vector<16x64xbf16>
    %c1280 = arith.constant 1280 : index
    %c0_92 = arith.constant 0 : index
    %144 = vector.load %arg2[%c1280, %c0_92] : memref<1344x128xbf16, #tpu.memory_space<vmem>>, vector<64x24xbf16>
    %cst_93 = arith.constant dense<0.000000e+00> : vector<16x24xf32>
    %145 = tpu.matmul %143, %144, %cst_93 {dimension_numbers = #tpu.dot_dimension_numbers<[1], [0], [0], [1], [0, 0, 1, 1], [], []>} : vector<16x64xbf16>, vector<64x24xbf16>, vector<16x24xf32> -> vector<16x24xf32>
    %146 = arith.subf %145, %116 : vector<16x24xf32>
    %147 = arith.mulf %146, %146 : vector<16x24xf32>
    %148 = vector.shape_cast %147 : vector<16x24xf32> to vector<1x16x24xf32>
    %cst_94 = arith.constant dense<0.000000e+00> : vector<1xf32>
    %149 = vector.multi_reduction <add>, %148, %cst_94 [1, 2] : vector<1x16x24xf32> to vector<1xf32>
    %150 = vector.shape_cast %149 : vector<1xf32> to vector<1x1x1xf32>
    %151 = vector.extract %150[0, 0, 0] : f32 from vector<1x1x1xf32>
    %152 = vector.broadcast %151 : f32 to vector<1x1xf32>
    %153 = arith.truncf %145 : vector<16x24xf32> to vector<16x24xbf16>
    %c560 = arith.constant 560 : index
    %c0_95 = arith.constant 0 : index
    %154 = vector.load %arg2[%c560, %c0_95] : memref<1344x128xbf16, #tpu.memory_space<vmem>>, vector<24x32xbf16>
    %cst_96 = arith.constant dense<0.000000e+00> : vector<16x32xf32>
    %155 = tpu.matmul %153, %154, %cst_96 {dimension_numbers = #tpu.dot_dimension_numbers<[1], [0], [0], [1], [0, 0, 1, 1], [], []>} : vector<16x24xbf16>, vector<24x32xbf16>, vector<16x32xf32> -> vector<16x32xf32>
    %c72 = arith.constant 72 : index
    %c0_97 = arith.constant 0 : index
    %156 = vector.load %arg4[%c72, %c0_97] : memref<160x128xf32, #tpu.memory_space<vmem>>, vector<1x32xf32>
    %157 = vector.broadcast %156 : vector<1x32xf32> to vector<16x32xf32>
    %158 = arith.addf %155, %157 : vector<16x32xf32>
    %159 = arith.truncf %158 : vector<16x32xf32> to vector<16x32xbf16>
    %c144_98 = arith.constant 144 : index
    %c0_99 = arith.constant 0 : index
    %160 = vector.load %arg3[%c144_98, %c0_99] : memref<576x128xbf16, #tpu.memory_space<vmem>>, vector<16x16xbf16>
    %cst_100 = arith.constant dense<0.000000e+00> : vector<16x32xf32>
    %161 = tpu.matmul %160, %159, %cst_100 {dimension_numbers = #tpu.dot_dimension_numbers<[1], [0], [0], [1], [0, 0, 1, 1], [], []>} : vector<16x16xbf16>, vector<16x32xbf16>, vector<16x32xf32> -> vector<16x32xf32>
    %c160_101 = arith.constant 160 : index
    %c0_102 = arith.constant 0 : index
    %162 = vector.load %arg3[%c160_101, %c0_102] : memref<576x128xbf16, #tpu.memory_space<vmem>>, vector<16x16xbf16>
    %cst_103 = arith.constant dense<0.000000e+00> : vector<16x32xf32>
    %163 = tpu.matmul %162, %159, %cst_103 {dimension_numbers = #tpu.dot_dimension_numbers<[1], [0], [0], [1], [0, 0, 1, 1], [], []>} : vector<16x16xbf16>, vector<16x32xbf16>, vector<16x32xf32> -> vector<16x32xf32>
    %c176_104 = arith.constant 176 : index
    %c0_105 = arith.constant 0 : index
    %164 = vector.load %arg3[%c176_104, %c0_105] : memref<576x128xbf16, #tpu.memory_space<vmem>>, vector<16x16xbf16>
    %cst_106 = arith.constant dense<0.000000e+00> : vector<16x32xf32>
    %165 = tpu.matmul %164, %159, %cst_106 {dimension_numbers = #tpu.dot_dimension_numbers<[1], [0], [0], [1], [0, 0, 1, 1], [], []>} : vector<16x16xbf16>, vector<16x32xbf16>, vector<16x32xf32> -> vector<16x32xf32>
    %166 = tpu.concatenate %161, %163, %165 in 1 : vector<16x32xf32>, vector<16x32xf32>, vector<16x32xf32> -> vector<16x96xf32>
    %167 = arith.truncf %166 : vector<16x96xf32> to vector<16x96xbf16>
    %c592 = arith.constant 592 : index
    %c0_107 = arith.constant 0 : index
    %168 = vector.load %arg2[%c592, %c0_107] : memref<1344x128xbf16, #tpu.memory_space<vmem>>, vector<96x32xbf16>
    %cst_108 = arith.constant dense<0.000000e+00> : vector<16x32xf32>
    %169 = tpu.matmul %167, %168, %cst_108 {dimension_numbers = #tpu.dot_dimension_numbers<[1], [0], [0], [1], [0, 0, 1, 1], [], []>} : vector<16x96xbf16>, vector<96x32xbf16>, vector<16x32xf32> -> vector<16x32xf32>
    %c80_109 = arith.constant 80 : index
    %c0_110 = arith.constant 0 : index
    %170 = vector.load %arg4[%c80_109, %c0_110] : memref<160x128xf32, #tpu.memory_space<vmem>>, vector<1x32xf32>
    %171 = vector.broadcast %170 : vector<1x32xf32> to vector<16x32xf32>
    %172 = arith.addf %169, %171 : vector<16x32xf32>
    %cst_111 = arith.constant 0.000000e+00 : f32
    %173 = vector.broadcast %cst_111 : f32 to vector<16x32xf32>
    %174 = arith.maximumf %172, %173 : vector<16x32xf32>
    %175 = arith.truncf %174 : vector<16x32xf32> to vector<16x32xbf16>
    %c144_112 = arith.constant 144 : index
    %c0_113 = arith.constant 0 : index
    %176 = vector.load %arg3[%c144_112, %c0_113] : memref<576x128xbf16, #tpu.memory_space<vmem>>, vector<16x16xbf16>
    %cst_114 = arith.constant dense<0.000000e+00> : vector<16x32xf32>
    %177 = tpu.matmul %176, %175, %cst_114 {dimension_numbers = #tpu.dot_dimension_numbers<[1], [0], [0], [1], [0, 0, 1, 1], [], []>} : vector<16x16xbf16>, vector<16x32xbf16>, vector<16x32xf32> -> vector<16x32xf32>
    %c160_115 = arith.constant 160 : index
    %c0_116 = arith.constant 0 : index
    %178 = vector.load %arg3[%c160_115, %c0_116] : memref<576x128xbf16, #tpu.memory_space<vmem>>, vector<16x16xbf16>
    %cst_117 = arith.constant dense<0.000000e+00> : vector<16x32xf32>
    %179 = tpu.matmul %178, %175, %cst_117 {dimension_numbers = #tpu.dot_dimension_numbers<[1], [0], [0], [1], [0, 0, 1, 1], [], []>} : vector<16x16xbf16>, vector<16x32xbf16>, vector<16x32xf32> -> vector<16x32xf32>
    %c176_118 = arith.constant 176 : index
    %c0_119 = arith.constant 0 : index
    %180 = vector.load %arg3[%c176_118, %c0_119] : memref<576x128xbf16, #tpu.memory_space<vmem>>, vector<16x16xbf16>
    %cst_120 = arith.constant dense<0.000000e+00> : vector<16x32xf32>
    %181 = tpu.matmul %180, %175, %cst_120 {dimension_numbers = #tpu.dot_dimension_numbers<[1], [0], [0], [1], [0, 0, 1, 1], [], []>} : vector<16x16xbf16>, vector<16x32xbf16>, vector<16x32xf32> -> vector<16x32xf32>
    %182 = tpu.concatenate %177, %179, %181 in 1 : vector<16x32xf32>, vector<16x32xf32>, vector<16x32xf32> -> vector<16x96xf32>
    %183 = arith.truncf %182 : vector<16x96xf32> to vector<16x96xbf16>
    %c688 = arith.constant 688 : index
    %c0_121 = arith.constant 0 : index
    %184 = vector.load %arg2[%c688, %c0_121] : memref<1344x128xbf16, #tpu.memory_space<vmem>>, vector<96x32xbf16>
    %cst_122 = arith.constant dense<0.000000e+00> : vector<16x32xf32>
    %185 = tpu.matmul %183, %184, %cst_122 {dimension_numbers = #tpu.dot_dimension_numbers<[1], [0], [0], [1], [0, 0, 1, 1], [], []>} : vector<16x96xbf16>, vector<96x32xbf16>, vector<16x32xf32> -> vector<16x32xf32>
    %c88 = arith.constant 88 : index
    %c0_123 = arith.constant 0 : index
    %186 = vector.load %arg4[%c88, %c0_123] : memref<160x128xf32, #tpu.memory_space<vmem>>, vector<1x32xf32>
    %187 = vector.broadcast %186 : vector<1x32xf32> to vector<16x32xf32>
    %188 = arith.addf %185, %187 : vector<16x32xf32>
    %cst_124 = arith.constant 0.000000e+00 : f32
    %189 = vector.broadcast %cst_124 : f32 to vector<16x32xf32>
    %190 = arith.maximumf %188, %189 : vector<16x32xf32>
    %191 = arith.truncf %190 : vector<16x32xf32> to vector<16x32xbf16>
    %c784 = arith.constant 784 : index
    %c0_125 = arith.constant 0 : index
    %192 = vector.load %arg2[%c784, %c0_125] : memref<1344x128xbf16, #tpu.memory_space<vmem>>, vector<32x32xbf16>
    %cst_126 = arith.constant dense<0.000000e+00> : vector<16x32xf32>
    %193 = tpu.matmul %191, %192, %cst_126 {dimension_numbers = #tpu.dot_dimension_numbers<[1], [0], [0], [1], [0, 0, 1, 1], [], []>} : vector<16x32xbf16>, vector<32x32xbf16>, vector<16x32xf32> -> vector<16x32xf32>
    %c96_127 = arith.constant 96 : index
    %c0_128 = arith.constant 0 : index
    %194 = vector.load %arg4[%c96_127, %c0_128] : memref<160x128xf32, #tpu.memory_space<vmem>>, vector<1x32xf32>
    %195 = vector.broadcast %194 : vector<1x32xf32> to vector<16x32xf32>
    %196 = arith.addf %193, %195 : vector<16x32xf32>
    %197 = arith.addf %196, %158 : vector<16x32xf32>
    %198 = arith.truncf %197 : vector<16x32xf32> to vector<16x32xbf16>
    %c144_129 = arith.constant 144 : index
    %c0_130 = arith.constant 0 : index
    %199 = vector.load %arg3[%c144_129, %c0_130] : memref<576x128xbf16, #tpu.memory_space<vmem>>, vector<16x16xbf16>
    %cst_131 = arith.constant dense<0.000000e+00> : vector<16x32xf32>
    %200 = tpu.matmul %199, %198, %cst_131 {dimension_numbers = #tpu.dot_dimension_numbers<[1], [0], [0], [1], [0, 0, 1, 1], [], []>} : vector<16x16xbf16>, vector<16x32xbf16>, vector<16x32xf32> -> vector<16x32xf32>
    %c160_132 = arith.constant 160 : index
    %c0_133 = arith.constant 0 : index
    %201 = vector.load %arg3[%c160_132, %c0_133] : memref<576x128xbf16, #tpu.memory_space<vmem>>, vector<16x16xbf16>
    %cst_134 = arith.constant dense<0.000000e+00> : vector<16x32xf32>
    %202 = tpu.matmul %201, %198, %cst_134 {dimension_numbers = #tpu.dot_dimension_numbers<[1], [0], [0], [1], [0, 0, 1, 1], [], []>} : vector<16x16xbf16>, vector<16x32xbf16>, vector<16x32xf32> -> vector<16x32xf32>
    %c176_135 = arith.constant 176 : index
    %c0_136 = arith.constant 0 : index
    %203 = vector.load %arg3[%c176_135, %c0_136] : memref<576x128xbf16, #tpu.memory_space<vmem>>, vector<16x16xbf16>
    %cst_137 = arith.constant dense<0.000000e+00> : vector<16x32xf32>
    %204 = tpu.matmul %203, %198, %cst_137 {dimension_numbers = #tpu.dot_dimension_numbers<[1], [0], [0], [1], [0, 0, 1, 1], [], []>} : vector<16x16xbf16>, vector<16x32xbf16>, vector<16x32xf32> -> vector<16x32xf32>
    %205 = tpu.concatenate %200, %202, %204 in 1 : vector<16x32xf32>, vector<16x32xf32>, vector<16x32xf32> -> vector<16x96xf32>
    %206 = arith.truncf %205 : vector<16x96xf32> to vector<16x96xbf16>
    %c816 = arith.constant 816 : index
    %c0_138 = arith.constant 0 : index
    %207 = vector.load %arg2[%c816, %c0_138] : memref<1344x128xbf16, #tpu.memory_space<vmem>>, vector<96x32xbf16>
    %cst_139 = arith.constant dense<0.000000e+00> : vector<16x32xf32>
    %208 = tpu.matmul %206, %207, %cst_139 {dimension_numbers = #tpu.dot_dimension_numbers<[1], [0], [0], [1], [0, 0, 1, 1], [], []>} : vector<16x96xbf16>, vector<96x32xbf16>, vector<16x32xf32> -> vector<16x32xf32>
    %c104 = arith.constant 104 : index
    %c0_140 = arith.constant 0 : index
    %209 = vector.load %arg4[%c104, %c0_140] : memref<160x128xf32, #tpu.memory_space<vmem>>, vector<1x32xf32>
    %210 = vector.broadcast %209 : vector<1x32xf32> to vector<16x32xf32>
    %211 = arith.addf %208, %210 : vector<16x32xf32>
    %cst_141 = arith.constant 0.000000e+00 : f32
    %212 = vector.broadcast %cst_141 : f32 to vector<16x32xf32>
    %213 = arith.maximumf %211, %212 : vector<16x32xf32>
    %214 = arith.truncf %213 : vector<16x32xf32> to vector<16x32xbf16>
    %c144_142 = arith.constant 144 : index
    %c0_143 = arith.constant 0 : index
    %215 = vector.load %arg3[%c144_142, %c0_143] : memref<576x128xbf16, #tpu.memory_space<vmem>>, vector<16x16xbf16>
    %cst_144 = arith.constant dense<0.000000e+00> : vector<16x32xf32>
    %216 = tpu.matmul %215, %214, %cst_144 {dimension_numbers = #tpu.dot_dimension_numbers<[1], [0], [0], [1], [0, 0, 1, 1], [], []>} : vector<16x16xbf16>, vector<16x32xbf16>, vector<16x32xf32> -> vector<16x32xf32>
    %c160_145 = arith.constant 160 : index
    %c0_146 = arith.constant 0 : index
    %217 = vector.load %arg3[%c160_145, %c0_146] : memref<576x128xbf16, #tpu.memory_space<vmem>>, vector<16x16xbf16>
    %cst_147 = arith.constant dense<0.000000e+00> : vector<16x32xf32>
    %218 = tpu.matmul %217, %214, %cst_147 {dimension_numbers = #tpu.dot_dimension_numbers<[1], [0], [0], [1], [0, 0, 1, 1], [], []>} : vector<16x16xbf16>, vector<16x32xbf16>, vector<16x32xf32> -> vector<16x32xf32>
    %c176_148 = arith.constant 176 : index
    %c0_149 = arith.constant 0 : index
    %219 = vector.load %arg3[%c176_148, %c0_149] : memref<576x128xbf16, #tpu.memory_space<vmem>>, vector<16x16xbf16>
    %cst_150 = arith.constant dense<0.000000e+00> : vector<16x32xf32>
    %220 = tpu.matmul %219, %214, %cst_150 {dimension_numbers = #tpu.dot_dimension_numbers<[1], [0], [0], [1], [0, 0, 1, 1], [], []>} : vector<16x16xbf16>, vector<16x32xbf16>, vector<16x32xf32> -> vector<16x32xf32>
    %221 = tpu.concatenate %216, %218, %220 in 1 : vector<16x32xf32>, vector<16x32xf32>, vector<16x32xf32> -> vector<16x96xf32>
    %222 = arith.truncf %221 : vector<16x96xf32> to vector<16x96xbf16>
    %c912 = arith.constant 912 : index
    %c0_151 = arith.constant 0 : index
    %223 = vector.load %arg2[%c912, %c0_151] : memref<1344x128xbf16, #tpu.memory_space<vmem>>, vector<96x32xbf16>
    %cst_152 = arith.constant dense<0.000000e+00> : vector<16x32xf32>
    %224 = tpu.matmul %222, %223, %cst_152 {dimension_numbers = #tpu.dot_dimension_numbers<[1], [0], [0], [1], [0, 0, 1, 1], [], []>} : vector<16x96xbf16>, vector<96x32xbf16>, vector<16x32xf32> -> vector<16x32xf32>
    %c112_153 = arith.constant 112 : index
    %c0_154 = arith.constant 0 : index
    %225 = vector.load %arg4[%c112_153, %c0_154] : memref<160x128xf32, #tpu.memory_space<vmem>>, vector<1x32xf32>
    %226 = vector.broadcast %225 : vector<1x32xf32> to vector<16x32xf32>
    %227 = arith.addf %224, %226 : vector<16x32xf32>
    %cst_155 = arith.constant 0.000000e+00 : f32
    %228 = vector.broadcast %cst_155 : f32 to vector<16x32xf32>
    %229 = arith.maximumf %227, %228 : vector<16x32xf32>
    %230 = arith.truncf %229 : vector<16x32xf32> to vector<16x32xbf16>
    %c1008 = arith.constant 1008 : index
    %c0_156 = arith.constant 0 : index
    %231 = vector.load %arg2[%c1008, %c0_156] : memref<1344x128xbf16, #tpu.memory_space<vmem>>, vector<32x32xbf16>
    %cst_157 = arith.constant dense<0.000000e+00> : vector<16x32xf32>
    %232 = tpu.matmul %230, %231, %cst_157 {dimension_numbers = #tpu.dot_dimension_numbers<[1], [0], [0], [1], [0, 0, 1, 1], [], []>} : vector<16x32xbf16>, vector<32x32xbf16>, vector<16x32xf32> -> vector<16x32xf32>
    %c120 = arith.constant 120 : index
    %c0_158 = arith.constant 0 : index
    %233 = vector.load %arg4[%c120, %c0_158] : memref<160x128xf32, #tpu.memory_space<vmem>>, vector<1x32xf32>
    %234 = vector.broadcast %233 : vector<1x32xf32> to vector<16x32xf32>
    %235 = arith.addf %232, %234 : vector<16x32xf32>
    %236 = arith.addf %235, %197 : vector<16x32xf32>
    %c480 = arith.constant 480 : index
    %c0_159 = arith.constant 0 : index
    %237 = vector.load %arg3[%c480, %c0_159] : memref<576x128xbf16, #tpu.memory_space<vmem>>, vector<32x16xbf16>
    %238 = arith.truncf %236 : vector<16x32xf32> to vector<16x32xbf16>
    %cst_160 = arith.constant dense<0.000000e+00> : vector<32x32xf32>
    %239 = tpu.matmul %237, %238, %cst_160 {dimension_numbers = #tpu.dot_dimension_numbers<[1], [0], [0], [1], [0, 0, 1, 1], [], []>} : vector<32x16xbf16>, vector<16x32xbf16>, vector<32x32xf32> -> vector<32x32xf32>
    %240 = arith.truncf %239 : vector<32x32xf32> to vector<32x32xbf16>
    %c192 = arith.constant 192 : index
    %c0_161 = arith.constant 0 : index
    %241 = vector.load %arg3[%c192, %c0_161] : memref<576x128xbf16, #tpu.memory_space<vmem>>, vector<32x32xbf16>
    %cst_162 = arith.constant dense<0.000000e+00> : vector<32x32xf32>
    %242 = tpu.matmul %241, %240, %cst_162 {dimension_numbers = #tpu.dot_dimension_numbers<[1], [0], [0], [1], [0, 0, 1, 1], [], []>} : vector<32x32xbf16>, vector<32x32xbf16>, vector<32x32xf32> -> vector<32x32xf32>
    %c224 = arith.constant 224 : index
    %c0_163 = arith.constant 0 : index
    %243 = vector.load %arg3[%c224, %c0_163] : memref<576x128xbf16, #tpu.memory_space<vmem>>, vector<32x32xbf16>
    %cst_164 = arith.constant dense<0.000000e+00> : vector<32x32xf32>
    %244 = tpu.matmul %243, %240, %cst_164 {dimension_numbers = #tpu.dot_dimension_numbers<[1], [0], [0], [1], [0, 0, 1, 1], [], []>} : vector<32x32xbf16>, vector<32x32xbf16>, vector<32x32xf32> -> vector<32x32xf32>
    %c256 = arith.constant 256 : index
    %c0_165 = arith.constant 0 : index
    %245 = vector.load %arg3[%c256, %c0_165] : memref<576x128xbf16, #tpu.memory_space<vmem>>, vector<32x32xbf16>
    %cst_166 = arith.constant dense<0.000000e+00> : vector<32x32xf32>
    %246 = tpu.matmul %245, %240, %cst_166 {dimension_numbers = #tpu.dot_dimension_numbers<[1], [0], [0], [1], [0, 0, 1, 1], [], []>} : vector<32x32xbf16>, vector<32x32xbf16>, vector<32x32xf32> -> vector<32x32xf32>
    %247 = tpu.concatenate %242, %244, %246 in 1 : vector<32x32xf32>, vector<32x32xf32>, vector<32x32xf32> -> vector<32x96xf32>
    %248 = arith.truncf %247 : vector<32x96xf32> to vector<32x96xbf16>
    %c1040 = arith.constant 1040 : index
    %c0_167 = arith.constant 0 : index
    %249 = vector.load %arg2[%c1040, %c0_167] : memref<1344x128xbf16, #tpu.memory_space<vmem>>, vector<96x32xbf16>
    %cst_168 = arith.constant dense<0.000000e+00> : vector<32x32xf32>
    %250 = tpu.matmul %248, %249, %cst_168 {dimension_numbers = #tpu.dot_dimension_numbers<[1], [0], [0], [1], [0, 0, 1, 1], [], []>} : vector<32x96xbf16>, vector<96x32xbf16>, vector<32x32xf32> -> vector<32x32xf32>
    %c128_169 = arith.constant 128 : index
    %c0_170 = arith.constant 0 : index
    %251 = vector.load %arg4[%c128_169, %c0_170] : memref<160x128xf32, #tpu.memory_space<vmem>>, vector<1x32xf32>
    %252 = vector.broadcast %251 : vector<1x32xf32> to vector<32x32xf32>
    %253 = arith.addf %250, %252 : vector<32x32xf32>
    %cst_171 = arith.constant 0.000000e+00 : f32
    %254 = vector.broadcast %cst_171 : f32 to vector<32x32xf32>
    %255 = arith.maximumf %253, %254 : vector<32x32xf32>
    %c512 = arith.constant 512 : index
    %c0_172 = arith.constant 0 : index
    %256 = vector.load %arg3[%c512, %c0_172] : memref<576x128xbf16, #tpu.memory_space<vmem>>, vector<64x32xbf16>
    %257 = arith.truncf %255 : vector<32x32xf32> to vector<32x32xbf16>
    %cst_173 = arith.constant dense<0.000000e+00> : vector<64x32xf32>
    %258 = tpu.matmul %256, %257, %cst_173 {dimension_numbers = #tpu.dot_dimension_numbers<[1], [0], [0], [1], [0, 0, 1, 1], [], []>} : vector<64x32xbf16>, vector<32x32xbf16>, vector<64x32xf32> -> vector<64x32xf32>
    %259 = arith.truncf %258 : vector<64x32xf32> to vector<64x32xbf16>
    %c288 = arith.constant 288 : index
    %c0_174 = arith.constant 0 : index
    %260 = vector.load %arg3[%c288, %c0_174] : memref<576x128xbf16, #tpu.memory_space<vmem>>, vector<64x64xbf16>
    %cst_175 = arith.constant dense<0.000000e+00> : vector<64x32xf32>
    %261 = tpu.matmul %260, %259, %cst_175 {dimension_numbers = #tpu.dot_dimension_numbers<[1], [0], [0], [1], [0, 0, 1, 1], [], []>} : vector<64x64xbf16>, vector<64x32xbf16>, vector<64x32xf32> -> vector<64x32xf32>
    %c352 = arith.constant 352 : index
    %c0_176 = arith.constant 0 : index
    %262 = vector.load %arg3[%c352, %c0_176] : memref<576x128xbf16, #tpu.memory_space<vmem>>, vector<64x64xbf16>
    %cst_177 = arith.constant dense<0.000000e+00> : vector<64x32xf32>
    %263 = tpu.matmul %262, %259, %cst_177 {dimension_numbers = #tpu.dot_dimension_numbers<[1], [0], [0], [1], [0, 0, 1, 1], [], []>} : vector<64x64xbf16>, vector<64x32xbf16>, vector<64x32xf32> -> vector<64x32xf32>
    %c416 = arith.constant 416 : index
    %c0_178 = arith.constant 0 : index
    %264 = vector.load %arg3[%c416, %c0_178] : memref<576x128xbf16, #tpu.memory_space<vmem>>, vector<64x64xbf16>
    %cst_179 = arith.constant dense<0.000000e+00> : vector<64x32xf32>
    %265 = tpu.matmul %264, %259, %cst_179 {dimension_numbers = #tpu.dot_dimension_numbers<[1], [0], [0], [1], [0, 0, 1, 1], [], []>} : vector<64x64xbf16>, vector<64x32xbf16>, vector<64x32xf32> -> vector<64x32xf32>
    %266 = tpu.concatenate %261, %263, %265 in 1 : vector<64x32xf32>, vector<64x32xf32>, vector<64x32xf32> -> vector<64x96xf32>
    %267 = arith.truncf %266 : vector<64x96xf32> to vector<64x96xbf16>
    %c1136 = arith.constant 1136 : index
    %c0_180 = arith.constant 0 : index
    %268 = vector.load %arg2[%c1136, %c0_180] : memref<1344x128xbf16, #tpu.memory_space<vmem>>, vector<96x16xbf16>
    %cst_181 = arith.constant dense<0.000000e+00> : vector<64x16xf32>
    %269 = tpu.matmul %267, %268, %cst_181 {dimension_numbers = #tpu.dot_dimension_numbers<[1], [0], [0], [1], [0, 0, 1, 1], [], []>} : vector<64x96xbf16>, vector<96x16xbf16>, vector<64x16xf32> -> vector<64x16xf32>
    %c136 = arith.constant 136 : index
    %c0_182 = arith.constant 0 : index
    %270 = vector.load %arg4[%c136, %c0_182] : memref<160x128xf32, #tpu.memory_space<vmem>>, vector<1x16xf32>
    %271 = vector.broadcast %270 : vector<1x16xf32> to vector<64x16xf32>
    %272 = arith.addf %269, %271 : vector<64x16xf32>
    %cst_183 = arith.constant 0.000000e+00 : f32
    %273 = vector.broadcast %cst_183 : f32 to vector<64x16xf32>
    %274 = arith.maximumf %272, %273 : vector<64x16xf32>
    %275 = arith.truncf %274 : vector<64x16xf32> to vector<64x16xbf16>
    %c1232 = arith.constant 1232 : index
    %c0_184 = arith.constant 0 : index
    %276 = vector.load %arg2[%c1232, %c0_184] : memref<1344x128xbf16, #tpu.memory_space<vmem>>, vector<16x8xbf16>
    %cst_185 = arith.constant dense<0.000000e+00> : vector<64x8xf32>
    %277 = tpu.matmul %275, %276, %cst_185 {dimension_numbers = #tpu.dot_dimension_numbers<[1], [0], [0], [1], [0, 0, 1, 1], [], []>} : vector<64x16xbf16>, vector<16x8xbf16>, vector<64x8xf32> -> vector<64x8xf32>
    %c144_186 = arith.constant 144 : index
    %c0_187 = arith.constant 0 : index
    %278 = vector.load %arg4[%c144_186, %c0_187] : memref<160x128xf32, #tpu.memory_space<vmem>>, vector<1x8xf32>
    %279 = vector.broadcast %278 : vector<1x8xf32> to vector<64x8xf32>
    %280 = arith.addf %277, %279 : vector<64x8xf32>
    %c0_188 = arith.constant 0 : index
    %c0_189 = arith.constant 0 : index
    %281 = vector.load %arg5[%c0_188, %c0_189] : memref<64x8xf32, #tpu.memory_space<vmem>>, vector<64x8xf32>
    tpu.vector_store %arg5[%c0_188, %c0_189], %280 {strides = array<i32>} : memref<64x8xf32, #tpu.memory_space<vmem>>, vector<64x8xf32>,
    %282 = arith.subf %0, %280 : vector<64x8xf32>
    %283 = arith.mulf %282, %282 : vector<64x8xf32>
    %c0_190 = arith.constant 0 : index
    %c0_191 = arith.constant 0 : index
    %284 = vector.load %arg6[%c0_190, %c0_191] : memref<64x8xf32, #tpu.memory_space<vmem>>, vector<64x8xf32>
    tpu.vector_store %arg6[%c0_190, %c0_191], %283 {strides = array<i32>} : memref<64x8xf32, #tpu.memory_space<vmem>>, vector<64x8xf32>,
    %c0_192 = arith.constant 0 : index
    %c0_193 = arith.constant 0 : index
    %c0_194 = arith.constant 0 : index
    %285 = vector.load %arg7[%c0_192, %c0_193, %c0_194] : memref<1x1x1xf32, #tpu.memory_space<vmem>>, vector<1x1x1xf32>
    %286 = vector.shape_cast %285 : vector<1x1x1xf32> to vector<1x1xf32>
    %287 = vector.shape_cast %152 : vector<1x1xf32> to vector<1x1x1xf32>
    tpu.vector_store %arg7[%c0_192, %c0_193, %c0_194], %287 {strides = array<i32>} : memref<1x1x1xf32, #tpu.memory_space<vmem>>, vector<1x1x1xf32>,
    return
  }
  func.func @transform_0(%arg0: i32) -> (i32, i32) {
    %c0_i32 = arith.constant 0 : i32
    %c0_i32_0 = arith.constant 0 : i32
    return %arg0, %c0_i32 : i32, i32
  }
  func.func @transform_1(%arg0: i32) -> (i32, i32) {
    %c0_i32 = arith.constant 0 : i32
    %c0_i32_0 = arith.constant 0 : i32
    %c0_i32_1 = arith.constant 0 : i32
    return %c0_i32, %c0_i32_0 : i32, i32
  }
  func.func @transform_2(%arg0: i32) -> (i32, i32) {
    %c0_i32 = arith.constant 0 : i32
    %c0_i32_0 = arith.constant 0 : i32
    %c0_i32_1 = arith.constant 0 : i32
    return %c0_i32, %c0_i32_0 : i32, i32
  }
  func.func @transform_3(%arg0: i32) -> (i32, i32) {
    %c0_i32 = arith.constant 0 : i32
    %c0_i32_0 = arith.constant 0 : i32
    %c0_i32_1 = arith.constant 0 : i32
    return %c0_i32, %c0_i32_0 : i32, i32
  }
  func.func @transform_4(%arg0: i32) -> (i32, i32) {
    %c0_i32 = arith.constant 0 : i32
    %c0_i32_0 = arith.constant 0 : i32
    return %arg0, %c0_i32 : i32, i32
  }
  func.func @transform_5(%arg0: i32) -> (i32, i32) {
    %c0_i32 = arith.constant 0 : i32
    %c0_i32_0 = arith.constant 0 : i32
    return %arg0, %c0_i32 : i32, i32
  }
  func.func @transform_6(%arg0: i32) -> (i32, i32, i32) {
    %c0_i32 = arith.constant 0 : i32
    %c0_i32_0 = arith.constant 0 : i32
    %c0_i32_1 = arith.constant 0 : i32
    return %arg0, %c0_i32, %c0_i32_0 : i32, i32, i32
  }
}

</mosaic_0001>

<llo_original>
// kernel: dvae_forward.1
$region0: #{dvae_forward.1}
  #allocation0 [shape = 'u32[]', space=smem, size = 0x4, offset = 0x4, fixed_abs, tag = 'smem constant byte address 0x4 - core index']
  #allocation1 [shape = 'u32[72,128]{1,0:T(1,128)}', space=vmem, size = 0x9000, scoped, tag = 'internal scratch']
  %s0 = inlined_call_operand.vmem [shape: f32[128,8], index: 0, kind: input, shape index: {}]
  %s1 = inlined_call_operand.vmem [shape: bf16[1344,128], index: 1, kind: input, shape index: {}]
  %s2 = inlined_call_operand.hbm [shape: bf16[576,128], index: 2, kind: input, shape index: {}]
  %s3 = inlined_call_operand.vmem [shape: f32[160,128], index: 3, kind: input, shape index: {}]
  %s4 = inlined_call_operand.vmem [shape: f32[128,8], index: 4, kind: output, shape index: {0}]
  %s5 = inlined_call_operand.vmem [shape: f32[128,8], index: 5, kind: output, shape index: {1}]
  %s6 = inlined_call_operand.vmem [shape: f32[2,1,1], index: 6, kind: output, shape index: {2}]
  %7 = xla_tuple %s4, %s5, %s6
  %s8 = sld [smem:[#allocation0]]
  $region69: #{dvae_forward.1} parent=0
    _
  %s10 = ssub.s32 1, %s8
  %s11 = scalar_select 0, %s10, %s8
  $region1: #{dvae_forward.1} parent=0
    #allocation2 [shape = 'u8[147456]{0}', space=vmem, size = 0x24000, scoped, tag = 'input window, operand 2, single buffered']
    #allocation3 [shape = 's32[2]{0}', space=sflag, size = 0x8, scoped, tag = 'scoped memory for dvae_forward.1']
    %12 = vsyncpa [#allocation3], 0
    loop: start=0, step=1, limit=4
    $region2: #{dvae_forward.1} parent=1 // loop_pre_header
      _
    $region3: #{dvae_forward.1} parent=1 // loop_header
      %s14 = sphi 0, %s18
      %p15 = scmp.ge.s32.totalorder %s14, 4
      %s24 = sphi 0, %s26
      %s27 = sphi 0, %s24
      %s28 = sphi 0, %s27
      %s44 = sphi 0, %s28
      %s48 = sphi 0, %s48
      %s50 = sphi 0, %s48
      %s51 = sphi 0, %s50
      %s65 = sphi 0, %s51
      %s69 = sphi 0, %s69
      %s71 = sphi 0, %s69
      %s72 = sphi 0, %s71
      %s86 = sphi 0, %s72
      %s90 = sphi 0, %s90
      %s92 = sphi 0, %s90
      %s93 = sphi 0, %s92
      %s107 = sphi 0, %s93
      %s113 = sphi 0, %s115
      %s116 = sphi 0, %s113
      %s117 = sphi 0, %s116
      %s133 = sphi 0, %s117
      %s139 = sphi 0, %s141
      %s142 = sphi 0, %s139
      %s143 = sphi 0, %s142
      %s159 = sphi 0, %s143
      %s165 = sphi 0, %s167
      %s168 = sphi 0, %s165
      %s169 = sphi 0, %s168
      %s185 = sphi 0, %s169
    $region4: #{dvae_forward.1} parent=1 // loop_header_branch
      %17 = sbr.rel (%p15) target = $region8
    $region5: #{dvae_forward.1} parent=1 // loop_body
      %s19 = ssub.s32 %s14, 1
      %s20 = ssub.s32 %s14, 2
      %s21 = sadd.s32 %s14, 1
      %s22 = ssub.s32 %s14, %s21
      %p23 = scmp.eq.s32.totalorder %s22, 0
      %s25 = sadd.s32 %s24, 1
      %s26 = scalar_select %p23, %s24, %s25
      %p29 = pneg %p23
      %p30 = scmp.eq.s32.totalorder %s14, 1
      %p31 = por %p29, %p30
      %p32 = scmp.ne.s32.totalorder %s24, %s27
      %p33 = scmp.eq.s32.totalorder %s14, 0
      %p34 = por %p32, %p33
      %p35 = scmp.ne.s32.totalorder %s24, %s27
      %p36 = scmp.eq.s32.totalorder %s19, 1
      %p37 = por %p35, %p36
      %p38 = scmp.ne.s32.totalorder %s27, %s28
      %p39 = scmp.eq.s32.totalorder %s19, 0
      %p40 = por %p38, %p39
      %p41 = scmp.ne.s32.totalorder %s27, %s28
      %p42 = scmp.eq.s32.totalorder %s20, 1
      %p43 = por %p41, %p42
      %p45 = scmp.ne.s32.totalorder %s28, %s44
      %p46 = scmp.eq.s32.totalorder %s20, 0
      %p47 = por %p45, %p46
      %s49 = sadd.s32 %s48, 1
      %p52 = scmp.eq.s32.totalorder %s14, 1
      %p53 = scmp.ne.s32.totalorder %s48, %s50
      %p54 = scmp.eq.s32.totalorder %s14, 0
      %p55 = por %p53, %p54
      %p56 = scmp.ne.s32.totalorder %s48, %s50
      %p57 = scmp.eq.s32.totalorder %s19, 1
      %p58 = por %p56, %p57
      %p59 = scmp.ne.s32.totalorder %s50, %s51
      %p60 = scmp.eq.s32.totalorder %s19, 0
      %p61 = por %p59, %p60
      %p62 = scmp.ne.s32.totalorder %s50, %s51
      %p63 = scmp.eq.s32.totalorder %s20, 1
      %p64 = por %p62, %p63
      %p66 = scmp.ne.s32.totalorder %s51, %s65
      %p67 = scmp.eq.s32.totalorder %s20, 0
      %p68 = por %p66, %p67
      %s70 = sadd.s32 %s69, 1
      %p73 = scmp.eq.s32.totalorder %s14, 1
      %p74 = scmp.ne.s32.totalorder %s69, %s71
      %p75 = scmp.eq.s32.totalorder %s14, 0
      %p76 = por %p74, %p75
      %p77 = scmp.ne.s32.totalorder %s69, %s71
      %p78 = scmp.eq.s32.totalorder %s19, 1
      %p79 = por %p77, %p78
      %p80 = scmp.ne.s32.totalorder %s71, %s72
      %p81 = scmp.eq.s32.totalorder %s19, 0
      %p82 = por %p80, %p81
      %p83 = scmp.ne.s32.totalorder %s71, %s72
      %p84 = scmp.eq.s32.totalorder %s20, 1
      %p85 = por %p83, %p84
      %p87 = scmp.ne.s32.totalorder %s72, %s86
      %p88 = scmp.eq.s32.totalorder %s20, 0
      %p89 = por %p87, %p88
      %s91 = sadd.s32 %s90, 1
      %p94 = scmp.eq.s32.totalorder %s14, 1
      %p95 = scmp.ne.s32.totalorder %s90, %s92
      %p96 = scmp.eq.s32.totalorder %s14, 0
      %p97 = por %p95, %p96
      %p98 = scmp.ne.s32.totalorder %s90, %s92
      %p99 = scmp.eq.s32.totalorder %s19, 1
      %p100 = por %p98, %p99
      %p101 = scmp.ne.s32.totalorder %s92, %s93
      %p102 = scmp.eq.s32.totalorder %s19, 0
      %p103 = por %p101, %p102
      %p104 = scmp.ne.s32.totalorder %s92, %s93
      %p105 = scmp.eq.s32.totalorder %s20, 1
      %p106 = por %p104, %p105
      %p108 = scmp.ne.s32.totalorder %s93, %s107
      %p109 = scmp.eq.s32.totalorder %s20, 0
      %p110 = por %p108, %p109
      %s111 = ssub.s32 %s14, %s21
      %p112 = scmp.eq.s32.totalorder %s111, 0
      %s114 = sadd.s32 %s113, 1
      %s115 = scalar_select %p112, %s113, %s114
      %p118 = pneg %p112
      %p119 = scmp.eq.s32.totalorder %s14, 1
      %p120 = por %p118, %p119
      %p121 = scmp.ne.s32.totalorder %s113, %s116
      %p122 = scmp.eq.s32.totalorder %s14, 0
      %p123 = por %p121, %p122
      %p124 = scmp.ne.s32.totalorder %s113, %s116
      %p125 = scmp.eq.s32.totalorder %s19, 1
      %p126 = por %p124, %p125
      %p127 = scmp.ne.s32.totalorder %s116, %s117
      %p128 = scmp.eq.s32.totalorder %s19, 0
      %p129 = por %p127, %p128
      %p130 = scmp.ne.s32.totalorder %s116, %s117
      %p131 = scmp.eq.s32.totalorder %s20, 1
      %p132 = por %p130, %p131
      %p134 = scmp.ne.s32.totalorder %s117, %s133
      %p135 = scmp.eq.s32.totalorder %s20, 0
      %p136 = por %p134, %p135
      %s137 = ssub.s32 %s14, %s21
      %p138 = scmp.eq.s32.totalorder %s137, 0
      %s140 = sadd.s32 %s139, 1
      %s141 = scalar_select %p138, %s139, %s140
      %p144 = pneg %p138
      %p145 = scmp.eq.s32.totalorder %s14, 1
      %p146 = por %p144, %p145
      %p147 = scmp.ne.s32.totalorder %s139, %s142
      %p148 = scmp.eq.s32.totalorder %s14, 0
      %p149 = por %p147, %p148
      %p150 = scmp.ne.s32.totalorder %s139, %s142
      %p151 = scmp.eq.s32.totalorder %s19, 1
      %p152 = por %p150, %p151
      %p153 = scmp.ne.s32.totalorder %s142, %s143
      %p154 = scmp.eq.s32.totalorder %s19, 0
      %p155 = por %p153, %p154
      %p156 = scmp.ne.s32.totalorder %s142, %s143
      %p157 = scmp.eq.s32.totalorder %s20, 1
      %p158 = por %p156, %p157
      %p160 = scmp.ne.s32.totalorder %s143, %s159
      %p161 = scmp.eq.s32.totalorder %s20, 0
      %p162 = por %p160, %p161
      %s163 = ssub.s32 %s14, %s21
      %p164 = scmp.eq.s32.totalorder %s163, 0
      %s166 = sadd.s32 %s165, 1
      %s167 = scalar_select %p164, %s165, %s166
      %p170 = pneg %p164
      %p171 = scmp.eq.s32.totalorder %s14, 1
      %p172 = por %p170, %p171
      %p173 = scmp.ne.s32.totalorder %s165, %s168
      %p174 = scmp.eq.s32.totalorder %s14, 0
      %p175 = por %p173, %p174
      %p176 = scmp.ne.s32.totalorder %s165, %s168
      %p177 = scmp.eq.s32.totalorder %s19, 1
      %p178 = por %p176, %p177
      %p179 = scmp.ne.s32.totalorder %s168, %s169
      %p180 = scmp.eq.s32.totalorder %s19, 0
      %p181 = por %p179, %p180
      %p182 = scmp.ne.s32.totalorder %s168, %s169
      %p183 = scmp.eq.s32.totalorder %s20, 1
      %p184 = por %p182, %p183
      %p186 = scmp.ne.s32.totalorder %s169, %s185
      %p187 = scmp.eq.s32.totalorder %s20, 0
      %p188 = por %p186, %p187
      %p189 = scmp.le.s32.totalorder 1, %s14
      %p190 = scmp.lt.s32.totalorder %s14, 3
      %p191 = pnand %p189, %p190
      %p192 = pneg %p191
      // Predicated region
      $region9: #{dvae_forward.1} parent=5 // pred_check
        _
      $region10: #{dvae_forward.1} parent=5 // pred_check_branch
        %194 = sbr.rel (%p191) target = $region12
      $region11: #{dvae_forward.1} parent=5 // pred_region
        %s195 = ssub.s32 %s14, 1
        // Predicated region
        $region13: #{dvae_forward.1} parent=11 // pred_check
          %p196 = pneg %p61
        $region14: #{dvae_forward.1} parent=11 // pred_check_branch
          %198 = sbr.rel (%p196) target = $region16
        $region15: #{dvae_forward.1} parent=11 // pred_region
          _
        $region16: #{dvae_forward.1} parent=11 // pred_fallthru
          _
        // Predicated region
        $region17: #{dvae_forward.1} parent=11 // pred_check
          %p199 = pneg %p82
        $region18: #{dvae_forward.1} parent=11 // pred_check_branch
          %201 = sbr.rel (%p199) target = $region20
        $region19: #{dvae_forward.1} parent=11 // pred_region
          %203 = vsyncadd [#allocation3], 0
          %s204 = sshll.u32 %s2, 4
          %s205 = int_to_ptr.hbm [resolvable:$true] %s204
          %s206 = sshll.u32 [#allocation2], 4
          %s207 = int_to_ptr.vmem [resolvable:$true] %s206
          %212 = dma.hbm_to_vmem [thread:$0]  %s205, 4608, %s207, [#allocation3], 64, 64, 4
        $region20: #{dvae_forward.1} parent=11 // pred_fallthru
          _
        // Predicated region
        $region21: #{dvae_forward.1} parent=11 // pred_check
          %p213 = pneg %p103
        $region22: #{dvae_forward.1} parent=11 // pred_check_branch
          %215 = sbr.rel (%p213) target = $region24
        $region23: #{dvae_forward.1} parent=11 // pred_region
          _
        $region24: #{dvae_forward.1} parent=11 // pred_fallthru
          _
      $region12: #{dvae_forward.1} parent=5 // pred_fallthru
        _
      %p216 = scmp.lt.s32.totalorder %s14, 2
      // Predicated region
      $region25: #{dvae_forward.1} parent=5 // pred_check
        %p217 = pneg %p216
      $region26: #{dvae_forward.1} parent=5 // pred_check_branch
        %219 = sbr.rel (%p217) target = $region28
      $region27: #{dvae_forward.1} parent=5 // pred_region
        // Predicated region
        $region29: #{dvae_forward.1} parent=27 // pred_check
          %p220 = pneg %p34
        $region30: #{dvae_forward.1} parent=27 // pred_check_branch
          %222 = sbr.rel (%p220) target = $region32
        $region31: #{dvae_forward.1} parent=27 // pred_region
          %s223 = smul.u32 8, %s14
          %p224 = scmp.lt.s32.totalorder %s223, 15
          %s225 = scalar_select %p224, %s223, 15
          %s226 = smul.addr %s225, 8
          %s227 = scalar_lea.vmem %s0, %s226
          %s228 = smul.u32 8, %s14
        $region32: #{dvae_forward.1} parent=27 // pred_fallthru
          _
      $region28: #{dvae_forward.1} parent=5 // pred_fallthru
        _
      %p229 = scmp.le.s32.totalorder 1, %s14
      %p230 = scmp.lt.s32.totalorder %s14, 3
      %p231 = pnand %p229, %p230
      %p232 = pneg %p231
      // Predicated region
      $region33: #{dvae_forward.1} parent=5 // pred_check
        _
      $region34: #{dvae_forward.1} parent=5 // pred_check_branch
        %234 = sbr.rel (%p231) target = $region36
      $region35: #{dvae_forward.1} parent=5 // pred_region
        %s235 = ssub.s32 %s14, 1
        // Predicated region
        $region37: #{dvae_forward.1} parent=35 // pred_check
          %p236 = pneg %p82
        $region38: #{dvae_forward.1} parent=35 // pred_check_branch
          %238 = sbr.rel (%p236) target = $region40
        $region39: #{dvae_forward.1} parent=35 // pred_region
          %240 = dma.done [#allocation3], 4608
        $region40: #{dvae_forward.1} parent=35 // pred_fallthru
          _
        %s241 = smul.u32 8, %s19
        %p242 = scmp.lt.s32.totalorder %s241, 15
        %s243 = scalar_select %p242, %s241, 15
        %s244 = smul.addr %s243, 8
        %s245 = scalar_lea.vmem %s0, %s244
        %p246 = pneg %p40
        %p247 = pneg %p37
        %p248 = pneg %p61
        %p249 = pneg %p58
        %p250 = pneg %p82
        %p251 = pneg %p79
        %p252 = pneg %p103
        %p253 = pneg %p100
        %p254 = pneg %p129
        %p255 = pneg %p126
        %s256 = smul.u32 8, %s19
        %p257 = scmp.lt.s32.totalorder %s256, 15
        %s258 = scalar_select %p257, %s256, 15
        %s259 = smul.addr %s258, 8
        %s260 = scalar_lea.vmem %s4, %s259
        %p261 = pneg %p155
        %p262 = pneg %p152
        %s263 = smul.u32 8, %s19
        %p264 = scmp.lt.s32.totalorder %s263, 15
        %s265 = scalar_select %p264, %s263, 15
        %s266 = smul.addr %s265, 8
        %s267 = scalar_lea.vmem %s5, %s266
        %p268 = pneg %p181
        %p269 = pneg %p178
        %p270 = scmp.lt.s32.totalorder %s19, 1
        %s271 = scalar_select %p270, %s19, 1
        %s272 = scalar_lea.vmem %s6, %s271
        %s273 = smul.u32 8, %s19
        %p274 = scmp.lt.s32.totalorder %s273, 15
        %s275 = scalar_select %p274, %s273, 15
        %s276 = smul.addr %s275, 8
        %s277 = scalar_lea.vmem %s0, %s276
        %s278 = smul.u32 8, %s19
        %s279 = smul.u32 8, %s19
        %p280 = scmp.lt.s32.totalorder %s279, 15
        %s281 = scalar_select %p280, %s279, 15
        %s282 = smul.addr %s281, 8
        %s283 = scalar_lea.vmem %s4, %s282
        %s284 = smul.u32 8, %s19
        %s285 = smul.u32 8, %s19
        %p286 = scmp.lt.s32.totalorder %s285, 15
        %s287 = scalar_select %p286, %s285, 15
        %s288 = smul.addr %s287, 8
        %s289 = scalar_lea.vmem %s5, %s288
        %s290 = smul.u32 8, %s19
        %p291 = scmp.lt.s32.totalorder %s19, 1
        %s292 = scalar_select %p291, %s19, 1
        %s293 = scalar_lea.vmem %s6, %s292
        %v295 = vld [vmem:[%s277] sm:$0xff]
        %v296 = vld [vmem:[%s277 + $0x8] sm:$0xff]
        %v297 = vld [vmem:[%s277 + $0x10] sm:$0xff]
        %v298 = vld [vmem:[%s277 + $0x18] sm:$0xff]
        %v299 = vld [vmem:[%s277 + $0x20] sm:$0xff]
        %v300 = vld [vmem:[%s277 + $0x28] sm:$0xff]
        %v301 = vld [vmem:[%s277 + $0x30] sm:$0xff]
        %v302 = vld [vmem:[%s277 + $0x38] sm:$0xff]
        %v303 = vpack.c.bf16 %v296, %v295
        %v304 = vpack.c.bf16 %v298, %v297
        %v305 = vpack.c.bf16 %v300, %v299
        %v306 = vpack.c.bf16 %v302, %v301
        %v307 = vld [vmem:[#allocation2] sm:$0xf]
        %v308 = vld [vmem:[#allocation2 + $0x4] sm:$0xf]
        %v309 = vld [vmem:[#allocation2 + $0x8] sm:$0xf]
        %v310 = vld [vmem:[#allocation2 + $0xc] sm:$0xf]
        %v315 = vunpack.c.l.b16 %v307
        %v316 = vunpack.c.l.b16 %v308
        %v317 = vunpack.c.l.b16 %v309
        %v318 = vunpack.c.l.b16 %v310
        %v319 = vpack.c.b16 %v316, %v315
        %v320 = vpack.c.b16 %v318, %v317
        %vm321 = vcmask 523264
        %v323 = vsel %vm321, %v319, 0
        %v326 = vsel %vm321, %v320, 0
        %328 = vmatpush.bf16.msra.mxu0 0
        %329 = vmatpush.bf16.msra.mxu0 0
        %330 = vmatpush.bf16.msra.mxu0 0
        %331 = vmatpush.bf16.msra.mxu0 0
        %332 = vmatpush.bf16.msra.mxu0 %v306
        %333 = vmatpush.bf16.msra.mxu0 %v305
        %334 = vmatpush.bf16.msra.mxu0 %v304
        %335 = vmatpush.bf16.msra.mxu0 %v303
        %336 = vmatmul.bf16.gmra.mxu0 %v323
        %v337 = vpop.f32.mrf.mxu0
        %v338 = vadd.f32 0.0, %v337
        %v339 = vpop.f32.mrf.mxu0
        %v340 = vadd.f32 0.0, %v339
        %341 = vmatmul.bf16.gmra.mxu0 %v326
        %v342 = vpop.f32.mrf.mxu0
        %v343 = vadd.f32 0.0, %v342
        %v344 = vpop.f32.mrf.mxu0
        %v345 = vadd.f32 0.0, %v344
        %346 = vdwg.mxu0
        %v347 = vld [vmem:[#allocation2 + $0x10] sm:$0xf]
        %v348 = vld [vmem:[#allocation2 + $0x14] sm:$0xf]
        %v349 = vld [vmem:[#allocation2 + $0x18] sm:$0xf]
        %v350 = vld [vmem:[#allocation2 + $0x1c] sm:$0xf]
        %v355 = vunpack.c.l.b16 %v347
        %v356 = vunpack.c.l.b16 %v348
        %v357 = vunpack.c.l.b16 %v349
        %v358 = vunpack.c.l.b16 %v350
        %v359 = vpack.c.b16 %v356, %v355
        %v360 = vpack.c.b16 %v358, %v357
        %v362 = vsel %vm321, %v359, 0
        %v365 = vsel %vm321, %v360, 0
        %367 = vmatpush.bf16.msra.mxu0 0
        %368 = vmatpush.bf16.msra.mxu0 0
        %369 = vmatpush.bf16.msra.mxu0 0
        %370 = vmatpush.bf16.msra.mxu0 0
        %371 = vmatpush.bf16.msra.mxu0 %v306
        %372 = vmatpush.bf16.msra.mxu0 %v305
        %373 = vmatpush.bf16.msra.mxu0 %v304
        %374 = vmatpush.bf16.msra.mxu0 %v303
        %375 = vmatmul.bf16.gmra.mxu0 %v362
        %v376 = vpop.f32.mrf.mxu0
        %v377 = vadd.f32 0.0, %v376
        %v378 = vpop.f32.mrf.mxu0
        %v379 = vadd.f32 0.0, %v378
        %380 = vmatmul.bf16.gmra.mxu0 %v365
        %v381 = vpop.f32.mrf.mxu0
        %v382 = vadd.f32 0.0, %v381
        %v383 = vpop.f32.mrf.mxu0
        %v384 = vadd.f32 0.0, %v383
        %385 = vdwg.mxu0
        %v386 = vld [vmem:[#allocation2 + $0x20] sm:$0xf]
        %v387 = vld [vmem:[#allocation2 + $0x24] sm:$0xf]
        %v388 = vld [vmem:[#allocation2 + $0x28] sm:$0xf]
        %v389 = vld [vmem:[#allocation2 + $0x2c] sm:$0xf]
        %v394 = vunpack.c.l.b16 %v386
        %v395 = vunpack.c.l.b16 %v387
        %v396 = vunpack.c.l.b16 %v388
        %v397 = vunpack.c.l.b16 %v389
        %v398 = vpack.c.b16 %v395, %v394
        %v399 = vpack.c.b16 %v397, %v396
        %v401 = vsel %vm321, %v398, 0
        %v404 = vsel %vm321, %v399, 0
        %406 = vmatpush.bf16.msra.mxu0 0
        %407 = vmatpush.bf16.msra.mxu0 0
        %408 = vmatpush.bf16.msra.mxu0 0
        %409 = vmatpush.bf16.msra.mxu0 0
        %410 = vmatpush.bf16.msra.mxu0 %v306
        %411 = vmatpush.bf16.msra.mxu0 %v305
        %412 = vmatpush.bf16.msra.mxu0 %v304
        %413 = vmatpush.bf16.msra.mxu0 %v303
        %414 = vmatmul.bf16.gmra.mxu0 %v401
        %v415 = vpop.f32.mrf.mxu0
        %v416 = vadd.f32 0.0, %v415
        %v417 = vpop.f32.mrf.mxu0
        %v418 = vadd.f32 0.0, %v417
        %419 = vmatmul.bf16.gmra.mxu0 %v404
        %v420 = vpop.f32.mrf.mxu0
        %v421 = vadd.f32 0.0, %v420
        %v422 = vpop.f32.mrf.mxu0
        %v423 = vadd.f32 0.0, %v422
        %424 = vdwg.mxu0
        %429 = vrot.lane.b32.xlu0 %v377, 8
        %v430 = vpop.permute.xlu0 %429
        %431 = vrot.lane.b32.xlu0 %v379, 8
        %v432 = vpop.permute.xlu0 %431
        %433 = vrot.lane.b32.xlu0 %v382, 8
        %v434 = vpop.permute.xlu0 %433
        %435 = vrot.lane.b32.xlu0 %v384, 8
        %v436 = vpop.permute.xlu0 %435
        %445 = vrot.lane.b32.xlu0 %v416, 16
        %v446 = vpop.permute.xlu0 %445
        %447 = vrot.lane.b32.xlu0 %v418, 16
        %v448 = vpop.permute.xlu0 %447
        %449 = vrot.lane.b32.xlu0 %v421, 16
        %v450 = vpop.permute.xlu0 %449
        %451 = vrot.lane.b32.xlu0 %v423, 16
        %v452 = vpop.permute.xlu0 %451
        %vm457 = vcmask 64512
        %v458 = vsel %vm457, %v338, %v430
        %v459 = vsel %vm457, %v340, %v432
        %v460 = vsel %vm457, %v343, %v434
        %v461 = vsel %vm457, %v345, %v436
        %vm462 = vcmask 130048
        %v463 = vsel %vm462, %v458, %v446
        %v464 = vsel %vm462, %v459, %v448
        %v465 = vsel %vm462, %v460, %v450
        %v466 = vsel %vm462, %v461, %v452
        %v467 = vpack.c.bf16 %v464, %v463
        %v468 = vpack.c.bf16 %v466, %v465
        %v469 = vld [vmem:[%s1] sm:$0xf]
        %v470 = vld [vmem:[%s1 + $0x4] sm:$0xf]
        %v471 = vld [vmem:[%s1 + $0x8] sm:$0xf]
        %v472 = vld [vmem:[%s3] sm:$0x1]
        %v473 = vperm.slane %v472, 0
        %v477 = vunpack.c.l.b16 %v469
        %v478 = vunpack.c.l.b16 %v470
        %v479 = vunpack.c.l.b16 %v471
        %v480 = vpack.c.b16 %v478, %v477
        %v481 = vpack.c.b16 %v479, %v479
        %vm483 = vcmask 195584
        %v485 = vsel %vm483, %v467, 0
        %v488 = vsel %vm483, %v468, 0
        %vm490 = vcmask 1043456
        %v492 = vsel %vm490, %v481, 0
        %494 = vmatpush.bf16.msra.mxu0 0
        %495 = vmatpush.bf16.msra.mxu0 0
        %496 = vmatpush.bf16.msra.mxu0 0
        %497 = vmatpush.bf16.msra.mxu0 0
        %498 = vmatpush.bf16.msra.mxu0 0
        %499 = vmatpush.bf16.msra.mxu0 0
        %500 = vmatpush.bf16.msra.mxu0 %v492
        %501 = vmatpush.bf16.msra.mxu0 %v480
        %502 = vmatmul.bf16.gmra.mxu0 %v485
        %v503 = vpop.f32.mrf.mxu0
        %v504 = vadd.f32 %v473, %v503
        %v505 = vpop.f32.mrf.mxu0
        %v506 = vadd.f32 %v473, %v505
        %507 = vmatmul.bf16.gmra.mxu0 %v488
        %v508 = vpop.f32.mrf.mxu0
        %v509 = vadd.f32 %v473, %v508
        %v510 = vpop.f32.mrf.mxu0
        %v511 = vadd.f32 %v473, %v510
        %512 = vdwg.mxu0
        %v513 = vmax.f32 %v504, 0.0
        %v514 = vmax.f32 %v506, 0.0
        %v515 = vmax.f32 %v509, 0.0
        %v516 = vmax.f32 %v511, 0.0
        %v517 = vpack.c.bf16 %v514, %v513
        %v518 = vpack.c.bf16 %v516, %v515
        %v519 = vld [vmem:[#allocation2 + $0x30] sm:$0xf]
        %v520 = vld [vmem:[#allocation2 + $0x34] sm:$0xf]
        %v523 = vunpack.c.l.b16 %v519
        %v524 = vunpack.c.l.b16 %v520
        %v525 = vpack.c.b16 %v524, %v523
        %vm526 = vcmask 261120
        %v528 = vsel %vm526, %v525, 0
        %530 = vmatpush.bf16.msra.mxu0 0
        %531 = vmatpush.bf16.msra.mxu0 0
        %532 = vmatpush.bf16.msra.mxu0 0
        %533 = vmatpush.bf16.msra.mxu0 0
        %534 = vmatpush.bf16.msra.mxu0 0
        %535 = vmatpush.bf16.msra.mxu0 0
        %536 = vmatpush.bf16.msra.mxu0 %v518
        %537 = vmatpush.bf16.msra.mxu0 %v517
        %538 = vmatmul.bf16.gmra.mxu0 %v528
        %v539 = vpop.f32.mrf.mxu0
        %v540 = vadd.f32 0.0, %v539
        %v541 = vpop.f32.mrf.mxu0
        %v542 = vadd.f32 0.0, %v541
        %543 = vdwg.mxu0
        %v544 = vld [vmem:[#allocation2 + $0x38] sm:$0xf]
        %v545 = vld [vmem:[#allocation2 + $0x3c] sm:$0xf]
        %v548 = vunpack.c.l.b16 %v544
        %v549 = vunpack.c.l.b16 %v545
        %v550 = vpack.c.b16 %v549, %v548
        %v552 = vsel %vm526, %v550, 0
        %554 = vmatpush.bf16.msra.mxu0 0
        %555 = vmatpush.bf16.msra.mxu0 0
        %556 = vmatpush.bf16.msra.mxu0 0
        %557 = vmatpush.bf16.msra.mxu0 0
        %558 = vmatpush.bf16.msra.mxu0 0
        %559 = vmatpush.bf16.msra.mxu0 0
        %560 = vmatpush.bf16.msra.mxu0 %v518
        %561 = vmatpush.bf16.msra.mxu0 %v517
        %562 = vmatmul.bf16.gmra.mxu0 %v552
        %v563 = vpop.f32.mrf.mxu0
        %v564 = vadd.f32 0.0, %v563
        %v565 = vpop.f32.mrf.mxu0
        %v566 = vadd.f32 0.0, %v565
        %567 = vdwg.mxu0
        %v568 = vld [vmem:[#allocation2 + $0x40] sm:$0xf]
        %v569 = vld [vmem:[#allocation2 + $0x44] sm:$0xf]
        %v572 = vunpack.c.l.b16 %v568
        %v573 = vunpack.c.l.b16 %v569
        %v574 = vpack.c.b16 %v573, %v572
        %v576 = vsel %vm526, %v574, 0
        %578 = vmatpush.bf16.msra.mxu0 0
        %579 = vmatpush.bf16.msra.mxu0 0
        %580 = vmatpush.bf16.msra.mxu0 0
        %581 = vmatpush.bf16.msra.mxu0 0
        %582 = vmatpush.bf16.msra.mxu0 0
        %583 = vmatpush.bf16.msra.mxu0 0
        %584 = vmatpush.bf16.msra.mxu0 %v518
        %585 = vmatpush.bf16.msra.mxu0 %v517
        %586 = vmatmul.bf16.gmra.mxu0 %v576
        %v587 = vpop.f32.mrf.mxu0
        %v588 = vadd.f32 0.0, %v587
        %v589 = vpop.f32.mrf.mxu0
        %v590 = vadd.f32 0.0, %v589
        %591 = vdwg.mxu0
        %594 = vrot.lane.b32.xlu0 %v564, 16
        %v595 = vpop.permute.xlu0 %594
        %596 = vrot.lane.b32.xlu0 %v566, 16
        %v597 = vpop.permute.xlu0 %596
        %602 = vrot.lane.b32.xlu0 %v588, 32
        %v603 = vpop.permute.xlu0 %602
        %604 = vrot.lane.b32.xlu0 %v590, 32
        %v605 = vpop.permute.xlu0 %604
        %v608 = vsel %vm462, %v540, %v595
        %v609 = vsel %vm462, %v542, %v597
        %v610 = vsel %vm526, %v608, %v603
        %v611 = vsel %vm526, %v609, %v605
        %v612 = vpack.c.bf16 %v611, %v610
        %v613 = vld [vmem:[%s1 + $0x10] sm:$0xf]
        %v614 = vld [vmem:[%s1 + $0x14] sm:$0xf]
        %v615 = vld [vmem:[%s1 + $0x18] sm:$0xf]
        %v616 = vld [vmem:[%s1 + $0x1c] sm:$0xf]
        %v617 = vld [vmem:[%s1 + $0x20] sm:$0xf]
        %v618 = vld [vmem:[%s1 + $0x24] sm:$0xf]
        %v619 = vld [vmem:[%s3 + $0x8] sm:$0x1]
        %v620 = vperm.slane %v619, 0
        %v627 = vunpack.c.l.b16 %v613
        %v628 = vunpack.c.l.b16 %v614
        %v629 = vunpack.c.l.b16 %v615
        %v630 = vunpack.c.l.b16 %v616
        %v631 = vunpack.c.l.b16 %v617
        %v632 = vunpack.c.l.b16 %v618
        %v633 = vpack.c.b16 %v628, %v627
        %v634 = vpack.c.b16 %v630, %v629
        %v635 = vpack.c.b16 %v632, %v631
        %vm639 = vcmask 392192
        %v641 = vsel %vm639, %v612, 0
        %643 = vmatpush.bf16.msra.mxu0 0
        %644 = vmatpush.bf16.msra.mxu0 0
        %645 = vmatpush.bf16.msra.mxu0 0
        %646 = vmatpush.bf16.msra.mxu0 0
        %647 = vmatpush.bf16.msra.mxu0 0
        %648 = vmatpush.bf16.msra.mxu0 %v635
        %649 = vmatpush.bf16.msra.mxu0 %v634
        %650 = vmatpush.bf16.msra.mxu0 %v633
        %651 = vmatmul.bf16.gmra.mxu0 %v641
        %v652 = vpop.f32.mrf.mxu0
        %v653 = vadd.f32 %v620, %v652
        %v654 = vpop.f32.mrf.mxu0
        %v655 = vadd.f32 %v620, %v654
        %656 = vdwg.mxu0
        %v657 = vmax.f32 %v653, 0.0
        %v658 = vmax.f32 %v655, 0.0
        %v659 = vpack.c.bf16 %v658, %v657
        %v660 = vld [vmem:[#allocation2 + $0x48] sm:$0xf]
        %v661 = vld [vmem:[#allocation2 + $0x4c] sm:$0xf]
        %v664 = vunpack.c.l.b16 %v660
        %v665 = vunpack.c.l.b16 %v661
        %v666 = vpack.c.b16 %v665, %v664
        %v668 = vsel %vm462, %v666, 0
        %670 = vmatpush.bf16.msra.mxu0 0
        %671 = vmatpush.bf16.msra.mxu0 0
        %672 = vmatpush.bf16.msra.mxu0 0
        %673 = vmatpush.bf16.msra.mxu0 0
        %674 = vmatpush.bf16.msra.mxu0 0
        %675 = vmatpush.bf16.msra.mxu0 0
        %676 = vmatpush.bf16.msra.mxu0 0
        %677 = vmatpush.bf16.msra.mxu0 %v659
        %678 = vmatmul.bf16.gmra.mxu0 %v668
        %v679 = vpop.f32.mrf.mxu0
        %v680 = vadd.f32 0.0, %v679
        %v681 = vpop.f32.mrf.mxu0
        %v682 = vadd.f32 0.0, %v681
        %683 = vdwg.mxu0
        %v684 = vld [vmem:[#allocation2 + $0x50] sm:$0xf]
        %v685 = vld [vmem:[#allocation2 + $0x54] sm:$0xf]
        %v688 = vunpack.c.l.b16 %v684
        %v689 = vunpack.c.l.b16 %v685
        %v690 = vpack.c.b16 %v689, %v688
        %v692 = vsel %vm462, %v690, 0
        %694 = vmatpush.bf16.msra.mxu0 0
        %695 = vmatpush.bf16.msra.mxu0 0
        %696 = vmatpush.bf16.msra.mxu0 0
        %697 = vmatpush.bf16.msra.mxu0 0
        %698 = vmatpush.bf16.msra.mxu0 0
        %699 = vmatpush.bf16.msra.mxu0 0
        %700 = vmatpush.bf16.msra.mxu0 0
        %701 = vmatpush.bf16.msra.mxu0 %v659
        %702 = vmatmul.bf16.gmra.mxu0 %v692
        %v703 = vpop.f32.mrf.mxu0
        %v704 = vadd.f32 0.0, %v703
        %v705 = vpop.f32.mrf.mxu0
        %v706 = vadd.f32 0.0, %v705
        %707 = vdwg.mxu0
        %v708 = vld [vmem:[#allocation2 + $0x58] sm:$0xf]
        %v709 = vld [vmem:[#allocation2 + $0x5c] sm:$0xf]
        %v712 = vunpack.c.l.b16 %v708
        %v713 = vunpack.c.l.b16 %v709
        %v714 = vpack.c.b16 %v713, %v712
        %v716 = vsel %vm462, %v714, 0
        %718 = vmatpush.bf16.msra.mxu0 0
        %719 = vmatpush.bf16.msra.mxu0 0
        %720 = vmatpush.bf16.msra.mxu0 0
        %721 = vmatpush.bf16.msra.mxu0 0
        %722 = vmatpush.bf16.msra.mxu0 0
        %723 = vmatpush.bf16.msra.mxu0 0
        %724 = vmatpush.bf16.msra.mxu0 0
        %725 = vmatpush.bf16.msra.mxu0 %v659
        %726 = vmatmul.bf16.gmra.mxu0 %v716
        %v727 = vpop.f32.mrf.mxu0
        %v728 = vadd.f32 0.0, %v727
        %v729 = vpop.f32.mrf.mxu0
        %v730 = vadd.f32 0.0, %v729
        %731 = vdwg.mxu0
        %734 = vrot.lane.b32.xlu0 %v704, 32
        %v735 = vpop.permute.xlu0 %734
        %736 = vrot.lane.b32.xlu0 %v706, 32
        %v737 = vpop.permute.xlu0 %736
        %742 = vrot.lane.b32.xlu0 %v728, 64
        %v743 = vpop.permute.xlu0 %742
        %744 = vrot.lane.b32.xlu0 %v730, 64
        %v745 = vpop.permute.xlu0 %744
        %v748 = vsel %vm526, %v680, %v735
        %v749 = vsel %vm526, %v682, %v737
        %v750 = vsel %vm321, %v748, %v743
        %v751 = vsel %vm321, %v749, %v745
        %v752 = vpack.c.bf16 %v751, %v750
        %v753 = vld [vmem:[%s1 + $0x28] sm:$0xf]
        %v754 = vld [vmem:[%s1 + $0x2c] sm:$0xf]
        %v755 = vld [vmem:[%s1 + $0x30] sm:$0xf]
        %v756 = vld [vmem:[%s1 + $0x34] sm:$0xf]
        %v757 = vld [vmem:[%s1 + $0x38] sm:$0xf]
        %v758 = vld [vmem:[%s1 + $0x3c] sm:$0xf]
        %v759 = vld [vmem:[%s1 + $0x40] sm:$0xf]
        %v760 = vld [vmem:[%s1 + $0x44] sm:$0xf]
        %v761 = vld [vmem:[%s1 + $0x48] sm:$0xf]
        %v762 = vld [vmem:[%s1 + $0x4c] sm:$0xf]
        %v763 = vld [vmem:[%s1 + $0x50] sm:$0xf]
        %v764 = vld [vmem:[%s1 + $0x54] sm:$0xf]
        %v765 = vld [vmem:[%s3 + $0x10] sm:$0x1]
        %v766 = vperm.slane %v765, 0
        %v779 = vunpack.c.l.b16 %v753
        %v780 = vunpack.c.l.b16 %v754
        %v781 = vunpack.c.l.b16 %v755
        %v782 = vunpack.c.l.b16 %v756
        %v783 = vunpack.c.l.b16 %v757
        %v784 = vunpack.c.l.b16 %v758
        %v785 = vunpack.c.l.b16 %v759
        %v786 = vunpack.c.l.b16 %v760
        %v787 = vunpack.c.l.b16 %v761
        %v788 = vunpack.c.l.b16 %v762
        %v789 = vunpack.c.l.b16 %v763
        %v790 = vunpack.c.l.b16 %v764
        %v791 = vpack.c.b16 %v780, %v779
        %v792 = vpack.c.b16 %v782, %v781
        %v793 = vpack.c.b16 %v784, %v783
        %v794 = vpack.c.b16 %v786, %v785
        %v795 = vpack.c.b16 %v788, %v787
        %v796 = vpack.c.b16 %v790, %v789
        %vm803 = vcmask 785408
        %v805 = vsel %vm803, %v752, 0
        %807 = vmatpush.bf16.msra.mxu0 0
        %808 = vmatpush.bf16.msra.mxu0 0
        %809 = vmatpush.bf16.msra.mxu0 %v796
        %810 = vmatpush.bf16.msra.mxu0 %v795
        %811 = vmatpush.bf16.msra.mxu0 %v794
        %812 = vmatpush.bf16.msra.mxu0 %v793
        %813 = vmatpush.bf16.msra.mxu0 %v792
        %814 = vmatpush.bf16.msra.mxu0 %v791
        %815 = vmatmul.bf16.gmra.mxu0 %v805
        %v816 = vpop.f32.mrf.mxu0
        %v817 = vadd.f32 %v766, %v816
        %v818 = vpop.f32.mrf.mxu0
        %v819 = vadd.f32 %v766, %v818
        %820 = vdwg.mxu0
        %v821 = vmax.f32 %v817, 0.0
        %v822 = vmax.f32 %v819, 0.0
        %v823 = vpack.c.bf16 %v822, %v821
        %824 = vmatpush.bf16.msra.mxu0 0
        %825 = vmatpush.bf16.msra.mxu0 0
        %826 = vmatpush.bf16.msra.mxu0 0
        %827 = vmatpush.bf16.msra.mxu0 0
        %828 = vmatpush.bf16.msra.mxu0 0
        %829 = vmatpush.bf16.msra.mxu0 0
        %830 = vmatpush.bf16.msra.mxu0 0
        %831 = vmatpush.bf16.msra.mxu0 %v823
        %832 = vmatmul.bf16.gmra.mxu0 %v668
        %v833 = vpop.f32.mrf.mxu0
        %v834 = vadd.f32 0.0, %v833
        %v835 = vpop.f32.mrf.mxu0
        %v836 = vadd.f32 0.0, %v835
        %837 = vdwg.mxu0
        %838 = vmatpush.bf16.msra.mxu0 0
        %839 = vmatpush.bf16.msra.mxu0 0
        %840 = vmatpush.bf16.msra.mxu0 0
        %841 = vmatpush.bf16.msra.mxu0 0
        %842 = vmatpush.bf16.msra.mxu0 0
        %843 = vmatpush.bf16.msra.mxu0 0
        %844 = vmatpush.bf16.msra.mxu0 0
        %845 = vmatpush.bf16.msra.mxu0 %v823
        %846 = vmatmul.bf16.gmra.mxu0 %v692
        %v847 = vpop.f32.mrf.mxu0
        %v848 = vadd.f32 0.0, %v847
        %v849 = vpop.f32.mrf.mxu0
        %v850 = vadd.f32 0.0, %v849
        %851 = vdwg.mxu0
        %852 = vmatpush.bf16.msra.mxu0 0
        %853 = vmatpush.bf16.msra.mxu0 0
        %854 = vmatpush.bf16.msra.mxu0 0
        %855 = vmatpush.bf16.msra.mxu0 0
        %856 = vmatpush.bf16.msra.mxu0 0
        %857 = vmatpush.bf16.msra.mxu0 0
        %858 = vmatpush.bf16.msra.mxu0 0
        %859 = vmatpush.bf16.msra.mxu0 %v823
        %860 = vmatmul.bf16.gmra.mxu0 %v716
        %v861 = vpop.f32.mrf.mxu0
        %v862 = vadd.f32 0.0, %v861
        %v863 = vpop.f32.mrf.mxu0
        %v864 = vadd.f32 0.0, %v863
        %865 = vdwg.mxu0
        %868 = vrot.lane.b32.xlu0 %v848, 32
        %v869 = vpop.permute.xlu0 %868
        %870 = vrot.lane.b32.xlu0 %v850, 32
        %v871 = vpop.permute.xlu0 %870
        %876 = vrot.lane.b32.xlu0 %v862, 64
        %v877 = vpop.permute.xlu0 %876
        %878 = vrot.lane.b32.xlu0 %v864, 64
        %v879 = vpop.permute.xlu0 %878
        %v882 = vsel %vm526, %v834, %v869
        %v883 = vsel %vm526, %v836, %v871
        %v884 = vsel %vm321, %v882, %v877
        %v885 = vsel %vm321, %v883, %v879
        %v886 = vpack.c.bf16 %v885, %v884
        %v887 = vld [vmem:[%s1 + $0x58] sm:$0xf]
        %v888 = vld [vmem:[%s1 + $0x5c] sm:$0xf]
        %v889 = vld [vmem:[%s1 + $0x60] sm:$0xf]
        %v890 = vld [vmem:[%s1 + $0x64] sm:$0xf]
        %v891 = vld [vmem:[%s1 + $0x68] sm:$0xf]
        %v892 = vld [vmem:[%s1 + $0x6c] sm:$0xf]
        %v893 = vld [vmem:[%s1 + $0x70] sm:$0xf]
        %v894 = vld [vmem:[%s1 + $0x74] sm:$0xf]
        %v895 = vld [vmem:[%s1 + $0x78] sm:$0xf]
        %v896 = vld [vmem:[%s1 + $0x7c] sm:$0xf]
        %v897 = vld [vmem:[%s1 + $0x80] sm:$0xf]
        %v898 = vld [vmem:[%s1 + $0x84] sm:$0xf]
        %v899 = vld [vmem:[%s3 + $0x18] sm:$0x1]
        %v900 = vperm.slane %v899, 0
        %v913 = vunpack.c.l.b16 %v887
        %v914 = vunpack.c.l.b16 %v888
        %v915 = vunpack.c.l.b16 %v889
        %v916 = vunpack.c.l.b16 %v890
        %v917 = vunpack.c.l.b16 %v891
        %v918 = vunpack.c.l.b16 %v892
        %v919 = vunpack.c.l.b16 %v893
        %v920 = vunpack.c.l.b16 %v894
        %v921 = vunpack.c.l.b16 %v895
        %v922 = vunpack.c.l.b16 %v896
        %v923 = vunpack.c.l.b16 %v897
        %v924 = vunpack.c.l.b16 %v898
        %v925 = vpack.c.b16 %v914, %v913
        %v926 = vpack.c.b16 %v916, %v915
        %v927 = vpack.c.b16 %v918, %v917
        %v928 = vpack.c.b16 %v920, %v919
        %v929 = vpack.c.b16 %v922, %v921
        %v930 = vpack.c.b16 %v924, %v923
        %v938 = vsel %vm803, %v886, 0
        %940 = vmatpush.bf16.msra.mxu0 0
        %941 = vmatpush.bf16.msra.mxu0 0
        %942 = vmatpush.bf16.msra.mxu0 %v930
        %943 = vmatpush.bf16.msra.mxu0 %v929
        %944 = vmatpush.bf16.msra.mxu0 %v928
        %945 = vmatpush.bf16.msra.mxu0 %v927
        %946 = vmatpush.bf16.msra.mxu0 %v926
        %947 = vmatpush.bf16.msra.mxu0 %v925
        %948 = vmatmul.bf16.gmra.mxu0 %v938
        %v949 = vpop.f32.mrf.mxu0
        %v950 = vadd.f32 %v900, %v949
        %v951 = vpop.f32.mrf.mxu0
        %v952 = vadd.f32 %v900, %v951
        %953 = vdwg.mxu0
        %v954 = vmax.f32 %v950, 0.0
        %v955 = vmax.f32 %v952, 0.0
        %v956 = vpack.c.bf16 %v955, %v954
        %v957 = vld [vmem:[%s1 + $0x88] sm:$0xf]
        %v958 = vld [vmem:[%s1 + $0x8c] sm:$0xf]
        %v959 = vld [vmem:[%s1 + $0x90] sm:$0xf]
        %v960 = vld [vmem:[%s1 + $0x94] sm:$0xf]
        %v961 = vld [vmem:[%s3 + $0x20] sm:$0x1]
        %v962 = vperm.slane %v961, 0
        %v967 = vunpack.c.l.b16 %v957
        %v968 = vunpack.c.l.b16 %v958
        %v969 = vunpack.c.l.b16 %v959
        %v970 = vunpack.c.l.b16 %v960
        %v971 = vpack.c.b16 %v968, %v967
        %v972 = vpack.c.b16 %v970, %v969
        %v976 = vsel %vm526, %v956, 0
        %978 = vmatpush.bf16.msra.mxu0 0
        %979 = vmatpush.bf16.msra.mxu0 0
        %980 = vmatpush.bf16.msra.mxu0 0
        %981 = vmatpush.bf16.msra.mxu0 0
        %982 = vmatpush.bf16.msra.mxu0 0
        %983 = vmatpush.bf16.msra.mxu0 0
        %984 = vmatpush.bf16.msra.mxu0 %v972
        %985 = vmatpush.bf16.msra.mxu0 %v971
        %986 = vmatmul.bf16.gmra.mxu0 %v976
        %v987 = vpop.f32.mrf.mxu0
        %v988 = vadd.f32 %v962, %v987
        %v989 = vpop.f32.mrf.mxu0
        %v990 = vadd.f32 %v962, %v989
        %991 = vdwg.mxu0
        %v992 = vadd.f32 %v988, %v657
        %v993 = vadd.f32 %v990, %v658
        %v994 = vpack.c.bf16 %v993, %v992
        %995 = vmatpush.bf16.msra.mxu0 0
        %996 = vmatpush.bf16.msra.mxu0 0
        %997 = vmatpush.bf16.msra.mxu0 0
        %998 = vmatpush.bf16.msra.mxu0 0
        %999 = vmatpush.bf16.msra.mxu0 0
        %1000 = vmatpush.bf16.msra.mxu0 0
        %1001 = vmatpush.bf16.msra.mxu0 0
        %1002 = vmatpush.bf16.msra.mxu0 %v994
        %1003 = vmatmul.bf16.gmra.mxu0 %v668
        %v1004 = vpop.f32.mrf.mxu0
        %v1005 = vadd.f32 0.0, %v1004
        %v1006 = vpop.f32.mrf.mxu0
        %v1007 = vadd.f32 0.0, %v1006
        %1008 = vdwg.mxu0
        %1009 = vmatpush.bf16.msra.mxu0 0
        %1010 = vmatpush.bf16.msra.mxu0 0
        %1011 = vmatpush.bf16.msra.mxu0 0
        %1012 = vmatpush.bf16.msra.mxu0 0
        %1013 = vmatpush.bf16.msra.mxu0 0
        %1014 = vmatpush.bf16.msra.mxu0 0
        %1015 = vmatpush.bf16.msra.mxu0 0
        %1016 = vmatpush.bf16.msra.mxu0 %v994
        %1017 = vmatmul.bf16.gmra.mxu0 %v692
        %v1018 = vpop.f32.mrf.mxu0
        %v1019 = vadd.f32 0.0, %v1018
        %v1020 = vpop.f32.mrf.mxu0
        %v1021 = vadd.f32 0.0, %v1020
        %1022 = vdwg.mxu0
        %1023 = vmatpush.bf16.msra.mxu0 0
        %1024 = vmatpush.bf16.msra.mxu0 0
        %1025 = vmatpush.bf16.msra.mxu0 0
        %1026 = vmatpush.bf16.msra.mxu0 0
        %1027 = vmatpush.bf16.msra.mxu0 0
        %1028 = vmatpush.bf16.msra.mxu0 0
        %1029 = vmatpush.bf16.msra.mxu0 0
        %1030 = vmatpush.bf16.msra.mxu0 %v994
        %1031 = vmatmul.bf16.gmra.mxu0 %v716
        %v1032 = vpop.f32.mrf.mxu0
        %v1033 = vadd.f32 0.0, %v1032
        %v1034 = vpop.f32.mrf.mxu0
        %v1035 = vadd.f32 0.0, %v1034
        %1036 = vdwg.mxu0
        %1039 = vrot.lane.b32.xlu0 %v1019, 32
        %v1040 = vpop.permute.xlu0 %1039
        %1041 = vrot.lane.b32.xlu0 %v1021, 32
        %v1042 = vpop.permute.xlu0 %1041
        %1047 = vrot.lane.b32.xlu0 %v1033, 64
        %v1048 = vpop.permute.xlu0 %1047
        %1049 = vrot.lane.b32.xlu0 %v1035, 64
        %v1050 = vpop.permute.xlu0 %1049
        %v1053 = vsel %vm526, %v1005, %v1040
        %v1054 = vsel %vm526, %v1007, %v1042
        %v1055 = vsel %vm321, %v1053, %v1048
        %v1056 = vsel %vm321, %v1054, %v1050
        %v1057 = vpack.c.bf16 %v1056, %v1055
        %v1058 = vld [vmem:[%s1 + $0x98] sm:$0xf]
        %v1059 = vld [vmem:[%s1 + $0x9c] sm:$0xf]
        %v1060 = vld [vmem:[%s1 + $0xa0] sm:$0xf]
        %v1061 = vld [vmem:[%s1 + $0xa4] sm:$0xf]
        %v1062 = vld [vmem:[%s1 + $0xa8] sm:$0xf]
        %v1063 = vld [vmem:[%s1 + $0xac] sm:$0xf]
        %v1064 = vld [vmem:[%s1 + $0xb0] sm:$0xf]
        %v1065 = vld [vmem:[%s1 + $0xb4] sm:$0xf]
        %v1066 = vld [vmem:[%s1 + $0xb8] sm:$0xf]
        %v1067 = vld [vmem:[%s1 + $0xbc] sm:$0xf]
        %v1068 = vld [vmem:[%s1 + $0xc0] sm:$0xf]
        %v1069 = vld [vmem:[%s1 + $0xc4] sm:$0xf]
        %v1070 = vld [vmem:[%s3 + $0x28] sm:$0x1]
        %v1071 = vperm.slane %v1070, 0
        %v1084 = vunpack.c.l.b16 %v1058
        %v1085 = vunpack.c.l.b16 %v1059
        %v1086 = vunpack.c.l.b16 %v1060
        %v1087 = vunpack.c.l.b16 %v1061
        %v1088 = vunpack.c.l.b16 %v1062
        %v1089 = vunpack.c.l.b16 %v1063
        %v1090 = vunpack.c.l.b16 %v1064
        %v1091 = vunpack.c.l.b16 %v1065
        %v1092 = vunpack.c.l.b16 %v1066
        %v1093 = vunpack.c.l.b16 %v1067
        %v1094 = vunpack.c.l.b16 %v1068
        %v1095 = vunpack.c.l.b16 %v1069
        %v1096 = vpack.c.b16 %v1085, %v1084
        %v1097 = vpack.c.b16 %v1087, %v1086
        %v1098 = vpack.c.b16 %v1089, %v1088
        %v1099 = vpack.c.b16 %v1091, %v1090
        %v1100 = vpack.c.b16 %v1093, %v1092
        %v1101 = vpack.c.b16 %v1095, %v1094
        %v1109 = vsel %vm803, %v1057, 0
        %1111 = vmatpush.bf16.msra.mxu0 0
        %1112 = vmatpush.bf16.msra.mxu0 0
        %1113 = vmatpush.bf16.msra.mxu0 %v1101
        %1114 = vmatpush.bf16.msra.mxu0 %v1100
        %1115 = vmatpush.bf16.msra.mxu0 %v1099
        %1116 = vmatpush.bf16.msra.mxu0 %v1098
        %1117 = vmatpush.bf16.msra.mxu0 %v1097
        %1118 = vmatpush.bf16.msra.mxu0 %v1096
        %1119 = vmatmul.bf16.gmra.mxu0 %v1109
        %v1120 = vpop.f32.mrf.mxu0
        %v1121 = vadd.f32 %v1071, %v1120
        %v1122 = vpop.f32.mrf.mxu0
        %v1123 = vadd.f32 %v1071, %v1122
        %1124 = vdwg.mxu0
        %v1125 = vmax.f32 %v1121, 0.0
        %v1126 = vmax.f32 %v1123, 0.0
        %v1127 = vpack.c.bf16 %v1126, %v1125
        %1128 = vmatpush.bf16.msra.mxu0 0
        %1129 = vmatpush.bf16.msra.mxu0 0
        %1130 = vmatpush.bf16.msra.mxu0 0
        %1131 = vmatpush.bf16.msra.mxu0 0
        %1132 = vmatpush.bf16.msra.mxu0 0
        %1133 = vmatpush.bf16.msra.mxu0 0
        %1134 = vmatpush.bf16.msra.mxu0 0
        %1135 = vmatpush.bf16.msra.mxu0 %v1127
        %1136 = vmatmul.bf16.gmra.mxu0 %v668
        %v1137 = vpop.f32.mrf.mxu0
        %v1138 = vadd.f32 0.0, %v1137
        %v1139 = vpop.f32.mrf.mxu0
        %v1140 = vadd.f32 0.0, %v1139
        %1141 = vdwg.mxu0
        %1142 = vmatpush.bf16.msra.mxu0 0
        %1143 = vmatpush.bf16.msra.mxu0 0
        %1144 = vmatpush.bf16.msra.mxu0 0
        %1145 = vmatpush.bf16.msra.mxu0 0
        %1146 = vmatpush.bf16.msra.mxu0 0
        %1147 = vmatpush.bf16.msra.mxu0 0
        %1148 = vmatpush.bf16.msra.mxu0 0
        %1149 = vmatpush.bf16.msra.mxu0 %v1127
        %1150 = vmatmul.bf16.gmra.mxu0 %v692
        %v1151 = vpop.f32.mrf.mxu0
        %v1152 = vadd.f32 0.0, %v1151
        %v1153 = vpop.f32.mrf.mxu0
        %v1154 = vadd.f32 0.0, %v1153
        %1155 = vdwg.mxu0
        %1156 = vmatpush.bf16.msra.mxu0 0
        %1157 = vmatpush.bf16.msra.mxu0 0
        %1158 = vmatpush.bf16.msra.mxu0 0
        %1159 = vmatpush.bf16.msra.mxu0 0
        %1160 = vmatpush.bf16.msra.mxu0 0
        %1161 = vmatpush.bf16.msra.mxu0 0
        %1162 = vmatpush.bf16.msra.mxu0 0
        %1163 = vmatpush.bf16.msra.mxu0 %v1127
        %1164 = vmatmul.bf16.gmra.mxu0 %v716
        %v1165 = vpop.f32.mrf.mxu0
        %v1166 = vadd.f32 0.0, %v1165
        %v1167 = vpop.f32.mrf.mxu0
        %v1168 = vadd.f32 0.0, %v1167
        %1169 = vdwg.mxu0
        %1172 = vrot.lane.b32.xlu0 %v1152, 32
        %v1173 = vpop.permute.xlu0 %1172
        %1174 = vrot.lane.b32.xlu0 %v1154, 32
        %v1175 = vpop.permute.xlu0 %1174
        %1180 = vrot.lane.b32.xlu0 %v1166, 64
        %v1181 = vpop.permute.xlu0 %1180
        %1182 = vrot.lane.b32.xlu0 %v1168, 64
        %v1183 = vpop.permute.xlu0 %1182
        %v1186 = vsel %vm526, %v1138, %v1173
        %v1187 = vsel %vm526, %v1140, %v1175
        %v1188 = vsel %vm321, %v1186, %v1181
        %v1189 = vsel %vm321, %v1187, %v1183
        %v1190 = vpack.c.bf16 %v1189, %v1188
        %v1191 = vld [vmem:[%s1 + $0xc8] sm:$0xf]
        %v1192 = vld [vmem:[%s1 + $0xcc] sm:$0xf]
        %v1193 = vld [vmem:[%s1 + $0xd0] sm:$0xf]
        %v1194 = vld [vmem:[%s1 + $0xd4] sm:$0xf]
        %v1195 = vld [vmem:[%s1 + $0xd8] sm:$0xf]
        %v1196 = vld [vmem:[%s1 + $0xdc] sm:$0xf]
        %v1197 = vld [vmem:[%s1 + $0xe0] sm:$0xf]
        %v1198 = vld [vmem:[%s1 + $0xe4] sm:$0xf]
        %v1199 = vld [vmem:[%s1 + $0xe8] sm:$0xf]
        %v1200 = vld [vmem:[%s1 + $0xec] sm:$0xf]
        %v1201 = vld [vmem:[%s1 + $0xf0] sm:$0xf]
        %v1202 = vld [vmem:[%s1 + $0xf4] sm:$0xf]
        %v1203 = vld [vmem:[%s3 + $0x30] sm:$0x1]
        %v1204 = vperm.slane %v1203, 0
        %v1217 = vunpack.c.l.b16 %v1191
        %v1218 = vunpack.c.l.b16 %v1192
        %v1219 = vunpack.c.l.b16 %v1193
        %v1220 = vunpack.c.l.b16 %v1194
        %v1221 = vunpack.c.l.b16 %v1195
        %v1222 = vunpack.c.l.b16 %v1196
        %v1223 = vunpack.c.l.b16 %v1197
        %v1224 = vunpack.c.l.b16 %v1198
        %v1225 = vunpack.c.l.b16 %v1199
        %v1226 = vunpack.c.l.b16 %v1200
        %v1227 = vunpack.c.l.b16 %v1201
        %v1228 = vunpack.c.l.b16 %v1202
        %v1229 = vpack.c.b16 %v1218, %v1217
        %v1230 = vpack.c.b16 %v1220, %v1219
        %v1231 = vpack.c.b16 %v1222, %v1221
        %v1232 = vpack.c.b16 %v1224, %v1223
        %v1233 = vpack.c.b16 %v1226, %v1225
        %v1234 = vpack.c.b16 %v1228, %v1227
        %v1242 = vsel %vm803, %v1190, 0
        %1244 = vmatpush.bf16.msra.mxu0 0
        %1245 = vmatpush.bf16.msra.mxu0 0
        %1246 = vmatpush.bf16.msra.mxu0 %v1234
        %1247 = vmatpush.bf16.msra.mxu0 %v1233
        %1248 = vmatpush.bf16.msra.mxu0 %v1232
        %1249 = vmatpush.bf16.msra.mxu0 %v1231
        %1250 = vmatpush.bf16.msra.mxu0 %v1230
        %1251 = vmatpush.bf16.msra.mxu0 %v1229
        %1252 = vmatmul.bf16.gmra.mxu0 %v1242
        %v1253 = vpop.f32.mrf.mxu0
        %v1254 = vadd.f32 %v1204, %v1253
        %v1255 = vpop.f32.mrf.mxu0
        %v1256 = vadd.f32 %v1204, %v1255
        %1257 = vdwg.mxu0
        %v1258 = vmax.f32 %v1254, 0.0
        %v1259 = vmax.f32 %v1256, 0.0
        %v1260 = vpack.c.bf16 %v1259, %v1258
        %v1261 = vld [vmem:[%s1 + $0xf8] sm:$0xf]
        %v1262 = vld [vmem:[%s1 + $0xfc] sm:$0xf]
        %v1263 = vld [vmem:[%s1 + $0x100] sm:$0xf]
        %v1264 = vld [vmem:[%s1 + $0x104] sm:$0xf]
        %v1265 = vld [vmem:[%s3 + $0x38] sm:$0x1]
        %v1266 = vperm.slane %v1265, 0
        %v1271 = vunpack.c.l.b16 %v1261
        %v1272 = vunpack.c.l.b16 %v1262
        %v1273 = vunpack.c.l.b16 %v1263
        %v1274 = vunpack.c.l.b16 %v1264
        %v1275 = vpack.c.b16 %v1272, %v1271
        %v1276 = vpack.c.b16 %v1274, %v1273
        %v1280 = vsel %vm526, %v1260, 0
        %1282 = vmatpush.bf16.msra.mxu0 0
        %1283 = vmatpush.bf16.msra.mxu0 0
        %1284 = vmatpush.bf16.msra.mxu0 0
        %1285 = vmatpush.bf16.msra.mxu0 0
        %1286 = vmatpush.bf16.msra.mxu0 0
        %1287 = vmatpush.bf16.msra.mxu0 0
        %1288 = vmatpush.bf16.msra.mxu0 %v1276
        %1289 = vmatpush.bf16.msra.mxu0 %v1275
        %1290 = vmatmul.bf16.gmra.mxu0 %v1280
        %v1291 = vpop.f32.mrf.mxu0
        %v1292 = vadd.f32 %v1266, %v1291
        %v1293 = vpop.f32.mrf.mxu0
        %v1294 = vadd.f32 %v1266, %v1293
        %1295 = vdwg.mxu0
        %v1296 = vadd.f32 %v1292, %v992
        %v1297 = vadd.f32 %v1294, %v993
        %v1298 = vpack.c.bf16 %v1297, %v1296
        %v1299 = vld [vmem:[%s1 + $0x108] sm:$0xf]
        %v1300 = vld [vmem:[%s1 + $0x10c] sm:$0xf]
        %v1301 = vld [vmem:[%s1 + $0x110] sm:$0xf]
        %v1302 = vld [vmem:[%s1 + $0x114] sm:$0xf]
        %v1303 = vld [vmem:[%s3 + $0x40] sm:$0x1]
        %v1304 = vperm.slane %v1303, 0
        %v1309 = vunpack.c.l.b16 %v1299
        %v1310 = vunpack.c.l.b16 %v1300
        %v1311 = vunpack.c.l.b16 %v1301
        %v1312 = vunpack.c.l.b16 %v1302
        %v1313 = vpack.c.b16 %v1310, %v1309
        %v1314 = vpack.c.b16 %v1312, %v1311
        %v1318 = vsel %vm526, %v1298, 0
        %1320 = vmatpush.bf16.msra.mxu0 0
        %1321 = vmatpush.bf16.msra.mxu0 0
        %1322 = vmatpush.bf16.msra.mxu0 0
        %1323 = vmatpush.bf16.msra.mxu0 0
        %1324 = vmatpush.bf16.msra.mxu0 0
        %1325 = vmatpush.bf16.msra.mxu0 0
        %1326 = vmatpush.bf16.msra.mxu0 %v1314
        %1327 = vmatpush.bf16.msra.mxu0 %v1313
        %1328 = vmatmul.bf16.gmra.mxu0 %v1318
        %v1329 = vpop.f32.mrf.mxu0
        %v1330 = vadd.f32 %v1304, %v1329
        %v1331 = vpop.f32.mrf.mxu0
        %v1332 = vadd.f32 %v1304, %v1331
        %1333 = vdwg.mxu0
        %v1334 = vpack.c.bf16 %v1332, %v1330
        %v1335 = vld [vmem:[%s1 + $0x270] sm:$0xf]
        %v1336 = vld [vmem:[%s1 + $0x274] sm:$0xf]
        %v1337 = vld [vmem:[%s1 + $0x278] sm:$0xf]
        %v1341 = vunpack.c.l.b16 %v1335
        %v1342 = vunpack.c.l.b16 %v1336
        %v1343 = vunpack.c.l.b16 %v1337
        %v1344 = vpack.c.b16 %v1342, %v1341
        %v1345 = vpack.c.b16 %v1343, %v1343
        %v1348 = vsel %vm483, %v1334, 0
        %v1351 = vsel %vm490, %v1345, 0
        %1353 = vmatpush.bf16.msra.mxu0 0
        %1354 = vmatpush.bf16.msra.mxu0 0
        %1355 = vmatpush.bf16.msra.mxu0 0
        %1356 = vmatpush.bf16.msra.mxu0 0
        %1357 = vmatpush.bf16.msra.mxu0 0
        %1358 = vmatpush.bf16.msra.mxu0 0
        %1359 = vmatpush.bf16.msra.mxu0 %v1351
        %1360 = vmatpush.bf16.msra.mxu0 %v1344
        %1361 = vmatmul.bf16.gmra.mxu0 %v1348
        %v1362 = vpop.f32.mrf.mxu0
        %v1363 = vadd.f32 0.0, %v1362
        %v1364 = vpop.f32.mrf.mxu0
        %v1365 = vadd.f32 0.0, %v1364
        %1366 = vdwg.mxu0
        %v1367 = vmul.f32 %v1330, %v1330
        %v1368 = vmul.f32 %v1332, %v1332
        %v1369 = vsel %vm483, %v1367, 0.0
        %1370 = vadd.xlane.f32.xlu0 %v1369
        %v1371 = vpop.xlane.xlu0 %1370
        %v1372 = vsel %vm483, %v1368, 0.0
        %1373 = vadd.xlane.f32.xlu0 %v1372
        %v1374 = vpop.xlane.xlu0 %1373
        %v1375 = vmul.f32 %v1363, 2.0
        %v1376 = vmul.f32 %v1365, 2.0
        %v1377 = vsub.f32 %v1375, %v1371
        %v1378 = vsub.f32 %v1376, %v1374
        %v1379 = vld [vmem:[%s3 + $0x98] sm:$0x1]
        %v1380 = vperm.slane %v1379, 0
        %v1381 = vsub.f32 %v1377, %v1380
        %v1382 = vsub.f32 %v1378, %v1380
        %v1383 = vsel %vm321, %v1381, -inf
        %1384 = vmax.xlane.f32.xlu0 %v1383
        %v1385 = vpop.xlane.xlu0 %1384
        %v1386 = vsel %vm321, %v1382, -inf
        %1387 = vmax.xlane.f32.xlu0 %v1386
        %v1388 = vpop.xlane.xlu0 %1387
        %v1389 = vlaneseq
        %v1390 = vand.u32 %v1389, 127
        %vm1391 = vcmp.eq.f32.partialorder %v1381, %v1385
        %vm1392 = vcmp.eq.f32.partialorder %v1382, %v1388
        %v1393 = vsel %vm1391, %v1390, 64
        %v1394 = vsel %vm1392, %v1390, 64
        %v1395 = vsel %vm321, %v1393, 2147483647
        %v1396 = vand.u32 %v1395, 65535
        %v1397 = vshra.s32 %v1395, 16
        %v1398 = vcvt.s32.f32 %v1396
        %v1399 = vcvt.s32.f32 %v1397
        %1400 = vmin.xlane.f32.xlu0 %v1399
        %v1401 = vpop.xlane.xlu0 %1400
        %vm1402 = vcmp.eq.f32.partialorder %v1399, %v1401
        %v1403 = vsel %vm1402, %v1398, inf
        %1404 = vmin.xlane.f32.xlu0 %v1403
        %v1405 = vpop.xlane.xlu0 %1404
        %v1406 = vcvt.f32.s32 %v1405
        %v1407 = vcvt.f32.s32 %v1401
        %v1408 = vshll.u32 %v1407, 16
        %v1409 = vadd.s32 %v1408, %v1406
        %v1410 = vsel %vm321, %v1394, 2147483647
        %v1411 = vand.u32 %v1410, 65535
        %v1412 = vshra.s32 %v1410, 16
        %v1413 = vcvt.s32.f32 %v1411
        %v1414 = vcvt.s32.f32 %v1412
        %1415 = vmin.xlane.f32.xlu0 %v1414
        %v1416 = vpop.xlane.xlu0 %1415
        %vm1417 = vcmp.eq.f32.partialorder %v1414, %v1416
        %v1418 = vsel %vm1417, %v1413, inf
        %1419 = vmin.xlane.f32.xlu0 %v1418
        %v1420 = vpop.xlane.xlu0 %1419
        %v1421 = vcvt.f32.s32 %v1420
        %v1422 = vcvt.f32.s32 %v1416
        %v1423 = vshll.u32 %v1422, 16
        %v1424 = vadd.s32 %v1423, %v1421
        %vm1425 = vcmp.eq.s32.totalorder %v1390, %v1409
        %vm1426 = vcmp.eq.s32.totalorder %v1390, %v1424
        %v1427 = vsel %vm1425, 1, 0
        %v1428 = vsel %vm1426, 1, 0
        %v1429 = vcvt.s32.f32 %v1427
        %v1430 = vcvt.s32.f32 %v1428
        %v1431 = vpack.c.bf16 %v1430, %v1429
        %v1432 = vld [vmem:[%s1 + $0x280] sm:$0xf]
        %v1433 = vld [vmem:[%s1 + $0x284] sm:$0xf]
        %v1434 = vld [vmem:[%s1 + $0x288] sm:$0xf]
        %v1435 = vld [vmem:[%s1 + $0x28c] sm:$0xf]
        %v1436 = vld [vmem:[%s1 + $0x290] sm:$0xf]
        %v1437 = vld [vmem:[%s1 + $0x294] sm:$0xf]
        %v1438 = vld [vmem:[%s1 + $0x298] sm:$0xf]
        %v1439 = vld [vmem:[%s1 + $0x29c] sm:$0xf]
        %v1448 = vunpack.c.l.b16 %v1432
        %v1449 = vunpack.c.l.b16 %v1433
        %v1450 = vunpack.c.l.b16 %v1434
        %v1451 = vunpack.c.l.b16 %v1435
        %v1452 = vunpack.c.l.b16 %v1436
        %v1453 = vunpack.c.l.b16 %v1437
        %v1454 = vunpack.c.l.b16 %v1438
        %v1455 = vunpack.c.l.b16 %v1439
        %v1456 = vpack.c.b16 %v1449, %v1448
        %v1457 = vpack.c.b16 %v1451, %v1450
        %v1458 = vpack.c.b16 %v1453, %v1452
        %v1459 = vpack.c.b16 %v1455, %v1454
        %v1465 = vsel %vm321, %v1431, 0
        %1467 = vmatpush.bf16.msra.mxu0 0
        %1468 = vmatpush.bf16.msra.mxu0 0
        %1469 = vmatpush.bf16.msra.mxu0 0
        %1470 = vmatpush.bf16.msra.mxu0 0
        %1471 = vmatpush.bf16.msra.mxu0 %v1459
        %1472 = vmatpush.bf16.msra.mxu0 %v1458
        %1473 = vmatpush.bf16.msra.mxu0 %v1457
        %1474 = vmatpush.bf16.msra.mxu0 %v1456
        %1475 = vmatmul.bf16.gmra.mxu0 %v1465
        %v1476 = vpop.f32.mrf.mxu0
        %v1477 = vadd.f32 0.0, %v1476
        %v1478 = vpop.f32.mrf.mxu0
        %v1479 = vadd.f32 0.0, %v1478
        %1480 = vdwg.mxu0
        %v1481 = vsub.f32 %v1477, %v1330
        %v1482 = vsub.f32 %v1479, %v1332
        %v1483 = vmul.f32 %v1481, %v1481
        %v1484 = vmul.f32 %v1482, %v1482
        %v1485 = vsel %vm483, %v1483, 0.0
        %v1486 = vsel %vm483, %v1484, 0.0
        %v1487 = vadd.f32 %v1485, %v1486
        %1488 = vadd.xlane.f32.xlu0 %v1487
        %v1489 = vpop.xlane.xlu0 %1488
        %v1490 = vrot.slane %v1489, 4
        %v1491 = vadd.f32 %v1489, %v1490
        %v1492 = vrot.slane %v1491, 2
        %v1493 = vadd.f32 %v1491, %v1492
        %v1494 = vrot.slane %v1493, 1
        %v1495 = vadd.f32 %v1493, %v1494
        %s1496 = vtos %v1495
        %v1497 = vpack.c.bf16 %v1479, %v1477
        %v1498 = vld [vmem:[%s1 + $0x118] sm:$0xf]
        %v1499 = vld [vmem:[%s1 + $0x11c] sm:$0xf]
        %v1500 = vld [vmem:[%s1 + $0x120] sm:$0xf]
        %v1501 = vld [vmem:[%s3 + $0x48] sm:$0x1]
        %v1502 = vperm.slane %v1501, 0
        %v1506 = vunpack.c.l.b16 %v1498
        %v1507 = vunpack.c.l.b16 %v1499
        %v1508 = vunpack.c.l.b16 %v1500
        %v1509 = vpack.c.b16 %v1507, %v1506
        %v1510 = vpack.c.b16 %v1508, %v1508
        %v1513 = vsel %vm483, %v1497, 0
        %v1516 = vsel %vm490, %v1510, 0
        %1518 = vmatpush.bf16.msra.mxu0 0
        %1519 = vmatpush.bf16.msra.mxu0 0
        %1520 = vmatpush.bf16.msra.mxu0 0
        %1521 = vmatpush.bf16.msra.mxu0 0
        %1522 = vmatpush.bf16.msra.mxu0 0
        %1523 = vmatpush.bf16.msra.mxu0 0
        %1524 = vmatpush.bf16.msra.mxu0 %v1516
        %1525 = vmatpush.bf16.msra.mxu0 %v1509
        %1526 = vmatmul.bf16.gmra.mxu0 %v1513
        %v1527 = vpop.f32.mrf.mxu0
        %v1528 = vadd.f32 %v1502, %v1527
        %v1529 = vpop.f32.mrf.mxu0
        %v1530 = vadd.f32 %v1502, %v1529
        %1531 = vdwg.mxu0
        %v1532 = vpack.c.bf16 %v1530, %v1528
        %1533 = vmatpush.bf16.msra.mxu0 0
        %1534 = vmatpush.bf16.msra.mxu0 0
        %1535 = vmatpush.bf16.msra.mxu0 0
        %1536 = vmatpush.bf16.msra.mxu0 0
        %1537 = vmatpush.bf16.msra.mxu0 0
        %1538 = vmatpush.bf16.msra.mxu0 0
        %1539 = vmatpush.bf16.msra.mxu0 0
        %1540 = vmatpush.bf16.msra.mxu0 %v1532
        %1541 = vmatmul.bf16.gmra.mxu0 %v668
        %v1542 = vpop.f32.mrf.mxu0
        %v1543 = vadd.f32 0.0, %v1542
        %v1544 = vpop.f32.mrf.mxu0
        %v1545 = vadd.f32 0.0, %v1544
        %1546 = vdwg.mxu0
        %1547 = vmatpush.bf16.msra.mxu0 0
        %1548 = vmatpush.bf16.msra.mxu0 0
        %1549 = vmatpush.bf16.msra.mxu0 0
        %1550 = vmatpush.bf16.msra.mxu0 0
        %1551 = vmatpush.bf16.msra.mxu0 0
        %1552 = vmatpush.bf16.msra.mxu0 0
        %1553 = vmatpush.bf16.msra.mxu0 0
        %1554 = vmatpush.bf16.msra.mxu0 %v1532
        %1555 = vmatmul.bf16.gmra.mxu0 %v692
        %v1556 = vpop.f32.mrf.mxu0
        %v1557 = vadd.f32 0.0, %v1556
        %v1558 = vpop.f32.mrf.mxu0
        %v1559 = vadd.f32 0.0, %v1558
        %1560 = vdwg.mxu0
        %1561 = vmatpush.bf16.msra.mxu0 0
        %1562 = vmatpush.bf16.msra.mxu0 0
        %1563 = vmatpush.bf16.msra.mxu0 0
        %1564 = vmatpush.bf16.msra.mxu0 0
        %1565 = vmatpush.bf16.msra.mxu0 0
        %1566 = vmatpush.bf16.msra.mxu0 0
        %1567 = vmatpush.bf16.msra.mxu0 0
        %1568 = vmatpush.bf16.msra.mxu0 %v1532
        %1569 = vmatmul.bf16.gmra.mxu0 %v716
        %v1570 = vpop.f32.mrf.mxu0
        %v1571 = vadd.f32 0.0, %v1570
        %v1572 = vpop.f32.mrf.mxu0
        %v1573 = vadd.f32 0.0, %v1572
        %1574 = vdwg.mxu0
        %1577 = vrot.lane.b32.xlu0 %v1557, 32
        %v1578 = vpop.permute.xlu0 %1577
        %1579 = vrot.lane.b32.xlu0 %v1559, 32
        %v1580 = vpop.permute.xlu0 %1579
        %1585 = vrot.lane.b32.xlu0 %v1571, 64
        %v1586 = vpop.permute.xlu0 %1585
        %1587 = vrot.lane.b32.xlu0 %v1573, 64
        %v1588 = vpop.permute.xlu0 %1587
        %v1591 = vsel %vm526, %v1543, %v1578
        %v1592 = vsel %vm526, %v1545, %v1580
        %v1593 = vsel %vm321, %v1591, %v1586
        %v1594 = vsel %vm321, %v1592, %v1588
        %v1595 = vpack.c.bf16 %v1594, %v1593
        %v1596 = vld [vmem:[%s1 + $0x128] sm:$0xf]
        %v1597 = vld [vmem:[%s1 + $0x12c] sm:$0xf]
        %v1598 = vld [vmem:[%s1 + $0x130] sm:$0xf]
        %v1599 = vld [vmem:[%s1 + $0x134] sm:$0xf]
        %v1600 = vld [vmem:[%s1 + $0x138] sm:$0xf]
        %v1601 = vld [vmem:[%s1 + $0x13c] sm:$0xf]
        %v1602 = vld [vmem:[%s1 + $0x140] sm:$0xf]
        %v1603 = vld [vmem:[%s1 + $0x144] sm:$0xf]
        %v1604 = vld [vmem:[%s1 + $0x148] sm:$0xf]
        %v1605 = vld [vmem:[%s1 + $0x14c] sm:$0xf]
        %v1606 = vld [vmem:[%s1 + $0x150] sm:$0xf]
        %v1607 = vld [vmem:[%s1 + $0x154] sm:$0xf]
        %v1608 = vld [vmem:[%s3 + $0x50] sm:$0x1]
        %v1609 = vperm.slane %v1608, 0
        %v1622 = vunpack.c.l.b16 %v1596
        %v1623 = vunpack.c.l.b16 %v1597
        %v1624 = vunpack.c.l.b16 %v1598
        %v1625 = vunpack.c.l.b16 %v1599
        %v1626 = vunpack.c.l.b16 %v1600
        %v1627 = vunpack.c.l.b16 %v1601
        %v1628 = vunpack.c.l.b16 %v1602
        %v1629 = vunpack.c.l.b16 %v1603
        %v1630 = vunpack.c.l.b16 %v1604
        %v1631 = vunpack.c.l.b16 %v1605
        %v1632 = vunpack.c.l.b16 %v1606
        %v1633 = vunpack.c.l.b16 %v1607
        %v1634 = vpack.c.b16 %v1623, %v1622
        %v1635 = vpack.c.b16 %v1625, %v1624
        %v1636 = vpack.c.b16 %v1627, %v1626
        %v1637 = vpack.c.b16 %v1629, %v1628
        %v1638 = vpack.c.b16 %v1631, %v1630
        %v1639 = vpack.c.b16 %v1633, %v1632
        %v1647 = vsel %vm803, %v1595, 0
        %1649 = vmatpush.bf16.msra.mxu0 0
        %1650 = vmatpush.bf16.msra.mxu0 0
        %1651 = vmatpush.bf16.msra.mxu0 %v1639
        %1652 = vmatpush.bf16.msra.mxu0 %v1638
        %1653 = vmatpush.bf16.msra.mxu0 %v1637
        %1654 = vmatpush.bf16.msra.mxu0 %v1636
        %1655 = vmatpush.bf16.msra.mxu0 %v1635
        %1656 = vmatpush.bf16.msra.mxu0 %v1634
        %1657 = vmatmul.bf16.gmra.mxu0 %v1647
        %v1658 = vpop.f32.mrf.mxu0
        %v1659 = vadd.f32 %v1609, %v1658
        %v1660 = vpop.f32.mrf.mxu0
        %v1661 = vadd.f32 %v1609, %v1660
        %1662 = vdwg.mxu0
        %v1663 = vmax.f32 %v1659, 0.0
        %v1664 = vmax.f32 %v1661, 0.0
        %v1665 = vpack.c.bf16 %v1664, %v1663
        %1666 = vmatpush.bf16.msra.mxu0 0
        %1667 = vmatpush.bf16.msra.mxu0 0
        %1668 = vmatpush.bf16.msra.mxu0 0
        %1669 = vmatpush.bf16.msra.mxu0 0
        %1670 = vmatpush.bf16.msra.mxu0 0
        %1671 = vmatpush.bf16.msra.mxu0 0
        %1672 = vmatpush.bf16.msra.mxu0 0
        %1673 = vmatpush.bf16.msra.mxu0 %v1665
        %1674 = vmatmul.bf16.gmra.mxu0 %v668
        %v1675 = vpop.f32.mrf.mxu0
        %v1676 = vadd.f32 0.0, %v1675
        %v1677 = vpop.f32.mrf.mxu0
        %v1678 = vadd.f32 0.0, %v1677
        %1679 = vdwg.mxu0
        %1680 = vmatpush.bf16.msra.mxu0 0
        %1681 = vmatpush.bf16.msra.mxu0 0
        %1682 = vmatpush.bf16.msra.mxu0 0
        %1683 = vmatpush.bf16.msra.mxu0 0
        %1684 = vmatpush.bf16.msra.mxu0 0
        %1685 = vmatpush.bf16.msra.mxu0 0
        %1686 = vmatpush.bf16.msra.mxu0 0
        %1687 = vmatpush.bf16.msra.mxu0 %v1665
        %1688 = vmatmul.bf16.gmra.mxu0 %v692
        %v1689 = vpop.f32.mrf.mxu0
        %v1690 = vadd.f32 0.0, %v1689
        %v1691 = vpop.f32.mrf.mxu0
        %v1692 = vadd.f32 0.0, %v1691
        %1693 = vdwg.mxu0
        %1694 = vmatpush.bf16.msra.mxu0 0
        %1695 = vmatpush.bf16.msra.mxu0 0
        %1696 = vmatpush.bf16.msra.mxu0 0
        %1697 = vmatpush.bf16.msra.mxu0 0
        %1698 = vmatpush.bf16.msra.mxu0 0
        %1699 = vmatpush.bf16.msra.mxu0 0
        %1700 = vmatpush.bf16.msra.mxu0 0
        %1701 = vmatpush.bf16.msra.mxu0 %v1665
        %1702 = vmatmul.bf16.gmra.mxu0 %v716
        %v1703 = vpop.f32.mrf.mxu0
        %v1704 = vadd.f32 0.0, %v1703
        %v1705 = vpop.f32.mrf.mxu0
        %v1706 = vadd.f32 0.0, %v1705
        %1707 = vdwg.mxu0
        %1710 = vrot.lane.b32.xlu0 %v1690, 32
        %v1711 = vpop.permute.xlu0 %1710
        %1712 = vrot.lane.b32.xlu0 %v1692, 32
        %v1713 = vpop.permute.xlu0 %1712
        %1718 = vrot.lane.b32.xlu0 %v1704, 64
        %v1719 = vpop.permute.xlu0 %1718
        %1720 = vrot.lane.b32.xlu0 %v1706, 64
        %v1721 = vpop.permute.xlu0 %1720
        %v1724 = vsel %vm526, %v1676, %v1711
        %v1725 = vsel %vm526, %v1678, %v1713
        %v1726 = vsel %vm321, %v1724, %v1719
        %v1727 = vsel %vm321, %v1725, %v1721
        %v1728 = vpack.c.bf16 %v1727, %v1726
        %v1729 = vld [vmem:[%s1 + $0x158] sm:$0xf]
        %v1730 = vld [vmem:[%s1 + $0x15c] sm:$0xf]
        %v1731 = vld [vmem:[%s1 + $0x160] sm:$0xf]
        %v1732 = vld [vmem:[%s1 + $0x164] sm:$0xf]
        %v1733 = vld [vmem:[%s1 + $0x168] sm:$0xf]
        %v1734 = vld [vmem:[%s1 + $0x16c] sm:$0xf]
        %v1735 = vld [vmem:[%s1 + $0x170] sm:$0xf]
        %v1736 = vld [vmem:[%s1 + $0x174] sm:$0xf]
        %v1737 = vld [vmem:[%s1 + $0x178] sm:$0xf]
        %v1738 = vld [vmem:[%s1 + $0x17c] sm:$0xf]
        %v1739 = vld [vmem:[%s1 + $0x180] sm:$0xf]
        %v1740 = vld [vmem:[%s1 + $0x184] sm:$0xf]
        %v1741 = vld [vmem:[%s3 + $0x58] sm:$0x1]
        %v1742 = vperm.slane %v1741, 0
        %v1755 = vunpack.c.l.b16 %v1729
        %v1756 = vunpack.c.l.b16 %v1730
        %v1757 = vunpack.c.l.b16 %v1731
        %v1758 = vunpack.c.l.b16 %v1732
        %v1759 = vunpack.c.l.b16 %v1733
        %v1760 = vunpack.c.l.b16 %v1734
        %v1761 = vunpack.c.l.b16 %v1735
        %v1762 = vunpack.c.l.b16 %v1736
        %v1763 = vunpack.c.l.b16 %v1737
        %v1764 = vunpack.c.l.b16 %v1738
        %v1765 = vunpack.c.l.b16 %v1739
        %v1766 = vunpack.c.l.b16 %v1740
        %v1767 = vpack.c.b16 %v1756, %v1755
        %v1768 = vpack.c.b16 %v1758, %v1757
        %v1769 = vpack.c.b16 %v1760, %v1759
        %v1770 = vpack.c.b16 %v1762, %v1761
        %v1771 = vpack.c.b16 %v1764, %v1763
        %v1772 = vpack.c.b16 %v1766, %v1765
        %v1780 = vsel %vm803, %v1728, 0
        %1782 = vmatpush.bf16.msra.mxu0 0
        %1783 = vmatpush.bf16.msra.mxu0 0
        %1784 = vmatpush.bf16.msra.mxu0 %v1772
        %1785 = vmatpush.bf16.msra.mxu0 %v1771
        %1786 = vmatpush.bf16.msra.mxu0 %v1770
        %1787 = vmatpush.bf16.msra.mxu0 %v1769
        %1788 = vmatpush.bf16.msra.mxu0 %v1768
        %1789 = vmatpush.bf16.msra.mxu0 %v1767
        %1790 = vmatmul.bf16.gmra.mxu0 %v1780
        %v1791 = vpop.f32.mrf.mxu0
        %v1792 = vadd.f32 %v1742, %v1791
        %v1793 = vpop.f32.mrf.mxu0
        %v1794 = vadd.f32 %v1742, %v1793
        %1795 = vdwg.mxu0
        %v1796 = vmax.f32 %v1792, 0.0
        %v1797 = vmax.f32 %v1794, 0.0
        %v1798 = vpack.c.bf16 %v1797, %v1796
        %v1799 = vld [vmem:[%s1 + $0x188] sm:$0xf]
        %v1800 = vld [vmem:[%s1 + $0x18c] sm:$0xf]
        %v1801 = vld [vmem:[%s1 + $0x190] sm:$0xf]
        %v1802 = vld [vmem:[%s1 + $0x194] sm:$0xf]
        %v1803 = vld [vmem:[%s3 + $0x60] sm:$0x1]
        %v1804 = vperm.slane %v1803, 0
        %v1809 = vunpack.c.l.b16 %v1799
        %v1810 = vunpack.c.l.b16 %v1800
        %v1811 = vunpack.c.l.b16 %v1801
        %v1812 = vunpack.c.l.b16 %v1802
        %v1813 = vpack.c.b16 %v1810, %v1809
        %v1814 = vpack.c.b16 %v1812, %v1811
        %v1818 = vsel %vm526, %v1798, 0
        %1820 = vmatpush.bf16.msra.mxu0 0
        %1821 = vmatpush.bf16.msra.mxu0 0
        %1822 = vmatpush.bf16.msra.mxu0 0
        %1823 = vmatpush.bf16.msra.mxu0 0
        %1824 = vmatpush.bf16.msra.mxu0 0
        %1825 = vmatpush.bf16.msra.mxu0 0
        %1826 = vmatpush.bf16.msra.mxu0 %v1814
        %1827 = vmatpush.bf16.msra.mxu0 %v1813
        %1828 = vmatmul.bf16.gmra.mxu0 %v1818
        %v1829 = vpop.f32.mrf.mxu0
        %v1830 = vadd.f32 %v1804, %v1829
        %v1831 = vpop.f32.mrf.mxu0
        %v1832 = vadd.f32 %v1804, %v1831
        %1833 = vdwg.mxu0
        %v1834 = vadd.f32 %v1830, %v1528
        %v1835 = vadd.f32 %v1832, %v1530
        %v1836 = vpack.c.bf16 %v1835, %v1834
        %1837 = vmatpush.bf16.msra.mxu0 0
        %1838 = vmatpush.bf16.msra.mxu0 0
        %1839 = vmatpush.bf16.msra.mxu0 0
        %1840 = vmatpush.bf16.msra.mxu0 0
        %1841 = vmatpush.bf16.msra.mxu0 0
        %1842 = vmatpush.bf16.msra.mxu0 0
        %1843 = vmatpush.bf16.msra.mxu0 0
        %1844 = vmatpush.bf16.msra.mxu0 %v1836
        %1845 = vmatmul.bf16.gmra.mxu0 %v668
        %v1846 = vpop.f32.mrf.mxu0
        %v1847 = vadd.f32 0.0, %v1846
        %v1848 = vpop.f32.mrf.mxu0
        %v1849 = vadd.f32 0.0, %v1848
        %1850 = vdwg.mxu0
        %1851 = vmatpush.bf16.msra.mxu0 0
        %1852 = vmatpush.bf16.msra.mxu0 0
        %1853 = vmatpush.bf16.msra.mxu0 0
        %1854 = vmatpush.bf16.msra.mxu0 0
        %1855 = vmatpush.bf16.msra.mxu0 0
        %1856 = vmatpush.bf16.msra.mxu0 0
        %1857 = vmatpush.bf16.msra.mxu0 0
        %1858 = vmatpush.bf16.msra.mxu0 %v1836
        %1859 = vmatmul.bf16.gmra.mxu0 %v692
        %v1860 = vpop.f32.mrf.mxu0
        %v1861 = vadd.f32 0.0, %v1860
        %v1862 = vpop.f32.mrf.mxu0
        %v1863 = vadd.f32 0.0, %v1862
        %1864 = vdwg.mxu0
        %1865 = vmatpush.bf16.msra.mxu0 0
        %1866 = vmatpush.bf16.msra.mxu0 0
        %1867 = vmatpush.bf16.msra.mxu0 0
        %1868 = vmatpush.bf16.msra.mxu0 0
        %1869 = vmatpush.bf16.msra.mxu0 0
        %1870 = vmatpush.bf16.msra.mxu0 0
        %1871 = vmatpush.bf16.msra.mxu0 0
        %1872 = vmatpush.bf16.msra.mxu0 %v1836
        %1873 = vmatmul.bf16.gmra.mxu0 %v716
        %v1874 = vpop.f32.mrf.mxu0
        %v1875 = vadd.f32 0.0, %v1874
        %v1876 = vpop.f32.mrf.mxu0
        %v1877 = vadd.f32 0.0, %v1876
        %1878 = vdwg.mxu0
        %1881 = vrot.lane.b32.xlu0 %v1861, 32
        %v1882 = vpop.permute.xlu0 %1881
        %1883 = vrot.lane.b32.xlu0 %v1863, 32
        %v1884 = vpop.permute.xlu0 %1883
        %1889 = vrot.lane.b32.xlu0 %v1875, 64
        %v1890 = vpop.permute.xlu0 %1889
        %1891 = vrot.lane.b32.xlu0 %v1877, 64
        %v1892 = vpop.permute.xlu0 %1891
        %v1895 = vsel %vm526, %v1847, %v1882
        %v1896 = vsel %vm526, %v1849, %v1884
        %v1897 = vsel %vm321, %v1895, %v1890
        %v1898 = vsel %vm321, %v1896, %v1892
        %v1899 = vpack.c.bf16 %v1898, %v1897
        %v1900 = vld [vmem:[%s1 + $0x198] sm:$0xf]
        %v1901 = vld [vmem:[%s1 + $0x19c] sm:$0xf]
        %v1902 = vld [vmem:[%s1 + $0x1a0] sm:$0xf]
        %v1903 = vld [vmem:[%s1 + $0x1a4] sm:$0xf]
        %v1904 = vld [vmem:[%s1 + $0x1a8] sm:$0xf]
        %v1905 = vld [vmem:[%s1 + $0x1ac] sm:$0xf]
        %v1906 = vld [vmem:[%s1 + $0x1b0] sm:$0xf]
        %v1907 = vld [vmem:[%s1 + $0x1b4] sm:$0xf]
        %v1908 = vld [vmem:[%s1 + $0x1b8] sm:$0xf]
        %v1909 = vld [vmem:[%s1 + $0x1bc] sm:$0xf]
        %v1910 = vld [vmem:[%s1 + $0x1c0] sm:$0xf]
        %v1911 = vld [vmem:[%s1 + $0x1c4] sm:$0xf]
        %v1912 = vld [vmem:[%s3 + $0x68] sm:$0x1]
        %v1913 = vperm.slane %v1912, 0
        %v1926 = vunpack.c.l.b16 %v1900
        %v1927 = vunpack.c.l.b16 %v1901
        %v1928 = vunpack.c.l.b16 %v1902
        %v1929 = vunpack.c.l.b16 %v1903
        %v1930 = vunpack.c.l.b16 %v1904
        %v1931 = vunpack.c.l.b16 %v1905
        %v1932 = vunpack.c.l.b16 %v1906
        %v1933 = vunpack.c.l.b16 %v1907
        %v1934 = vunpack.c.l.b16 %v1908
        %v1935 = vunpack.c.l.b16 %v1909
        %v1936 = vunpack.c.l.b16 %v1910
        %v1937 = vunpack.c.l.b16 %v1911
        %v1938 = vpack.c.b16 %v1927, %v1926
        %v1939 = vpack.c.b16 %v1929, %v1928
        %v1940 = vpack.c.b16 %v1931, %v1930
        %v1941 = vpack.c.b16 %v1933, %v1932
        %v1942 = vpack.c.b16 %v1935, %v1934
        %v1943 = vpack.c.b16 %v1937, %v1936
        %v1951 = vsel %vm803, %v1899, 0
        %1953 = vmatpush.bf16.msra.mxu0 0
        %1954 = vmatpush.bf16.msra.mxu0 0
        %1955 = vmatpush.bf16.msra.mxu0 %v1943
        %1956 = vmatpush.bf16.msra.mxu0 %v1942
        %1957 = vmatpush.bf16.msra.mxu0 %v1941
        %1958 = vmatpush.bf16.msra.mxu0 %v1940
        %1959 = vmatpush.bf16.msra.mxu0 %v1939
        %1960 = vmatpush.bf16.msra.mxu0 %v1938
        %1961 = vmatmul.bf16.gmra.mxu0 %v1951
        %v1962 = vpop.f32.mrf.mxu0
        %v1963 = vadd.f32 %v1913, %v1962
        %v1964 = vpop.f32.mrf.mxu0
        %v1965 = vadd.f32 %v1913, %v1964
        %1966 = vdwg.mxu0
        %v1967 = vmax.f32 %v1963, 0.0
        %v1968 = vmax.f32 %v1965, 0.0
        %v1969 = vpack.c.bf16 %v1968, %v1967
        %1970 = vmatpush.bf16.msra.mxu0 0
        %1971 = vmatpush.bf16.msra.mxu0 0
        %1972 = vmatpush.bf16.msra.mxu0 0
        %1973 = vmatpush.bf16.msra.mxu0 0
        %1974 = vmatpush.bf16.msra.mxu0 0
        %1975 = vmatpush.bf16.msra.mxu0 0
        %1976 = vmatpush.bf16.msra.mxu0 0
        %1977 = vmatpush.bf16.msra.mxu0 %v1969
        %1978 = vmatmul.bf16.gmra.mxu0 %v668
        %v1979 = vpop.f32.mrf.mxu0
        %v1980 = vadd.f32 0.0, %v1979
        %v1981 = vpop.f32.mrf.mxu0
        %v1982 = vadd.f32 0.0, %v1981
        %1983 = vdwg.mxu0
        %1984 = vmatpush.bf16.msra.mxu0 0
        %1985 = vmatpush.bf16.msra.mxu0 0
        %1986 = vmatpush.bf16.msra.mxu0 0
        %1987 = vmatpush.bf16.msra.mxu0 0
        %1988 = vmatpush.bf16.msra.mxu0 0
        %1989 = vmatpush.bf16.msra.mxu0 0
        %1990 = vmatpush.bf16.msra.mxu0 0
        %1991 = vmatpush.bf16.msra.mxu0 %v1969
        %1992 = vmatmul.bf16.gmra.mxu0 %v692
        %v1993 = vpop.f32.mrf.mxu0
        %v1994 = vadd.f32 0.0, %v1993
        %v1995 = vpop.f32.mrf.mxu0
        %v1996 = vadd.f32 0.0, %v1995
        %1997 = vdwg.mxu0
        %1998 = vmatpush.bf16.msra.mxu0 0
        %1999 = vmatpush.bf16.msra.mxu0 0
        %2000 = vmatpush.bf16.msra.mxu0 0
        %2001 = vmatpush.bf16.msra.mxu0 0
        %2002 = vmatpush.bf16.msra.mxu0 0
        %2003 = vmatpush.bf16.msra.mxu0 0
        %2004 = vmatpush.bf16.msra.mxu0 0
        %2005 = vmatpush.bf16.msra.mxu0 %v1969
        %2006 = vmatmul.bf16.gmra.mxu0 %v716
        %v2007 = vpop.f32.mrf.mxu0
        %v2008 = vadd.f32 0.0, %v2007
        %v2009 = vpop.f32.mrf.mxu0
        %v2010 = vadd.f32 0.0, %v2009
        %2011 = vdwg.mxu0
        %2014 = vrot.lane.b32.xlu0 %v1994, 32
        %v2015 = vpop.permute.xlu0 %2014
        %2016 = vrot.lane.b32.xlu0 %v1996, 32
        %v2017 = vpop.permute.xlu0 %2016
        %2022 = vrot.lane.b32.xlu0 %v2008, 64
        %v2023 = vpop.permute.xlu0 %2022
        %2024 = vrot.lane.b32.xlu0 %v2010, 64
        %v2025 = vpop.permute.xlu0 %2024
        %v2028 = vsel %vm526, %v1980, %v2015
        %v2029 = vsel %vm526, %v1982, %v2017
        %v2030 = vsel %vm321, %v2028, %v2023
        %v2031 = vsel %vm321, %v2029, %v2025
        %v2032 = vpack.c.bf16 %v2031, %v2030
        %v2033 = vld [vmem:[%s1 + $0x1c8] sm:$0xf]
        %v2034 = vld [vmem:[%s1 + $0x1cc] sm:$0xf]
        %v2035 = vld [vmem:[%s1 + $0x1d0] sm:$0xf]
        %v2036 = vld [vmem:[%s1 + $0x1d4] sm:$0xf]
        %v2037 = vld [vmem:[%s1 + $0x1d8] sm:$0xf]
        %v2038 = vld [vmem:[%s1 + $0x1dc] sm:$0xf]
        %v2039 = vld [vmem:[%s1 + $0x1e0] sm:$0xf]
        %v2040 = vld [vmem:[%s1 + $0x1e4] sm:$0xf]
        %v2041 = vld [vmem:[%s1 + $0x1e8] sm:$0xf]
        %v2042 = vld [vmem:[%s1 + $0x1ec] sm:$0xf]
        %v2043 = vld [vmem:[%s1 + $0x1f0] sm:$0xf]
        %v2044 = vld [vmem:[%s1 + $0x1f4] sm:$0xf]
        %v2045 = vld [vmem:[%s3 + $0x70] sm:$0x1]
        %v2046 = vperm.slane %v2045, 0
        %v2059 = vunpack.c.l.b16 %v2033
        %v2060 = vunpack.c.l.b16 %v2034
        %v2061 = vunpack.c.l.b16 %v2035
        %v2062 = vunpack.c.l.b16 %v2036
        %v2063 = vunpack.c.l.b16 %v2037
        %v2064 = vunpack.c.l.b16 %v2038
        %v2065 = vunpack.c.l.b16 %v2039
        %v2066 = vunpack.c.l.b16 %v2040
        %v2067 = vunpack.c.l.b16 %v2041
        %v2068 = vunpack.c.l.b16 %v2042
        %v2069 = vunpack.c.l.b16 %v2043
        %v2070 = vunpack.c.l.b16 %v2044
        %v2071 = vpack.c.b16 %v2060, %v2059
        %v2072 = vpack.c.b16 %v2062, %v2061
        %v2073 = vpack.c.b16 %v2064, %v2063
        %v2074 = vpack.c.b16 %v2066, %v2065
        %v2075 = vpack.c.b16 %v2068, %v2067
        %v2076 = vpack.c.b16 %v2070, %v2069
        %v2084 = vsel %vm803, %v2032, 0
        %2086 = vmatpush.bf16.msra.mxu0 0
        %2087 = vmatpush.bf16.msra.mxu0 0
        %2088 = vmatpush.bf16.msra.mxu0 %v2076
        %2089 = vmatpush.bf16.msra.mxu0 %v2075
        %2090 = vmatpush.bf16.msra.mxu0 %v2074
        %2091 = vmatpush.bf16.msra.mxu0 %v2073
        %2092 = vmatpush.bf16.msra.mxu0 %v2072
        %2093 = vmatpush.bf16.msra.mxu0 %v2071
        %2094 = vmatmul.bf16.gmra.mxu0 %v2084
        %v2095 = vpop.f32.mrf.mxu0
        %v2096 = vadd.f32 %v2046, %v2095
        %v2097 = vpop.f32.mrf.mxu0
        %v2098 = vadd.f32 %v2046, %v2097
        %2099 = vdwg.mxu0
        %v2100 = vmax.f32 %v2096, 0.0
        %v2101 = vmax.f32 %v2098, 0.0
        %v2102 = vpack.c.bf16 %v2101, %v2100
        %v2103 = vld [vmem:[%s1 + $0x1f8] sm:$0xf]
        %v2104 = vld [vmem:[%s1 + $0x1fc] sm:$0xf]
        %v2105 = vld [vmem:[%s1 + $0x200] sm:$0xf]
        %v2106 = vld [vmem:[%s1 + $0x204] sm:$0xf]
        %v2107 = vld [vmem:[%s3 + $0x78] sm:$0x1]
        %v2108 = vperm.slane %v2107, 0
        %v2113 = vunpack.c.l.b16 %v2103
        %v2114 = vunpack.c.l.b16 %v2104
        %v2115 = vunpack.c.l.b16 %v2105
        %v2116 = vunpack.c.l.b16 %v2106
        %v2117 = vpack.c.b16 %v2114, %v2113
        %v2118 = vpack.c.b16 %v2116, %v2115
        %v2122 = vsel %vm526, %v2102, 0
        %2124 = vmatpush.bf16.msra.mxu0 0
        %2125 = vmatpush.bf16.msra.mxu0 0
        %2126 = vmatpush.bf16.msra.mxu0 0
        %2127 = vmatpush.bf16.msra.mxu0 0
        %2128 = vmatpush.bf16.msra.mxu0 0
        %2129 = vmatpush.bf16.msra.mxu0 0
        %2130 = vmatpush.bf16.msra.mxu0 %v2118
        %2131 = vmatpush.bf16.msra.mxu0 %v2117
        %2132 = vmatmul.bf16.gmra.mxu0 %v2122
        %v2133 = vpop.f32.mrf.mxu0
        %v2134 = vadd.f32 %v2108, %v2133
        %v2135 = vpop.f32.mrf.mxu0
        %v2136 = vadd.f32 %v2108, %v2135
        %2137 = vdwg.mxu0
        %v2138 = vadd.f32 %v2134, %v1834
        %v2139 = vadd.f32 %v2136, %v1835
        %v2140 = vld [vmem:[#allocation2 + $0xf0] sm:$0xf]
        %v2141 = vld [vmem:[#allocation2 + $0xf4] sm:$0xf]
        %v2142 = vld [vmem:[#allocation2 + $0xf8] sm:$0xf]
        %v2143 = vld [vmem:[#allocation2 + $0xfc] sm:$0xf]
        %v2144 = vpack.c.bf16 %v2139, %v2138
        %v2149 = vunpack.c.l.b16 %v2140
        %v2150 = vunpack.c.l.b16 %v2141
        %v2151 = vunpack.c.l.b16 %v2142
        %v2152 = vunpack.c.l.b16 %v2143
        %v2153 = vpack.c.b16 %v2150, %v2149
        %v2154 = vpack.c.b16 %v2152, %v2151
        %v2156 = vsel %vm462, %v2153, 0
        %v2159 = vsel %vm462, %v2154, 0
        %2161 = vmatpush.bf16.msra.mxu0 0
        %2162 = vmatpush.bf16.msra.mxu0 0
        %2163 = vmatpush.bf16.msra.mxu0 0
        %2164 = vmatpush.bf16.msra.mxu0 0
        %2165 = vmatpush.bf16.msra.mxu0 0
        %2166 = vmatpush.bf16.msra.mxu0 0
        %2167 = vmatpush.bf16.msra.mxu0 0
        %2168 = vmatpush.bf16.msra.mxu0 %v2144
        %2169 = vmatmul.bf16.gmra.mxu0 %v2156
        %v2170 = vpop.f32.mrf.mxu0
        %v2171 = vadd.f32 0.0, %v2170
        %v2172 = vpop.f32.mrf.mxu0
        %v2173 = vadd.f32 0.0, %v2172
        %2174 = vmatmul.bf16.gmra.mxu0 %v2159
        %v2175 = vpop.f32.mrf.mxu0
        %v2176 = vadd.f32 0.0, %v2175
        %v2177 = vpop.f32.mrf.mxu0
        %v2178 = vadd.f32 0.0, %v2177
        %2179 = vdwg.mxu0
        %v2180 = vpack.c.bf16 %v2173, %v2171
        %v2181 = vpack.c.bf16 %v2178, %v2176
        %v2182 = vld [vmem:[#allocation2 + $0x60] sm:$0xf]
        %v2183 = vld [vmem:[#allocation2 + $0x64] sm:$0xf]
        %v2184 = vld [vmem:[#allocation2 + $0x68] sm:$0xf]
        %v2185 = vld [vmem:[#allocation2 + $0x6c] sm:$0xf]
        %v2190 = vunpack.c.l.b16 %v2182
        %v2191 = vunpack.c.l.b16 %v2183
        %v2192 = vunpack.c.l.b16 %v2184
        %v2193 = vunpack.c.l.b16 %v2185
        %v2194 = vpack.c.b16 %v2191, %v2190
        %v2195 = vpack.c.b16 %v2193, %v2192
        %v2197 = vsel %vm526, %v2194, 0
        %v2200 = vsel %vm526, %v2195, 0
        %2202 = vmatpush.bf16.msra.mxu0 0
        %2203 = vmatpush.bf16.msra.mxu0 0
        %2204 = vmatpush.bf16.msra.mxu0 0
        %2205 = vmatpush.bf16.msra.mxu0 0
        %2206 = vmatpush.bf16.msra.mxu0 0
        %2207 = vmatpush.bf16.msra.mxu0 0
        %2208 = vmatpush.bf16.msra.mxu0 %v2181
        %2209 = vmatpush.bf16.msra.mxu0 %v2180
        %2210 = vmatmul.bf16.gmra.mxu0 %v2197
        %v2211 = vpop.f32.mrf.mxu0
        %v2212 = vadd.f32 0.0, %v2211
        %v2213 = vpop.f32.mrf.mxu0
        %v2214 = vadd.f32 0.0, %v2213
        %2215 = vmatmul.bf16.gmra.mxu0 %v2200
        %v2216 = vpop.f32.mrf.mxu0
        %v2217 = vadd.f32 0.0, %v2216
        %v2218 = vpop.f32.mrf.mxu0
        %v2219 = vadd.f32 0.0, %v2218
        %2220 = vdwg.mxu0
        %v2221 = vld [vmem:[#allocation2 + $0x70] sm:$0xf]
        %v2222 = vld [vmem:[#allocation2 + $0x74] sm:$0xf]
        %v2223 = vld [vmem:[#allocation2 + $0x78] sm:$0xf]
        %v2224 = vld [vmem:[#allocation2 + $0x7c] sm:$0xf]
        %v2229 = vunpack.c.l.b16 %v2221
        %v2230 = vunpack.c.l.b16 %v2222
        %v2231 = vunpack.c.l.b16 %v2223
        %v2232 = vunpack.c.l.b16 %v2224
        %v2233 = vpack.c.b16 %v2230, %v2229
        %v2234 = vpack.c.b16 %v2232, %v2231
        %v2236 = vsel %vm526, %v2233, 0
        %v2239 = vsel %vm526, %v2234, 0
        %2241 = vmatpush.bf16.msra.mxu0 0
        %2242 = vmatpush.bf16.msra.mxu0 0
        %2243 = vmatpush.bf16.msra.mxu0 0
        %2244 = vmatpush.bf16.msra.mxu0 0
        %2245 = vmatpush.bf16.msra.mxu0 0
        %2246 = vmatpush.bf16.msra.mxu0 0
        %2247 = vmatpush.bf16.msra.mxu0 %v2181
        %2248 = vmatpush.bf16.msra.mxu0 %v2180
        %2249 = vmatmul.bf16.gmra.mxu0 %v2236
        %v2250 = vpop.f32.mrf.mxu0
        %v2251 = vadd.f32 0.0, %v2250
        %v2252 = vpop.f32.mrf.mxu0
        %v2253 = vadd.f32 0.0, %v2252
        %2254 = vmatmul.bf16.gmra.mxu0 %v2239
        %v2255 = vpop.f32.mrf.mxu0
        %v2256 = vadd.f32 0.0, %v2255
        %v2257 = vpop.f32.mrf.mxu0
        %v2258 = vadd.f32 0.0, %v2257
        %2259 = vdwg.mxu0
        %v2260 = vld [vmem:[#allocation2 + $0x80] sm:$0xf]
        %v2261 = vld [vmem:[#allocation2 + $0x84] sm:$0xf]
        %v2262 = vld [vmem:[#allocation2 + $0x88] sm:$0xf]
        %v2263 = vld [vmem:[#allocation2 + $0x8c] sm:$0xf]
        %v2268 = vunpack.c.l.b16 %v2260
        %v2269 = vunpack.c.l.b16 %v2261
        %v2270 = vunpack.c.l.b16 %v2262
        %v2271 = vunpack.c.l.b16 %v2263
        %v2272 = vpack.c.b16 %v2269, %v2268
        %v2273 = vpack.c.b16 %v2271, %v2270
        %v2275 = vsel %vm526, %v2272, 0
        %v2278 = vsel %vm526, %v2273, 0
        %2280 = vmatpush.bf16.msra.mxu0 0
        %2281 = vmatpush.bf16.msra.mxu0 0
        %2282 = vmatpush.bf16.msra.mxu0 0
        %2283 = vmatpush.bf16.msra.mxu0 0
        %2284 = vmatpush.bf16.msra.mxu0 0
        %2285 = vmatpush.bf16.msra.mxu0 0
        %2286 = vmatpush.bf16.msra.mxu0 %v2181
        %2287 = vmatpush.bf16.msra.mxu0 %v2180
        %2288 = vmatmul.bf16.gmra.mxu0 %v2275
        %v2289 = vpop.f32.mrf.mxu0
        %v2290 = vadd.f32 0.0, %v2289
        %v2291 = vpop.f32.mrf.mxu0
        %v2292 = vadd.f32 0.0, %v2291
        %2293 = vmatmul.bf16.gmra.mxu0 %v2278
        %v2294 = vpop.f32.mrf.mxu0
        %v2295 = vadd.f32 0.0, %v2294
        %v2296 = vpop.f32.mrf.mxu0
        %v2297 = vadd.f32 0.0, %v2296
        %2298 = vdwg.mxu0
        %2303 = vrot.lane.b32.xlu0 %v2251, 32
        %v2304 = vpop.permute.xlu0 %2303
        %2305 = vrot.lane.b32.xlu0 %v2253, 32
        %v2306 = vpop.permute.xlu0 %2305
        %2307 = vrot.lane.b32.xlu0 %v2256, 32
        %v2308 = vpop.permute.xlu0 %2307
        %2309 = vrot.lane.b32.xlu0 %v2258, 32
        %v2310 = vpop.permute.xlu0 %2309
        %2319 = vrot.lane.b32.xlu0 %v2290, 64
        %v2320 = vpop.permute.xlu0 %2319
        %2321 = vrot.lane.b32.xlu0 %v2292, 64
        %v2322 = vpop.permute.xlu0 %2321
        %2323 = vrot.lane.b32.xlu0 %v2295, 64
        %v2324 = vpop.permute.xlu0 %2323
        %2325 = vrot.lane.b32.xlu0 %v2297, 64
        %v2326 = vpop.permute.xlu0 %2325
        %v2331 = vsel %vm526, %v2212, %v2304
        %v2332 = vsel %vm526, %v2214, %v2306
        %v2333 = vsel %vm526, %v2217, %v2308
        %v2334 = vsel %vm526, %v2219, %v2310
        %v2335 = vsel %vm321, %v2331, %v2320
        %v2336 = vsel %vm321, %v2332, %v2322
        %v2337 = vsel %vm321, %v2333, %v2324
        %v2338 = vsel %vm321, %v2334, %v2326
        %v2339 = vpack.c.bf16 %v2336, %v2335
        %v2340 = vpack.c.bf16 %v2338, %v2337
        %v2341 = vld [vmem:[%s1 + $0x208] sm:$0xf]
        %v2342 = vld [vmem:[%s1 + $0x20c] sm:$0xf]
        %v2343 = vld [vmem:[%s1 + $0x210] sm:$0xf]
        %v2344 = vld [vmem:[%s1 + $0x214] sm:$0xf]
        %v2345 = vld [vmem:[%s1 + $0x218] sm:$0xf]
        %v2346 = vld [vmem:[%s1 + $0x21c] sm:$0xf]
        %v2347 = vld [vmem:[%s1 + $0x220] sm:$0xf]
        %v2348 = vld [vmem:[%s1 + $0x224] sm:$0xf]
        %v2349 = vld [vmem:[%s1 + $0x228] sm:$0xf]
        %v2350 = vld [vmem:[%s1 + $0x22c] sm:$0xf]
        %v2351 = vld [vmem:[%s1 + $0x230] sm:$0xf]
        %v2352 = vld [vmem:[%s1 + $0x234] sm:$0xf]
        %v2353 = vld [vmem:[%s3 + $0x80] sm:$0x1]
        %v2354 = vperm.slane %v2353, 0
        %v2367 = vunpack.c.l.b16 %v2341
        %v2368 = vunpack.c.l.b16 %v2342
        %v2369 = vunpack.c.l.b16 %v2343
        %v2370 = vunpack.c.l.b16 %v2344
        %v2371 = vunpack.c.l.b16 %v2345
        %v2372 = vunpack.c.l.b16 %v2346
        %v2373 = vunpack.c.l.b16 %v2347
        %v2374 = vunpack.c.l.b16 %v2348
        %v2375 = vunpack.c.l.b16 %v2349
        %v2376 = vunpack.c.l.b16 %v2350
        %v2377 = vunpack.c.l.b16 %v2351
        %v2378 = vunpack.c.l.b16 %v2352
        %v2379 = vpack.c.b16 %v2368, %v2367
        %v2380 = vpack.c.b16 %v2370, %v2369
        %v2381 = vpack.c.b16 %v2372, %v2371
        %v2382 = vpack.c.b16 %v2374, %v2373
        %v2383 = vpack.c.b16 %v2376, %v2375
        %v2384 = vpack.c.b16 %v2378, %v2377
        %v2392 = vsel %vm803, %v2339, 0
        %v2395 = vsel %vm803, %v2340, 0
        %2397 = vmatpush.bf16.msra.mxu0 0
        %2398 = vmatpush.bf16.msra.mxu0 0
        %2399 = vmatpush.bf16.msra.mxu0 %v2384
        %2400 = vmatpush.bf16.msra.mxu0 %v2383
        %2401 = vmatpush.bf16.msra.mxu0 %v2382
        %2402 = vmatpush.bf16.msra.mxu0 %v2381
        %2403 = vmatpush.bf16.msra.mxu0 %v2380
        %2404 = vmatpush.bf16.msra.mxu0 %v2379
        %2405 = vmatmul.bf16.gmra.mxu0 %v2392
        %v2406 = vpop.f32.mrf.mxu0
        %v2407 = vadd.f32 %v2354, %v2406
        %v2408 = vpop.f32.mrf.mxu0
        %v2409 = vadd.f32 %v2354, %v2408
        %2410 = vmatmul.bf16.gmra.mxu0 %v2395
        %v2411 = vpop.f32.mrf.mxu0
        %v2412 = vadd.f32 %v2354, %v2411
        %v2413 = vpop.f32.mrf.mxu0
        %v2414 = vadd.f32 %v2354, %v2413
        %2415 = vdwg.mxu0
        %v2416 = vmax.f32 %v2407, 0.0
        %v2417 = vmax.f32 %v2409, 0.0
        %v2418 = vmax.f32 %v2412, 0.0
        %v2419 = vmax.f32 %v2414, 0.0
        %v2420 = vld [vmem:[#allocation2 + $0x100] sm:$0xf]
        %v2421 = vld [vmem:[#allocation2 + $0x104] sm:$0xf]
        %v2422 = vld [vmem:[#allocation2 + $0x108] sm:$0xf]
        %v2423 = vld [vmem:[#allocation2 + $0x10c] sm:$0xf]
        %v2424 = vld [vmem:[#allocation2 + $0x110] sm:$0xf]
        %v2425 = vld [vmem:[#allocation2 + $0x114] sm:$0xf]
        %v2426 = vld [vmem:[#allocation2 + $0x118] sm:$0xf]
        %v2427 = vld [vmem:[#allocation2 + $0x11c] sm:$0xf]
        %v2428 = vpack.c.bf16 %v2417, %v2416
        %v2429 = vpack.c.bf16 %v2419, %v2418
        %v2438 = vunpack.c.l.b16 %v2420
        %v2439 = vunpack.c.l.b16 %v2421
        %v2440 = vunpack.c.l.b16 %v2422
        %v2441 = vunpack.c.l.b16 %v2423
        %v2442 = vunpack.c.l.b16 %v2424
        %v2443 = vunpack.c.l.b16 %v2425
        %v2444 = vunpack.c.l.b16 %v2426
        %v2445 = vunpack.c.l.b16 %v2427
        %v2446 = vpack.c.b16 %v2439, %v2438
        %v2447 = vpack.c.b16 %v2441, %v2440
        %v2448 = vpack.c.b16 %v2443, %v2442
        %v2449 = vpack.c.b16 %v2445, %v2444
        %v2451 = vsel %vm526, %v2446, 0
        %v2454 = vsel %vm526, %v2447, 0
        %v2457 = vsel %vm526, %v2448, 0
        %v2460 = vsel %vm526, %v2449, 0
        %2462 = vmatpush.bf16.msra.mxu0 0
        %2463 = vmatpush.bf16.msra.mxu0 0
        %2464 = vmatpush.bf16.msra.mxu0 0
        %2465 = vmatpush.bf16.msra.mxu0 0
        %2466 = vmatpush.bf16.msra.mxu0 0
        %2467 = vmatpush.bf16.msra.mxu0 0
        %2468 = vmatpush.bf16.msra.mxu0 %v2429
        %2469 = vmatpush.bf16.msra.mxu0 %v2428
        %2470 = vmatmul.bf16.gmra.mxu0 %v2451
        %v2471 = vpop.f32.mrf.mxu0
        %v2472 = vadd.f32 0.0, %v2471
        %v2473 = vpop.f32.mrf.mxu0
        %v2474 = vadd.f32 0.0, %v2473
        %2475 = vmatmul.bf16.gmra.mxu0 %v2454
        %v2476 = vpop.f32.mrf.mxu0
        %v2477 = vadd.f32 0.0, %v2476
        %v2478 = vpop.f32.mrf.mxu0
        %v2479 = vadd.f32 0.0, %v2478
        %2480 = vmatmul.bf16.gmra.mxu0 %v2457
        %v2481 = vpop.f32.mrf.mxu0
        %v2482 = vadd.f32 0.0, %v2481
        %v2483 = vpop.f32.mrf.mxu0
        %v2484 = vadd.f32 0.0, %v2483
        %2485 = vmatmul.bf16.gmra.mxu0 %v2460
        %v2486 = vpop.f32.mrf.mxu0
        %v2487 = vadd.f32 0.0, %v2486
        %v2488 = vpop.f32.mrf.mxu0
        %v2489 = vadd.f32 0.0, %v2488
        %2490 = vdwg.mxu0
        %v2491 = vpack.c.bf16 %v2474, %v2472
        %v2492 = vpack.c.bf16 %v2479, %v2477
        %v2493 = vpack.c.bf16 %v2484, %v2482
        %v2494 = vpack.c.bf16 %v2489, %v2487
        %v2495 = vld [vmem:[#allocation2 + $0x90] sm:$0xf]
        %v2496 = vld [vmem:[#allocation2 + $0x94] sm:$0xf]
        %v2497 = vld [vmem:[#allocation2 + $0x98] sm:$0xf]
        %v2498 = vld [vmem:[#allocation2 + $0x9c] sm:$0xf]
        %v2499 = vld [vmem:[#allocation2 + $0xa0] sm:$0xf]
        %v2500 = vld [vmem:[#allocation2 + $0xa4] sm:$0xf]
        %v2501 = vld [vmem:[#allocation2 + $0xa8] sm:$0xf]
        %v2502 = vld [vmem:[#allocation2 + $0xac] sm:$0xf]
        %v2511 = vunpack.c.l.b16 %v2495
        %v2512 = vunpack.c.l.b16 %v2496
        %v2513 = vunpack.c.l.b16 %v2497
        %v2514 = vunpack.c.l.b16 %v2498
        %v2515 = vunpack.c.l.b16 %v2499
        %v2516 = vunpack.c.l.b16 %v2500
        %v2517 = vunpack.c.l.b16 %v2501
        %v2518 = vunpack.c.l.b16 %v2502
        %v2519 = vpack.c.b16 %v2512, %v2511
        %v2520 = vpack.c.b16 %v2514, %v2513
        %v2521 = vpack.c.b16 %v2516, %v2515
        %v2522 = vpack.c.b16 %v2518, %v2517
        %v2524 = vsel %vm321, %v2519, 0
        %v2527 = vsel %vm321, %v2520, 0
        %v2530 = vsel %vm321, %v2521, 0
        %v2533 = vsel %vm321, %v2522, 0
        %2535 = vmatpush.bf16.msra.mxu0 0
        %2536 = vmatpush.bf16.msra.mxu0 0
        %2537 = vmatpush.bf16.msra.mxu0 0
        %2538 = vmatpush.bf16.msra.mxu0 0
        %2539 = vmatpush.bf16.msra.mxu0 %v2494
        %2540 = vmatpush.bf16.msra.mxu0 %v2493
        %2541 = vmatpush.bf16.msra.mxu0 %v2492
        %2542 = vmatpush.bf16.msra.mxu0 %v2491
        %2543 = vmatmul.bf16.gmra.mxu0 %v2524
        %v2544 = vpop.f32.mrf.mxu0
        %v2545 = vadd.f32 0.0, %v2544
        %v2546 = vpop.f32.mrf.mxu0
        %v2547 = vadd.f32 0.0, %v2546
        %2548 = vmatmul.bf16.gmra.mxu0 %v2527
        %v2549 = vpop.f32.mrf.mxu0
        %v2550 = vadd.f32 0.0, %v2549
        %v2551 = vpop.f32.mrf.mxu0
        %v2552 = vadd.f32 0.0, %v2551
        %2553 = vmatmul.bf16.gmra.mxu0 %v2530
        %v2554 = vpop.f32.mrf.mxu0
        %v2555 = vadd.f32 0.0, %v2554
        %v2556 = vpop.f32.mrf.mxu0
        %v2557 = vadd.f32 0.0, %v2556
        %2558 = vmatmul.bf16.gmra.mxu0 %v2533
        %v2559 = vpop.f32.mrf.mxu0
        %v2560 = vadd.f32 0.0, %v2559
        %v2561 = vpop.f32.mrf.mxu0
        %v2562 = vadd.f32 0.0, %v2561
        %2563 = vdwg.mxu0
        %v2564 = vld [vmem:[#allocation2 + $0xb0] sm:$0xf]
        %v2565 = vld [vmem:[#allocation2 + $0xb4] sm:$0xf]
        %v2566 = vld [vmem:[#allocation2 + $0xb8] sm:$0xf]
        %v2567 = vld [vmem:[#allocation2 + $0xbc] sm:$0xf]
        %v2568 = vld [vmem:[#allocation2 + $0xc0] sm:$0xf]
        %v2569 = vld [vmem:[#allocation2 + $0xc4] sm:$0xf]
        %v2570 = vld [vmem:[#allocation2 + $0xc8] sm:$0xf]
        %v2571 = vld [vmem:[#allocation2 + $0xcc] sm:$0xf]
        %v2580 = vunpack.c.l.b16 %v2564
        %v2581 = vunpack.c.l.b16 %v2565
        %v2582 = vunpack.c.l.b16 %v2566
        %v2583 = vunpack.c.l.b16 %v2567
        %v2584 = vunpack.c.l.b16 %v2568
        %v2585 = vunpack.c.l.b16 %v2569
        %v2586 = vunpack.c.l.b16 %v2570
        %v2587 = vunpack.c.l.b16 %v2571
        %v2588 = vpack.c.b16 %v2581, %v2580
        %v2589 = vpack.c.b16 %v2583, %v2582
        %v2590 = vpack.c.b16 %v2585, %v2584
        %v2591 = vpack.c.b16 %v2587, %v2586
        %v2593 = vsel %vm321, %v2588, 0
        %v2596 = vsel %vm321, %v2589, 0
        %v2599 = vsel %vm321, %v2590, 0
        %v2602 = vsel %vm321, %v2591, 0
        %2604 = vmatpush.bf16.msra.mxu0 0
        %2605 = vmatpush.bf16.msra.mxu0 0
        %2606 = vmatpush.bf16.msra.mxu0 0
        %2607 = vmatpush.bf16.msra.mxu0 0
        %2608 = vmatpush.bf16.msra.mxu0 %v2494
        %2609 = vmatpush.bf16.msra.mxu0 %v2493
        %2610 = vmatpush.bf16.msra.mxu0 %v2492
        %2611 = vmatpush.bf16.msra.mxu0 %v2491
        %2612 = vmatmul.bf16.gmra.mxu0 %v2593
        %v2613 = vpop.f32.mrf.mxu0
        %v2614 = vadd.f32 0.0, %v2613
        %v2615 = vpop.f32.mrf.mxu0
        %v2616 = vadd.f32 0.0, %v2615
        %2617 = vmatmul.bf16.gmra.mxu0 %v2596
        %v2618 = vpop.f32.mrf.mxu0
        %v2619 = vadd.f32 0.0, %v2618
        %v2620 = vpop.f32.mrf.mxu0
        %v2621 = vadd.f32 0.0, %v2620
        %2622 = vmatmul.bf16.gmra.mxu0 %v2599
        %v2623 = vpop.f32.mrf.mxu0
        %v2624 = vadd.f32 0.0, %v2623
        %v2625 = vpop.f32.mrf.mxu0
        %v2626 = vadd.f32 0.0, %v2625
        %2627 = vmatmul.bf16.gmra.mxu0 %v2602
        %v2628 = vpop.f32.mrf.mxu0
        %v2629 = vadd.f32 0.0, %v2628
        %v2630 = vpop.f32.mrf.mxu0
        %v2631 = vadd.f32 0.0, %v2630
        %2632 = vdwg.mxu0
        %v2633 = vld [vmem:[#allocation2 + $0xd0] sm:$0xf]
        %v2634 = vld [vmem:[#allocation2 + $0xd4] sm:$0xf]
        %v2635 = vld [vmem:[#allocation2 + $0xd8] sm:$0xf]
        %v2636 = vld [vmem:[#allocation2 + $0xdc] sm:$0xf]
        %v2637 = vld [vmem:[#allocation2 + $0xe0] sm:$0xf]
        %v2638 = vld [vmem:[#allocation2 + $0xe4] sm:$0xf]
        %v2639 = vld [vmem:[#allocation2 + $0xe8] sm:$0xf]
        %v2640 = vld [vmem:[#allocation2 + $0xec] sm:$0xf]
        %v2649 = vunpack.c.l.b16 %v2633
        %v2650 = vunpack.c.l.b16 %v2634
        %v2651 = vunpack.c.l.b16 %v2635
        %v2652 = vunpack.c.l.b16 %v2636
        %v2653 = vunpack.c.l.b16 %v2637
        %v2654 = vunpack.c.l.b16 %v2638
        %v2655 = vunpack.c.l.b16 %v2639
        %v2656 = vunpack.c.l.b16 %v2640
        %v2657 = vpack.c.b16 %v2650, %v2649
        %v2658 = vpack.c.b16 %v2652, %v2651
        %v2659 = vpack.c.b16 %v2654, %v2653
        %v2660 = vpack.c.b16 %v2656, %v2655
        %v2662 = vsel %vm321, %v2657, 0
        %v2665 = vsel %vm321, %v2658, 0
        %v2668 = vsel %vm321, %v2659, 0
        %v2671 = vsel %vm321, %v2660, 0
        %2673 = vmatpush.bf16.msra.mxu0 0
        %2674 = vmatpush.bf16.msra.mxu0 0
        %2675 = vmatpush.bf16.msra.mxu0 0
        %2676 = vmatpush.bf16.msra.mxu0 0
        %2677 = vmatpush.bf16.msra.mxu0 %v2494
        %2678 = vmatpush.bf16.msra.mxu0 %v2493
        %2679 = vmatpush.bf16.msra.mxu0 %v2492
        %2680 = vmatpush.bf16.msra.mxu0 %v2491
        %2681 = vmatmul.bf16.gmra.mxu0 %v2662
        %v2682 = vpop.f32.mrf.mxu0
        %v2683 = vadd.f32 0.0, %v2682
        %v2684 = vpop.f32.mrf.mxu0
        %v2685 = vadd.f32 0.0, %v2684
        %2686 = vmatmul.bf16.gmra.mxu0 %v2665
        %v2687 = vpop.f32.mrf.mxu0
        %v2688 = vadd.f32 0.0, %v2687
        %v2689 = vpop.f32.mrf.mxu0
        %v2690 = vadd.f32 0.0, %v2689
        %2691 = vmatmul.bf16.gmra.mxu0 %v2668
        %v2692 = vpop.f32.mrf.mxu0
        %v2693 = vadd.f32 0.0, %v2692
        %v2694 = vpop.f32.mrf.mxu0
        %v2695 = vadd.f32 0.0, %v2694
        %2696 = vmatmul.bf16.gmra.mxu0 %v2671
        %v2697 = vpop.f32.mrf.mxu0
        %v2698 = vadd.f32 0.0, %v2697
        %v2699 = vpop.f32.mrf.mxu0
        %v2700 = vadd.f32 0.0, %v2699
        %2701 = vdwg.mxu0
        %2710 = vrot.lane.b32.xlu0 %v2614, 32
        %v2711 = vpop.permute.xlu0 %2710
        %2712 = vrot.lane.b32.xlu0 %v2616, 32
        %v2713 = vpop.permute.xlu0 %2712
        %2714 = vrot.lane.b32.xlu0 %v2619, 32
        %v2715 = vpop.permute.xlu0 %2714
        %2716 = vrot.lane.b32.xlu0 %v2621, 32
        %v2717 = vpop.permute.xlu0 %2716
        %2718 = vrot.lane.b32.xlu0 %v2624, 32
        %v2719 = vpop.permute.xlu0 %2718
        %2720 = vrot.lane.b32.xlu0 %v2626, 32
        %v2721 = vpop.permute.xlu0 %2720
        %2722 = vrot.lane.b32.xlu0 %v2629, 32
        %v2723 = vpop.permute.xlu0 %2722
        %2724 = vrot.lane.b32.xlu0 %v2631, 32
        %v2725 = vpop.permute.xlu0 %2724
        %2742 = vrot.lane.b32.xlu0 %v2683, 64
        %v2743 = vpop.permute.xlu0 %2742
        %2744 = vrot.lane.b32.xlu0 %v2685, 64
        %v2745 = vpop.permute.xlu0 %2744
        %2746 = vrot.lane.b32.xlu0 %v2688, 64
        %v2747 = vpop.permute.xlu0 %2746
        %2748 = vrot.lane.b32.xlu0 %v2690, 64
        %v2749 = vpop.permute.xlu0 %2748
        %2750 = vrot.lane.b32.xlu0 %v2693, 64
        %v2751 = vpop.permute.xlu0 %2750
        %2752 = vrot.lane.b32.xlu0 %v2695, 64
        %v2753 = vpop.permute.xlu0 %2752
        %2754 = vrot.lane.b32.xlu0 %v2698, 64
        %v2755 = vpop.permute.xlu0 %2754
        %2756 = vrot.lane.b32.xlu0 %v2700, 64
        %v2757 = vpop.permute.xlu0 %2756
        %v2766 = vsel %vm526, %v2545, %v2711
        %v2767 = vsel %vm526, %v2547, %v2713
        %v2768 = vsel %vm526, %v2550, %v2715
        %v2769 = vsel %vm526, %v2552, %v2717
        %v2770 = vsel %vm526, %v2555, %v2719
        %v2771 = vsel %vm526, %v2557, %v2721
        %v2772 = vsel %vm526, %v2560, %v2723
        %v2773 = vsel %vm526, %v2562, %v2725
        %v2774 = vsel %vm321, %v2766, %v2743
        %v2775 = vsel %vm321, %v2767, %v2745
        %v2776 = vsel %vm321, %v2768, %v2747
        %v2777 = vsel %vm321, %v2769, %v2749
        %v2778 = vsel %vm321, %v2770, %v2751
        %v2779 = vsel %vm321, %v2771, %v2753
        %v2780 = vsel %vm321, %v2772, %v2755
        %v2781 = vsel %vm321, %v2773, %v2757
        %v2782 = vpack.c.bf16 %v2775, %v2774
        %v2783 = vpack.c.bf16 %v2777, %v2776
        %v2784 = vpack.c.bf16 %v2779, %v2778
        %v2785 = vpack.c.bf16 %v2781, %v2780
        %v2786 = vld [vmem:[%s1 + $0x238] sm:$0xf]
        %v2787 = vld [vmem:[%s1 + $0x23c] sm:$0xf]
        %v2788 = vld [vmem:[%s1 + $0x240] sm:$0xf]
        %v2789 = vld [vmem:[%s1 + $0x244] sm:$0xf]
        %v2790 = vld [vmem:[%s1 + $0x248] sm:$0xf]
        %v2791 = vld [vmem:[%s1 + $0x24c] sm:$0xf]
        %v2792 = vld [vmem:[%s1 + $0x250] sm:$0xf]
        %v2793 = vld [vmem:[%s1 + $0x254] sm:$0xf]
        %v2794 = vld [vmem:[%s1 + $0x258] sm:$0xf]
        %v2795 = vld [vmem:[%s1 + $0x25c] sm:$0xf]
        %v2796 = vld [vmem:[%s1 + $0x260] sm:$0xf]
        %v2797 = vld [vmem:[%s1 + $0x264] sm:$0xf]
        %v2798 = vld [vmem:[%s3 + $0x88] sm:$0x1]
        %v2799 = vperm.slane %v2798, 0
        %v2812 = vunpack.c.l.b16 %v2786
        %v2813 = vunpack.c.l.b16 %v2787
        %v2814 = vunpack.c.l.b16 %v2788
        %v2815 = vunpack.c.l.b16 %v2789
        %v2816 = vunpack.c.l.b16 %v2790
        %v2817 = vunpack.c.l.b16 %v2791
        %v2818 = vunpack.c.l.b16 %v2792
        %v2819 = vunpack.c.l.b16 %v2793
        %v2820 = vunpack.c.l.b16 %v2794
        %v2821 = vunpack.c.l.b16 %v2795
        %v2822 = vunpack.c.l.b16 %v2796
        %v2823 = vunpack.c.l.b16 %v2797
        %v2824 = vpack.c.b16 %v2813, %v2812
        %v2825 = vpack.c.b16 %v2815, %v2814
        %v2826 = vpack.c.b16 %v2817, %v2816
        %v2827 = vpack.c.b16 %v2819, %v2818
        %v2828 = vpack.c.b16 %v2821, %v2820
        %v2829 = vpack.c.b16 %v2823, %v2822
        %v2837 = vsel %vm803, %v2782, 0
        %v2840 = vsel %vm803, %v2783, 0
        %v2843 = vsel %vm803, %v2784, 0
        %v2846 = vsel %vm803, %v2785, 0
        %2848 = vmatpush.bf16.msra.mxu0 0
        %2849 = vmatpush.bf16.msra.mxu0 0
        %2850 = vmatpush.bf16.msra.mxu0 %v2829
        %2851 = vmatpush.bf16.msra.mxu0 %v2828
        %2852 = vmatpush.bf16.msra.mxu0 %v2827
        %2853 = vmatpush.bf16.msra.mxu0 %v2826
        %2854 = vmatpush.bf16.msra.mxu0 %v2825
        %2855 = vmatpush.bf16.msra.mxu0 %v2824
        %2856 = vmatmul.bf16.gmra.mxu0 %v2837
        %v2857 = vpop.f32.mrf.mxu0
        %v2858 = vadd.f32 %v2799, %v2857
        %v2859 = vpop.f32.mrf.mxu0
        %v2860 = vadd.f32 %v2799, %v2859
        %2861 = vmatmul.bf16.gmra.mxu0 %v2840
        %v2862 = vpop.f32.mrf.mxu0
        %v2863 = vadd.f32 %v2799, %v2862
        %v2864 = vpop.f32.mrf.mxu0
        %v2865 = vadd.f32 %v2799, %v2864
        %2866 = vmatmul.bf16.gmra.mxu0 %v2843
        %v2867 = vpop.f32.mrf.mxu0
        %v2868 = vadd.f32 %v2799, %v2867
        %v2869 = vpop.f32.mrf.mxu0
        %v2870 = vadd.f32 %v2799, %v2869
        %2871 = vmatmul.bf16.gmra.mxu0 %v2846
        %v2872 = vpop.f32.mrf.mxu0
        %v2873 = vadd.f32 %v2799, %v2872
        %v2874 = vpop.f32.mrf.mxu0
        %v2875 = vadd.f32 %v2799, %v2874
        %2876 = vdwg.mxu0
        %v2877 = vmax.f32 %v2858, 0.0
        %v2878 = vmax.f32 %v2860, 0.0
        %v2879 = vmax.f32 %v2863, 0.0
        %v2880 = vmax.f32 %v2865, 0.0
        %v2881 = vmax.f32 %v2868, 0.0
        %v2882 = vmax.f32 %v2870, 0.0
        %v2883 = vmax.f32 %v2873, 0.0
        %v2884 = vmax.f32 %v2875, 0.0
        %v2885 = vpack.c.bf16 %v2878, %v2877
        %v2886 = vpack.c.bf16 %v2880, %v2879
        %v2887 = vpack.c.bf16 %v2882, %v2881
        %v2888 = vpack.c.bf16 %v2884, %v2883
        %v2889 = vld [vmem:[%s1 + $0x268] sm:$0xf]
        %v2890 = vld [vmem:[%s1 + $0x26c] sm:$0xf]
        %v2891 = vld [vmem:[%s3 + $0x90] sm:$0x1]
        %v2892 = vperm.slane %v2891, 0
        %v2895 = vunpack.c.l.b16 %v2889
        %v2896 = vunpack.c.l.b16 %v2890
        %v2897 = vpack.c.b16 %v2896, %v2895
        %v2900 = vsel %vm462, %v2885, 0
        %v2903 = vsel %vm462, %v2886, 0
        %v2906 = vsel %vm462, %v2887, 0
        %v2909 = vsel %vm462, %v2888, 0
        %2911 = vmatpush.bf16.msra.mxu0 0
        %2912 = vmatpush.bf16.msra.mxu0 0
        %2913 = vmatpush.bf16.msra.mxu0 0
        %2914 = vmatpush.bf16.msra.mxu0 0
        %2915 = vmatpush.bf16.msra.mxu0 0
        %2916 = vmatpush.bf16.msra.mxu0 0
        %2917 = vmatpush.bf16.msra.mxu0 0
        %2918 = vmatpush.bf16.msra.mxu0 %v2897
        %2919 = vmatmul.bf16.gmra.mxu0 %v2900
        %v2920 = vpop.f32.mrf.mxu0
        %v2921 = vadd.f32 %v2892, %v2920
        %v2922 = vpop.f32.mrf.mxu0
        %v2923 = vadd.f32 %v2892, %v2922
        %2924 = vmatmul.bf16.gmra.mxu0 %v2903
        %v2925 = vpop.f32.mrf.mxu0
        %v2926 = vadd.f32 %v2892, %v2925
        %v2927 = vpop.f32.mrf.mxu0
        %v2928 = vadd.f32 %v2892, %v2927
        %2929 = vmatmul.bf16.gmra.mxu0 %v2906
        %v2930 = vpop.f32.mrf.mxu0
        %v2931 = vadd.f32 %v2892, %v2930
        %v2932 = vpop.f32.mrf.mxu0
        %v2933 = vadd.f32 %v2892, %v2932
        %2934 = vmatmul.bf16.gmra.mxu0 %v2909
        %v2935 = vpop.f32.mrf.mxu0
        %v2936 = vadd.f32 %v2892, %v2935
        %v2937 = vpop.f32.mrf.mxu0
        %v2938 = vadd.f32 %v2892, %v2937
        %2939 = vdwg.mxu0
        %2940 = vst.msk [vmem:[%s283] sm:$0xff] %vm457, %v2921
        %2941 = vst.msk [vmem:[%s283 + $0x8] sm:$0xff] %vm457, %v2923
        %2942 = vst.msk [vmem:[%s283 + $0x10] sm:$0xff] %vm457, %v2926
        %2943 = vst.msk [vmem:[%s283 + $0x18] sm:$0xff] %vm457, %v2928
        %2944 = vst.msk [vmem:[%s283 + $0x20] sm:$0xff] %vm457, %v2931
        %2945 = vst.msk [vmem:[%s283 + $0x28] sm:$0xff] %vm457, %v2933
        %2946 = vst.msk [vmem:[%s283 + $0x30] sm:$0xff] %vm457, %v2936
        %2947 = vst.msk [vmem:[%s283 + $0x38] sm:$0xff] %vm457, %v2938
        %v2948 = vsub.f32 %v295, %v2921
        %v2949 = vsub.f32 %v296, %v2923
        %v2950 = vsub.f32 %v297, %v2926
        %v2951 = vsub.f32 %v298, %v2928
        %v2952 = vsub.f32 %v299, %v2931
        %v2953 = vsub.f32 %v300, %v2933
        %v2954 = vsub.f32 %v301, %v2936
        %v2955 = vsub.f32 %v302, %v2938
        %v2956 = vmul.f32 %v2948, %v2948
        %v2957 = vmul.f32 %v2949, %v2949
        %v2958 = vmul.f32 %v2950, %v2950
        %v2959 = vmul.f32 %v2951, %v2951
        %v2960 = vmul.f32 %v2952, %v2952
        %v2961 = vmul.f32 %v2953, %v2953
        %v2962 = vmul.f32 %v2954, %v2954
        %v2963 = vmul.f32 %v2955, %v2955
        %2964 = vst.msk [vmem:[%s289] sm:$0xff] %vm457, %v2956
        %2965 = vst.msk [vmem:[%s289 + $0x8] sm:$0xff] %vm457, %v2957
        %2966 = vst.msk [vmem:[%s289 + $0x10] sm:$0xff] %vm457, %v2958
        %2967 = vst.msk [vmem:[%s289 + $0x18] sm:$0xff] %vm457, %v2959
        %2968 = vst.msk [vmem:[%s289 + $0x20] sm:$0xff] %vm457, %v2960
        %2969 = vst.msk [vmem:[%s289 + $0x28] sm:$0xff] %vm457, %v2961
        %2970 = vst.msk [vmem:[%s289 + $0x30] sm:$0xff] %vm457, %v2962
        %2971 = vst.msk [vmem:[%s289 + $0x38] sm:$0xff] %vm457, %v2963
        %v2972 = vstv %s1496
        %vm2973 = vcmask 0
        %2974 = vst.msk [vmem:[%s293] sm:$0x1] %vm2973, %v2972
        %s2975 = smul.u32 8, %s19
        %p2976 = scmp.lt.s32.totalorder %s2975, 15
        %s2977 = scalar_select %p2976, %s2975, 15
        %s2978 = smul.addr %s2977, 8
        %s2979 = scalar_lea.vmem %s4, %s2978
        %s2980 = smul.u32 8, %s19
        %p2981 = scmp.lt.s32.totalorder %s2980, 15
        %s2982 = scalar_select %p2981, %s2980, 15
        %s2983 = smul.addr %s2982, 8
        %s2984 = scalar_lea.vmem %s5, %s2983
        %p2985 = scmp.lt.s32.totalorder %s19, 1
        %s2986 = scalar_select %p2985, %s19, 1
        %s2987 = scalar_lea.vmem %s6, %s2986
        // Predicated region
        $region41: #{dvae_forward.1} parent=35 // pred_check
          %p2988 = pneg %p126
        $region42: #{dvae_forward.1} parent=35 // pred_check_branch
          %2990 = sbr.rel (%p2988) target = $region44
        $region43: #{dvae_forward.1} parent=35 // pred_region
          %s2991 = smul.u32 8, %s19
        $region44: #{dvae_forward.1} parent=35 // pred_fallthru
          _
        // Predicated region
        $region45: #{dvae_forward.1} parent=35 // pred_check
          %p2992 = pneg %p152
        $region46: #{dvae_forward.1} parent=35 // pred_check_branch
          %2994 = sbr.rel (%p2992) target = $region48
        $region47: #{dvae_forward.1} parent=35 // pred_region
          %s2995 = smul.u32 8, %s19
        $region48: #{dvae_forward.1} parent=35 // pred_fallthru
          _
        // Predicated region
        $region49: #{dvae_forward.1} parent=35 // pred_check
          %p2996 = pneg %p178
        $region50: #{dvae_forward.1} parent=35 // pred_check_branch
          %2998 = sbr.rel (%p2996) target = $region52
        $region51: #{dvae_forward.1} parent=35 // pred_region
          _
        $region52: #{dvae_forward.1} parent=35 // pred_fallthru
          _
      $region36: #{dvae_forward.1} parent=5 // pred_fallthru
        _
      %p2999 = scmp.le.s32.totalorder 2, %s14
      // Predicated region
      $region53: #{dvae_forward.1} parent=5 // pred_check
        %p3000 = pneg %p2999
      $region54: #{dvae_forward.1} parent=5 // pred_check_branch
        %3002 = sbr.rel (%p3000) target = $region56
      $region55: #{dvae_forward.1} parent=5 // pred_region
        %s3003 = ssub.s32 %s14, 2
        // Predicated region
        $region57: #{dvae_forward.1} parent=55 // pred_check
          %p3004 = pneg %p132
        $region58: #{dvae_forward.1} parent=55 // pred_check_branch
          %3006 = sbr.rel (%p3004) target = $region60
        $region59: #{dvae_forward.1} parent=55 // pred_region
          %s3007 = smul.u32 8, %s20
          %p3008 = scmp.lt.s32.totalorder %s3007, 15
          %s3009 = scalar_select %p3008, %s3007, 15
          %s3010 = smul.addr %s3009, 8
          %s3011 = scalar_lea.vmem %s4, %s3010
        $region60: #{dvae_forward.1} parent=55 // pred_fallthru
          _
        // Predicated region
        $region61: #{dvae_forward.1} parent=55 // pred_check
          %p3012 = pneg %p158
        $region62: #{dvae_forward.1} parent=55 // pred_check_branch
          %3014 = sbr.rel (%p3012) target = $region64
        $region63: #{dvae_forward.1} parent=55 // pred_region
          %s3015 = smul.u32 8, %s20
          %p3016 = scmp.lt.s32.totalorder %s3015, 15
          %s3017 = scalar_select %p3016, %s3015, 15
          %s3018 = smul.addr %s3017, 8
          %s3019 = scalar_lea.vmem %s5, %s3018
        $region64: #{dvae_forward.1} parent=55 // pred_fallthru
          _
        // Predicated region
        $region65: #{dvae_forward.1} parent=55 // pred_check
          %p3020 = pneg %p184
        $region66: #{dvae_forward.1} parent=55 // pred_check_branch
          %3022 = sbr.rel (%p3020) target = $region68
        $region67: #{dvae_forward.1} parent=55 // pred_region
          %p3023 = scmp.lt.s32.totalorder %s20, 1
          %s3024 = scalar_select %p3023, %s20, 1
          %s3025 = scalar_lea.vmem %s6, %s3024
        $region68: #{dvae_forward.1} parent=55 // pred_fallthru
          _
      $region56: #{dvae_forward.1} parent=5 // pred_fallthru
        _
    $region6: #{dvae_forward.1} parent=1 // loop_footer
      %s18 = sadd.s32 1, %s14
    $region7: #{dvae_forward.1} parent=1 // loop_footer_branch
      %13 = sbr.rel target = $region3
    $region8: #{dvae_forward.1} parent=1 // loop_exit
      _
    %3026 = vsyncpa [#allocation3], 1
    %s3027 = scalar_lea.sflag [#allocation3], 1
    %3028 = vsyncpa %s3027, 1

</llo_original>
